<compile_context>
chip_gen: v5e
topology: v5e:2x2
jax: 0.10.0
libtpu: 0.0.40
codegen_flags: <defaults>
</compile_context>

<pallas_src>
import functools

import jax
import jax.numpy as jnp
from jax import lax
from jax.experimental import pallas as pl
from jax.experimental.pallas import tpu as pltpu

# model_config.fft_conv1d_kernel / fft_conv1d_padding (standard FastSpeech)
FFT_CONV1D_KERNEL = (9, 1)
FFT_CONV1D_PADDING = (4, 0)
LN_EPS = 1e-5


def _layer_norm(x, gamma, beta):
    mean = jnp.mean(x, axis=-1, keepdims=True)
    var = jnp.mean((x - mean) ** 2, axis=-1, keepdims=True)
    return (x - mean) * lax.rsqrt(var + LN_EPS) * gamma + beta


# ---------------------------------------------------------------------------
# Fused FFTBlock kernel: MultiHeadAttention + PositionwiseFeedForward
# ---------------------------------------------------------------------------
def _fft_block_kernel(x_ref, mask_ref,
                      attn_g_ref, attn_b_ref,
                      wq_ref, bq_ref, wkv_ref, bkv_ref, wfc_ref, bfc_ref,
                      ffn_g_ref, ffn_b_ref,
                      w1p_ref, w1t_ref, b1_ref, w2_ref, b2_ref,
                      out_ref,
                      xp2_ref,
                      *, n_head, d_k, d_v, k1, p1):
    x = x_ref[0]                                   # (T, d_model) f32
    mask = mask_ref[0]                             # (T, 1) f32
    T, d_model = x.shape
    g_a = attn_g_ref[...]
    b_a = attn_b_ref[...]

    # ----------------------- MultiHeadAttention -----------------------
    # Only the query branch is pre-LayerNormed (matches the PyTorch module); k and v
    # are projected from the raw input, so only w_k|w_v are fused into one matmul.
    qn = _layer_norm(x, g_a, b_a)
    x_bf = x.astype(jnp.bfloat16)
    q = jnp.dot(qn.astype(jnp.bfloat16), wq_ref[...],
                preferred_element_type=jnp.float32) + bq_ref[...]
    kv = jnp.dot(x_bf, wkv_ref[...],
                 preferred_element_type=jnp.float32) + bkv_ref[...]
    k = kv[:, : n_head * d_k]
    v = kv[:, n_head * d_k:]

    # NOTE: slf_attn_mask is built by the PyTorch Encoder but ScaledDotProductAttention
    # never applies it (its `mask` argument is unused), so it is omitted here as well.
    inv_temp = 1.0 / (d_k ** 0.5)
    heads = []
    for h in range(n_head):                        # static, small head count
        qh = q[:, h * d_k:(h + 1) * d_k].astype(jnp.bfloat16)
        kh = k[:, h * d_k:(h + 1) * d_k].astype(jnp.bfloat16)
        vh = v[:, h * d_v:(h + 1) * d_v].astype(jnp.bfloat16)
        s = lax.dot_general(qh, kh, (((1,), (1,)), ((), ())),
                            preferred_element_type=jnp.float32) * inv_temp
        s = s - jnp.max(s, axis=-1, keepdims=True)
        p = jnp.exp(s)
        p = p * pl.reciprocal(jnp.sum(p, axis=-1, keepdims=True), approx=True)
        # TODO(synk): attention Dropout(p=0.1) is identity (inference semantics).
        heads.append(jnp.dot(p.astype(jnp.bfloat16), vh,
                             preferred_element_type=jnp.float32))
    o_cat = jnp.concatenate(heads, axis=-1)        # (T, n_head*d_v)
    y = jnp.dot(o_cat.astype(jnp.bfloat16), wfc_ref[...],
                preferred_element_type=jnp.float32) + bfc_ref[...]
    # TODO(synk): fc Dropout(p=0.1) is identity (inference semantics).
    x1 = _layer_norm(y + x, g_a, b_a) * mask       # FFTBlock: enc_output *= non_pad_mask

    # -------------------- PositionwiseFeedForward ---------------------
    g_f = ffn_g_ref[...]
    b_f = ffn_b_ref[...]
    xln = _layer_norm(x1, g_f, b_f).astype(jnp.bfloat16)

    # Zero the conv-padding halo rows of the scratch once (it persists across grid
    # steps and the interior rows are fully rewritten every step).
    @pl.when(pl.program_id(0) == 0)
    def _():
        xp2_ref[...] = jnp.zeros_like(xp2_ref)

    # Stage the zero-padded, LayerNormed sequence twice in VMEM:
    #   lanes [0, d_model)         : row r  = xz[r]
    #   lanes [d_model, 2*d_model) : row r  = xz[r+1]
    # so one matmul consumes a *pair* of conv taps (K = 2*d_model) from aligned-lane
    # VMEM, plus a single tail tap (k1 is odd).
    xp2_ref[pl.ds(p1, T), pl.ds(0, d_model)] = xln
    xp2_ref[pl.ds(p1 - 1, T), pl.ds(d_model, d_model)] = xln

    acc = jnp.dot(xp2_ref[pl.ds(0, T), :], w1p_ref[0],
                  preferred_element_type=jnp.float32)
    for j in range(1, k1 // 2):
        acc = acc + jnp.dot(xp2_ref[pl.ds(2 * j, T), :], w1p_ref[j],
                            preferred_element_type=jnp.float32)
    acc = acc + jnp.dot(xp2_ref[pl.ds(k1 - 1, T), pl.ds(0, d_model)], w1t_ref[...],
                        preferred_element_type=jnp.float32)
    h1 = jnp.maximum(acc + b1_ref[...], 0.0)       # conv1 bias added once, ReLU
    y2 = jnp.dot(h1.astype(jnp.bfloat16), w2_ref[...],
                 preferred_element_type=jnp.float32) + b2_ref[...]
    # TODO(synk): FFN Dropout(p=0.1) is identity (inference semantics).
    out = _layer_norm(y2 + x1, g_f, b_f) * mask    # second `*= non_pad_mask`
    out_ref[0] = out.astype(out_ref.dtype)


def _layer_vmem_limit_bytes(T, d_model, d_hid, n_head, d_k, d_v, k1, p1):
    """Size the scoped-VMEM request from the actual blocks/scratch, capped for v7x."""
    f32, bf16 = 4, 2
    dqk, dv = n_head * d_k, n_head * d_v
    npair = k1 // 2
    tpad = T + 2 * p1
    act = 2 * (2 * T * d_model * f32)              # x + out blocks, double-buffered
    act += 2 * (T * 128 * f32)                     # mask block (lane padded)
    wts = 2 * bf16 * (d_model * dqk + d_model * (dqk + dv) + dv * d_model
                      + npair * 2 * d_model * d_hid + d_model * d_hid
                      + d_hid * d_model)
    vecs = 2 * f32 * 8 * (5 * d_model + dqk + (dqk + dv) + d_hid)
    scratch = tpad * 2 * d_model * bf16
    # live intermediates: one head's (T,T) scores, conv accumulator, q/kv/x1 copies
    interm = T * T * f32 + T * d_hid * f32 + 6 * T * d_model * f32 + (4 << 20)
    est = act + wts + vecs + scratch + interm
    try:
        phys = int(pltpu.get_tpu_info().vmem_capacity_bytes)
    except Exception:
        phys = 64 << 20                            # assume the smallest (v7x) if unknown
    cap = min(48 << 20, (phys * 3) // 4)           # <= ~48 MiB so v7x (64 MiB) always fits
    return int(min(cap, max(est, 16 << 20)))


def fft_block(x, non_pad_mask, p, *, n_head):
    """One FFTBlock (MHA + FFN) fused into a single pallas_call; grid over batch."""
    B, T, d_model = x.shape
    d_k = p["wq"].shape[1] // n_head
    d_v = p["wv"].shape[1] // n_head
    k1, d_in_w, d_hid = p["w1"].shape
    assert d_in_w == d_model and k1 == FFT_CONV1D_KERNEL[0] and k1 % 2 == 1
    p1 = FFT_CONV1D_PADDING[0]
    npair = k1 // 2
    bf16 = jnp.bfloat16

    # MXU weights stored in HBM as bf16 (f32 accumulation inside the kernel).
    wq = p["wq"].astype(bf16)
    wkv = jnp.concatenate([p["wk"], p["wv"]], axis=1).astype(bf16)   # fused K|V projection
    bkv = jnp.concatenate([p["bk"], p["bv"]], axis=1)
    wfc = p["wfc"].astype(bf16)
    # Pair adjacent conv taps: w1p[j] = [w1[2j]; w1[2j+1]] -> (2*d_in, d_hid); odd tail kept.
    w1p = p["w1"][: 2 * npair].reshape(npair, 2 * d_model, d_hid).astype(bf16)
    w1t = p["w1"][k1 - 1].astype(bf16)
    w2 = p["w2"].astype(bf16)

    kernel = functools.partial(_fft_block_kernel, n_head=n_head, d_k=d_k, d_v=d_v,
                               k1=k1, p1=p1)

    def bc(shape):                                 # broadcast (grid-invariant) spec
        return pl.BlockSpec(shape, lambda b: (0,) * len(shape))

    vmem_limit = _layer_vmem_limit_bytes(T, d_model, d_hid, n_head, d_k, d_v, k1, p1)

    return pl.pallas_call(
        kernel,
        out_shape=jax.ShapeDtypeStruct((B, T, d_model), x.dtype),
        grid_spec=pltpu.PrefetchScalarGridSpec(
            num_scalar_prefetch=0,
            grid=(B,),
            in_specs=[
                pl.BlockSpec((1, T, d_model), lambda b: (b, 0, 0)),   # x
                pl.BlockSpec((1, T, 1), lambda b: (b, 0, 0)),         # non_pad_mask
                bc((1, d_model)), bc((1, d_model)),                   # attn LN gamma / beta
                bc((d_model, n_head * d_k)), bc((1, n_head * d_k)),   # wq / bq
                bc((d_model, n_head * (d_k + d_v))),                  # wkv (fused K|V)
                bc((1, n_head * (d_k + d_v))),                        # bkv
                bc((n_head * d_v, d_model)), bc((1, d_model)),        # wfc / bfc
                bc((1, d_model)), bc((1, d_model)),                   # ffn LN gamma / beta
                bc((npair, 2 * d_model, d_hid)),                      # paired conv1 taps
                bc((d_model, d_hid)),                                 # tail conv1 tap
                bc((1, d_hid)),                                       # b1
                bc((d_hid, d_model)), bc((1, d_model)),               # w2 / b2
            ],
            out_specs=pl.BlockSpec((1, T, d_model), lambda b: (b, 0, 0)),
            scratch_shapes=[
                pltpu.VMEM((T + 2 * p1, 2 * d_model), jnp.bfloat16),  # padded, paired seq
            ],
        ),
        compiler_params=pltpu.CompilerParams(
            dimension_semantics=("parallel",),
            vmem_limit_bytes=vmem_limit),
        # TODO(synk): for very long T / v7x dual-core, tile the query dimension
        # (flash-style) instead of materializing full (T, T) scores per head.
    )(x, non_pad_mask,
      p["attn_ln_g"], p["attn_ln_b"], wq, p["bq"], wkv, bkv, wfc, p["bfc"],
      p["ffn_ln_g"], p["ffn_ln_b"], w1p, w1t, p["b1"], w2, p["b2"])


# ---------------------------------------------------------------------------
# Encoder forward
# ---------------------------------------------------------------------------
def encoder_forward(src_seq, src_pos, word_emb, pos_emb, layer_params, *, n_head, pad=0):
    non_pad_mask = (src_seq != pad).astype(jnp.float32)[..., None]       # (B, T, 1)
    # TODO(synk): embedding gathers (src_word_emb / position_enc) are jnp.take in the
    # wrapper rather than a Pallas kernel.
    x = jnp.take(word_emb, src_seq, axis=0) + jnp.take(pos_emb, src_pos, axis=0)
    # slf_attn_mask is computed in the PyTorch Encoder but never applied by
    # ScaledDotProductAttention, so it is intentionally omitted.
    for p in layer_params:
        x = fft_block(x, non_pad_mask, p, n_head=n_head)
    return x, non_pad_mask


# ---------------------------------------------------------------------------
# Pure-JAX reference (f32) for the sanity check
# ---------------------------------------------------------------------------
def _ref_ln(x, g, b):
    m = x.mean(-1, keepdims=True)
    v = ((x - m) ** 2).mean(-1, keepdims=True)
    return (x - m) * jax.lax.rsqrt(v + LN_EPS) * g + b


def ref_encoder(src_seq, src_pos, word_emb, pos_emb, layer_params, *, n_head, pad=0):
    mask = (src_seq != pad).astype(jnp.float32)[..., None]
    x = word_emb[src_seq] + pos_emb[src_pos]
    B, T, d_model = x.shape
    k1 = FFT_CONV1D_KERNEL[0]
    p1 = FFT_CONV1D_PADDING[0]
    for p in layer_params:
        # MHA
        res = x
        qn = _ref_ln(x, p["attn_ln_g"][0], p["attn_ln_b"][0])
        q = qn @ p["wq"] + p["bq"][0]
        k = x @ p["wk"] + p["bk"][0]
        v = x @ p["wv"] + p["bv"][0]
        d_k = q.shape[-1] // n_head
        d_v = v.shape[-1] // n_head
        qh = q.reshape(B, T, n_head, d_k).transpose(0, 2, 1, 3)
        kh = k.reshape(B, T, n_head, d_k).transpose(0, 2, 1, 3)
        vh = v.reshape(B, T, n_head, d_v).transpose(0, 2, 1, 3)
        s = jnp.einsum("bhqd,bhkd->bhqk", qh, kh) / (d_k ** 0.5)
        a = jax.nn.softmax(s, axis=-1)
        o = jnp.einsum("bhqk,bhkd->bhqd", a, vh)
        o = o.transpose(0, 2, 1, 3).reshape(B, T, n_head * d_v)
        y = o @ p["wfc"] + p["bfc"][0]
        x = _ref_ln(y + res, p["attn_ln_g"][0], p["attn_ln_b"][0]) * mask
        # FFN
        res = x
        xln = _ref_ln(x, p["ffn_ln_g"][0], p["ffn_ln_b"][0])
        xp = jnp.pad(xln, ((0, 0), (p1, p1), (0, 0)))
        h = p["b1"][0] + sum(jnp.einsum("btc,ch->bth", xp[:, kk:kk + T, :], p["w1"][kk])
                             for kk in range(k1))
        y = jnp.maximum(h, 0.0) @ p["w2"] + p["b2"][0]
        x = _ref_ln(y + res, p["ffn_ln_g"][0], p["ffn_ln_b"][0]) * mask
    return x, mask


if __name__ == "__main__":
    B, T = 2, 32
    d_model, d_hid = 128, 256            # encoder_dim, encoder_conv1d_filter_size
    n_head = 2
    d_k = d_v = d_model // n_head
    n_layers = 2
    vocab_size = 40
    PAD = 0
    k1 = FFT_CONV1D_KERNEL[0]

    key = jax.random.PRNGKey(0)
    keys = list(jax.random.split(key, 64))
    kit = iter(keys)

    # token / position ids with trailing padding
    lengths = jnp.array([T - 5, T - 11])
    pos_iota = jnp.arange(1, T + 1, dtype=jnp.int32)[None, :]
    valid = pos_iota <= lengths[:, None]
    src_seq = jnp.where(valid, jax.random.randint(next(kit), (B, T), 1, vocab_size), 0)
    src_seq = src_seq.astype(jnp.int32)
    src_pos = jnp.where(valid, pos_iota, 0).astype(jnp.int32)

    # embeddings (padding_idx rows zeroed, as in nn.Embedding(padding_idx=PAD))
    word_emb = jax.random.normal(next(kit), (vocab_size, d_model), jnp.float32)
    word_emb = word_emb.at[PAD].set(0.0)
    pos_emb = jax.random.normal(next(kit), (T + 1, d_model), jnp.float32)
    pos_emb = pos_emb.at[PAD].set(0.0)

    layer_params = []
    for _ in range(n_layers):
        std_qk = (2.0 / (d_model + d_k)) ** 0.5
        std_v = (2.0 / (d_model + d_v)) ** 0.5
        p = {
            "attn_ln_g": 1.0 + 0.1 * jax.random.normal(next(kit), (1, d_model), jnp.float32),
            "attn_ln_b": 0.1 * jax.random.normal(next(kit), (1, d_model), jnp.float32),
            "wq": jax.random.normal(next(kit), (d_model, n_head * d_k), jnp.float32) * std_qk,
            "bq": jax.random.normal(next(kit), (1, n_head * d_k), jnp.float32) * 0.02,
            "wk": jax.random.normal(next(kit), (d_model, n_head * d_k), jnp.float32) * std_qk,
            "bk": jax.random.normal(next(kit), (1, n_head * d_k), jnp.float32) * 0.02,
            "wv": jax.random.normal(next(kit), (d_model, n_head * d_v), jnp.float32) * std_v,
            "bv": jax.random.normal(next(kit), (1, n_head * d_v), jnp.float32) * 0.02,
            "wfc": jax.random.normal(next(kit), (n_head * d_v, d_model), jnp.float32)
                   * (2.0 / (2.0 * d_model)) ** 0.5,
            "bfc": jax.random.normal(next(kit), (1, d_model), jnp.float32) * 0.02,
            "ffn_ln_g": 1.0 + 0.1 * jax.random.normal(next(kit), (1, d_model), jnp.float32),
            "ffn_ln_b": 0.1 * jax.random.normal(next(kit), (1, d_model), jnp.float32),
            # Conv1 weight stored as (K, d_in, d_hid); Conv2 (k=1) as (d_hid, d_in)
            "w1": jax.random.normal(next(kit), (k1, d_model, d_hid), jnp.float32) * 0.05,
            "b1": jax.random.normal(next(kit), (1, d_hid), jnp.float32) * 0.05,
            "w2": jax.random.normal(next(kit), (d_hid, d_model), jnp.float32) * 0.05,
            "b2": jax.random.normal(next(kit), (1, d_model), jnp.float32) * 0.05,
        }
        layer_params.append(p)

    out, mask_out = encoder_forward(src_seq, src_pos, word_emb, pos_emb, layer_params,
                                    n_head=n_head, pad=PAD)
    jax.block_until_ready(out)

    ref_out, ref_mask = ref_encoder(src_seq, src_pos, word_emb, pos_emb, layer_params,
                                    n_head=n_head, pad=PAD)

    # bf16 MXU operands in BOTH the attention and FFN sub-layers (2 layers deep) vs the
    # pure-f32 reference -> loosened tolerance; each sub-layer's trailing LayerNorm keeps
    # the error bounded.
    err = float(jnp.max(jnp.abs(out - ref_out)))
    assert err < 1e-1, f"mismatch vs reference (max abs err {err})"
    assert jnp.allclose(mask_out, ref_mask), "mask mismatch vs reference"

    print("KERNEL_OK")
</pallas_src>

<mosaic_0001>
module attributes {stable_mosaic.version = 11 : i64} {
  func.func @_fft_block_kernel(%arg0: i32, %arg1: memref<1x32x128xf32, #tpu.memory_space<vmem>>, %arg2: memref<1x32x1xf32, #tpu.memory_space<vmem>>, %arg3: memref<1x128xf32, #tpu.memory_space<vmem>>, %arg4: memref<1x128xf32, #tpu.memory_space<vmem>>, %arg5: memref<128x128xbf16, #tpu.memory_space<vmem>>, %arg6: memref<1x128xf32, #tpu.memory_space<vmem>>, %arg7: memref<128x256xbf16, #tpu.memory_space<vmem>>, %arg8: memref<1x256xf32, #tpu.memory_space<vmem>>, %arg9: memref<128x128xbf16, #tpu.memory_space<vmem>>, %arg10: memref<1x128xf32, #tpu.memory_space<vmem>>, %arg11: memref<1x128xf32, #tpu.memory_space<vmem>>, %arg12: memref<1x128xf32, #tpu.memory_space<vmem>>, %arg13: memref<4x256x256xbf16, #tpu.memory_space<vmem>>, %arg14: memref<128x256xbf16, #tpu.memory_space<vmem>>, %arg15: memref<1x256xf32, #tpu.memory_space<vmem>>, %arg16: memref<256x128xbf16, #tpu.memory_space<vmem>>, %arg17: memref<1x128xf32, #tpu.memory_space<vmem>>, %arg18: memref<1x32x128xf32, #tpu.memory_space<vmem>>, %arg19: memref<40x256xbf16, #tpu.memory_space<vmem>>) attributes {dimension_semantics = [#tpu.dimension_semantics<parallel>], iteration_bounds = array<i64: 2>, scalar_prefetch = 0 : i64, scratch_operands = 1 : i64, tpu.core_type = #tpu.core_type<tc>, window_params = [{transform_indices = @transform_0, window_bounds = array<i64: 1, 32, 128>}, {transform_indices = @transform_1, window_bounds = array<i64: 1, 32, 1>}, {pipeline_mode = #tpu.pipeline_mode<synchronous>, transform_indices = @transform_2, window_bounds = array<i64: 1, 128>}, {pipeline_mode = #tpu.pipeline_mode<synchronous>, transform_indices = @transform_3, window_bounds = array<i64: 1, 128>}, {pipeline_mode = #tpu.pipeline_mode<synchronous>, transform_indices = @transform_4, window_bounds = array<i64: 128, 128>}, {pipeline_mode = #tpu.pipeline_mode<synchronous>, transform_indices = @transform_5, window_bounds = array<i64: 1, 128>}, {pipeline_mode = #tpu.pipeline_mode<synchronous>, transform_indices = @transform_6, window_bounds = array<i64: 128, 256>}, {pipeline_mode = #tpu.pipeline_mode<synchronous>, transform_indices = @transform_7, window_bounds = array<i64: 1, 256>}, {pipeline_mode = #tpu.pipeline_mode<synchronous>, transform_indices = @transform_8, window_bounds = array<i64: 128, 128>}, {pipeline_mode = #tpu.pipeline_mode<synchronous>, transform_indices = @transform_9, window_bounds = array<i64: 1, 128>}, {pipeline_mode = #tpu.pipeline_mode<synchronous>, transform_indices = @transform_10, window_bounds = array<i64: 1, 128>}, {pipeline_mode = #tpu.pipeline_mode<synchronous>, transform_indices = @transform_11, window_bounds = array<i64: 1, 128>}, {pipeline_mode = #tpu.pipeline_mode<synchronous>, transform_indices = @transform_12, window_bounds = array<i64: 4, 256, 256>}, {pipeline_mode = #tpu.pipeline_mode<synchronous>, transform_indices = @transform_13, window_bounds = array<i64: 128, 256>}, {pipeline_mode = #tpu.pipeline_mode<synchronous>, transform_indices = @transform_14, window_bounds = array<i64: 1, 256>}, {pipeline_mode = #tpu.pipeline_mode<synchronous>, transform_indices = @transform_15, window_bounds = array<i64: 256, 128>}, {pipeline_mode = #tpu.pipeline_mode<synchronous>, transform_indices = @transform_16, window_bounds = array<i64: 1, 128>}, {transform_indices = @transform_17, window_bounds = array<i64: 1, 32, 128>}]} {
    %c0 = arith.constant 0 : index
    %c0_0 = arith.constant 0 : index
    %c0_1 = arith.constant 0 : index
    %0 = vector.load %arg1[%c0, %c0_0, %c0_1] : memref<1x32x128xf32, #tpu.memory_space<vmem>>, vector<1x32x128xf32>
    %1 = vector.shape_cast %0 : vector<1x32x128xf32> to vector<32x128xf32>
    %c0_2 = arith.constant 0 : index
    %c0_3 = arith.constant 0 : index
    %c0_4 = arith.constant 0 : index
    %2 = vector.load %arg2[%c0_2, %c0_3, %c0_4] : memref<1x32x1xf32, #tpu.memory_space<vmem>>, vector<1x32x1xf32>
    %3 = vector.shape_cast %2 : vector<1x32x1xf32> to vector<32x1xf32>
    %c0_5 = arith.constant 0 : index
    %c0_6 = arith.constant 0 : index
    %4 = vector.load %arg3[%c0_5, %c0_6] : memref<1x128xf32, #tpu.memory_space<vmem>>, vector<1x128xf32>
    %c0_7 = arith.constant 0 : index
    %c0_8 = arith.constant 0 : index
    %5 = vector.load %arg4[%c0_7, %c0_8] : memref<1x128xf32, #tpu.memory_space<vmem>>, vector<1x128xf32>
    %cst = arith.constant dense<0.000000e+00> : vector<32xf32>
    %6 = vector.multi_reduction <add>, %1, %cst [1] : vector<32x128xf32> to vector<32xf32>
    %7 = vector.shape_cast %6 : vector<32xf32> to vector<32x1xf32>
    %cst_9 = arith.constant 1.280000e+02 : f32
    %8 = vector.broadcast %cst_9 : f32 to vector<32x1xf32>
    %9 = arith.divf %7, %8 : vector<32x1xf32>
    %10 = vector.broadcast %9 : vector<32x1xf32> to vector<32x128xf32>
    %11 = arith.subf %1, %10 : vector<32x128xf32>
    %12 = arith.mulf %11, %11 : vector<32x128xf32>
    %cst_10 = arith.constant dense<0.000000e+00> : vector<32xf32>
    %13 = vector.multi_reduction <add>, %12, %cst_10 [1] : vector<32x128xf32> to vector<32xf32>
    %14 = vector.shape_cast %13 : vector<32xf32> to vector<32x1xf32>
    %cst_11 = arith.constant 1.280000e+02 : f32
    %15 = vector.broadcast %cst_11 : f32 to vector<32x1xf32>
    %16 = arith.divf %14, %15 : vector<32x1xf32>
    %17 = vector.broadcast %9 : vector<32x1xf32> to vector<32x128xf32>
    %18 = arith.subf %1, %17 : vector<32x128xf32>
    %cst_12 = arith.constant 9.99999974E-6 : f32
    %19 = vector.broadcast %cst_12 : f32 to vector<32x1xf32>
    %20 = arith.addf %16, %19 : vector<32x1xf32>
    %21 = math.rsqrt %20 : vector<32x1xf32>
    %22 = vector.broadcast %21 : vector<32x1xf32> to vector<32x128xf32>
    %23 = arith.mulf %18, %22 : vector<32x128xf32>
    %24 = vector.broadcast %4 : vector<1x128xf32> to vector<32x128xf32>
    %25 = arith.mulf %23, %24 : vector<32x128xf32>
    %26 = vector.broadcast %5 : vector<1x128xf32> to vector<32x128xf32>
    %27 = arith.addf %25, %26 : vector<32x128xf32>
    %28 = arith.truncf %1 : vector<32x128xf32> to vector<32x128xbf16>
    %29 = arith.truncf %27 : vector<32x128xf32> to vector<32x128xbf16>
    %c0_13 = arith.constant 0 : index
    %c0_14 = arith.constant 0 : index
    %30 = vector.load %arg5[%c0_13, %c0_14] : memref<128x128xbf16, #tpu.memory_space<vmem>>, vector<128x128xbf16>
    %cst_15 = arith.constant dense<0.000000e+00> : vector<32x128xf32>
    %31 = tpu.matmul %29, %30, %cst_15 {dimension_numbers = #tpu.dot_dimension_numbers<[1], [0], [0], [1], [0, 0, 1, 1], [], []>} : vector<32x128xbf16>, vector<128x128xbf16>, vector<32x128xf32> -> vector<32x128xf32>
    %c0_16 = arith.constant 0 : index
    %c0_17 = arith.constant 0 : index
    %32 = vector.load %arg6[%c0_16, %c0_17] : memref<1x128xf32, #tpu.memory_space<vmem>>, vector<1x128xf32>
    %33 = vector.broadcast %32 : vector<1x128xf32> to vector<32x128xf32>
    %34 = arith.addf %31, %33 : vector<32x128xf32>
    %c0_18 = arith.constant 0 : index
    %c0_19 = arith.constant 0 : index
    %35 = vector.load %arg7[%c0_18, %c0_19] : memref<128x256xbf16, #tpu.memory_space<vmem>>, vector<128x256xbf16>
    %cst_20 = arith.constant dense<0.000000e+00> : vector<32x256xf32>
    %36 = tpu.matmul %28, %35, %cst_20 {dimension_numbers = #tpu.dot_dimension_numbers<[1], [0], [0], [1], [0, 0, 1, 1], [], []>} : vector<32x128xbf16>, vector<128x256xbf16>, vector<32x256xf32> -> vector<32x256xf32>
    %c0_21 = arith.constant 0 : index
    %c0_22 = arith.constant 0 : index
    %37 = vector.load %arg8[%c0_21, %c0_22] : memref<1x256xf32, #tpu.memory_space<vmem>>, vector<1x256xf32>
    %38 = vector.broadcast %37 : vector<1x256xf32> to vector<32x256xf32>
    %39 = arith.addf %36, %38 : vector<32x256xf32>
    %40 = vector.extract_strided_slice %39 {offsets = [0, 0], sizes = [32, 128], strides = [1, 1]} : vector<32x256xf32> to vector<32x128xf32>
    %41 = vector.extract_strided_slice %39 {offsets = [0, 128], sizes = [32, 128], strides = [1, 1]} : vector<32x256xf32> to vector<32x128xf32>
    %42 = vector.extract_strided_slice %34 {offsets = [0, 0], sizes = [32, 64], strides = [1, 1]} : vector<32x128xf32> to vector<32x64xf32>
    %43 = arith.truncf %42 : vector<32x64xf32> to vector<32x64xbf16>
    %44 = vector.extract_strided_slice %40 {offsets = [0, 0], sizes = [32, 64], strides = [1, 1]} : vector<32x128xf32> to vector<32x64xf32>
    %45 = arith.truncf %44 : vector<32x64xf32> to vector<32x64xbf16>
    %46 = vector.extract_strided_slice %41 {offsets = [0, 0], sizes = [32, 64], strides = [1, 1]} : vector<32x128xf32> to vector<32x64xf32>
    %47 = arith.truncf %46 : vector<32x64xf32> to vector<32x64xbf16>
    %cst_23 = arith.constant dense<0.000000e+00> : vector<32x32xf32>
    %48 = tpu.matmul %43, %45, %cst_23 {dimension_numbers = #tpu.dot_dimension_numbers<[1], [1], [0], [0], [0, 0, 1, 0], [], []>} : vector<32x64xbf16>, vector<32x64xbf16>, vector<32x32xf32> -> vector<32x32xf32>
    %cst_24 = arith.constant 1.250000e-01 : f32
    %49 = vector.broadcast %cst_24 : f32 to vector<32x32xf32>
    %50 = arith.mulf %48, %49 : vector<32x32xf32>
    %cst_25 = arith.constant dense<0xFF800000> : vector<32xf32>
    %51 = vector.multi_reduction <maximumf>, %50, %cst_25 [1] : vector<32x32xf32> to vector<32xf32>
    %52 = vector.shape_cast %51 : vector<32xf32> to vector<32x1xf32>
    %53 = vector.broadcast %52 : vector<32x1xf32> to vector<32x32xf32>
    %54 = arith.subf %50, %53 : vector<32x32xf32>
    %55 = math.exp %54 : vector<32x32xf32>
    %cst_26 = arith.constant dense<0.000000e+00> : vector<32xf32>
    %56 = vector.multi_reduction <add>, %55, %cst_26 [1] : vector<32x32xf32> to vector<32xf32>
    %57 = vector.shape_cast %56 : vector<32xf32> to vector<32x1xf32>
    %58 = tpu.reciprocal %57 {approx = true} : vector<32x1xf32> -> vector<32x1xf32>
    %59 = vector.broadcast %58 : vector<32x1xf32> to vector<32x32xf32>
    %60 = arith.mulf %55, %59 : vector<32x32xf32>
    %61 = arith.truncf %60 : vector<32x32xf32> to vector<32x32xbf16>
    %cst_27 = arith.constant dense<0.000000e+00> : vector<32x64xf32>
    %62 = tpu.matmul %61, %47, %cst_27 {dimension_numbers = #tpu.dot_dimension_numbers<[1], [0], [0], [1], [0, 0, 1, 1], [], []>} : vector<32x32xbf16>, vector<32x64xbf16>, vector<32x64xf32> -> vector<32x64xf32>
    %63 = vector.extract_strided_slice %34 {offsets = [0, 64], sizes = [32, 64], strides = [1, 1]} : vector<32x128xf32> to vector<32x64xf32>
    %64 = arith.truncf %63 : vector<32x64xf32> to vector<32x64xbf16>
    %65 = vector.extract_strided_slice %40 {offsets = [0, 64], sizes = [32, 64], strides = [1, 1]} : vector<32x128xf32> to vector<32x64xf32>
    %66 = arith.truncf %65 : vector<32x64xf32> to vector<32x64xbf16>
    %67 = vector.extract_strided_slice %41 {offsets = [0, 64], sizes = [32, 64], strides = [1, 1]} : vector<32x128xf32> to vector<32x64xf32>
    %68 = arith.truncf %67 : vector<32x64xf32> to vector<32x64xbf16>
    %cst_28 = arith.constant dense<0.000000e+00> : vector<32x32xf32>
    %69 = tpu.matmul %64, %66, %cst_28 {dimension_numbers = #tpu.dot_dimension_numbers<[1], [1], [0], [0], [0, 0, 1, 0], [], []>} : vector<32x64xbf16>, vector<32x64xbf16>, vector<32x32xf32> -> vector<32x32xf32>
    %cst_29 = arith.constant 1.250000e-01 : f32
    %70 = vector.broadcast %cst_29 : f32 to vector<32x32xf32>
    %71 = arith.mulf %69, %70 : vector<32x32xf32>
    %cst_30 = arith.constant dense<0xFF800000> : vector<32xf32>
    %72 = vector.multi_reduction <maximumf>, %71, %cst_30 [1] : vector<32x32xf32> to vector<32xf32>
    %73 = vector.shape_cast %72 : vector<32xf32> to vector<32x1xf32>
    %74 = vector.broadcast %73 : vector<32x1xf32> to vector<32x32xf32>
    %75 = arith.subf %71, %74 : vector<32x32xf32>
    %76 = math.exp %75 : vector<32x32xf32>
    %cst_31 = arith.constant dense<0.000000e+00> : vector<32xf32>
    %77 = vector.multi_reduction <add>, %76, %cst_31 [1] : vector<32x32xf32> to vector<32xf32>
    %78 = vector.shape_cast %77 : vector<32xf32> to vector<32x1xf32>
    %79 = tpu.reciprocal %78 {approx = true} : vector<32x1xf32> -> vector<32x1xf32>
    %80 = vector.broadcast %79 : vector<32x1xf32> to vector<32x32xf32>
    %81 = arith.mulf %76, %80 : vector<32x32xf32>
    %82 = arith.truncf %81 : vector<32x32xf32> to vector<32x32xbf16>
    %cst_32 = arith.constant dense<0.000000e+00> : vector<32x64xf32>
    %83 = tpu.matmul %82, %68, %cst_32 {dimension_numbers = #tpu.dot_dimension_numbers<[1], [0], [0], [1], [0, 0, 1, 1], [], []>} : vector<32x32xbf16>, vector<32x64xbf16>, vector<32x64xf32> -> vector<32x64xf32>
    %84 = tpu.concatenate %62, %83 in 1 : vector<32x64xf32>, vector<32x64xf32> -> vector<32x128xf32>
    %85 = arith.truncf %84 : vector<32x128xf32> to vector<32x128xbf16>
    %c0_33 = arith.constant 0 : index
    %c0_34 = arith.constant 0 : index
    %86 = vector.load %arg9[%c0_33, %c0_34] : memref<128x128xbf16, #tpu.memory_space<vmem>>, vector<128x128xbf16>
    %cst_35 = arith.constant dense<0.000000e+00> : vector<32x128xf32>
    %87 = tpu.matmul %85, %86, %cst_35 {dimension_numbers = #tpu.dot_dimension_numbers<[1], [0], [0], [1], [0, 0, 1, 1], [], []>} : vector<32x128xbf16>, vector<128x128xbf16>, vector<32x128xf32> -> vector<32x128xf32>
    %c0_36 = arith.constant 0 : index
    %c0_37 = arith.constant 0 : index
    %88 = vector.load %arg10[%c0_36, %c0_37] : memref<1x128xf32, #tpu.memory_space<vmem>>, vector<1x128xf32>
    %89 = vector.broadcast %88 : vector<1x128xf32> to vector<32x128xf32>
    %90 = arith.addf %87, %89 : vector<32x128xf32>
    %91 = arith.addf %90, %1 : vector<32x128xf32>
    %cst_38 = arith.constant dense<0.000000e+00> : vector<32xf32>
    %92 = vector.multi_reduction <add>, %91, %cst_38 [1] : vector<32x128xf32> to vector<32xf32>
    %93 = vector.shape_cast %92 : vector<32xf32> to vector<32x1xf32>
    %cst_39 = arith.constant 1.280000e+02 : f32
    %94 = vector.broadcast %cst_39 : f32 to vector<32x1xf32>
    %95 = arith.divf %93, %94 : vector<32x1xf32>
    %96 = vector.broadcast %95 : vector<32x1xf32> to vector<32x128xf32>
    %97 = arith.subf %91, %96 : vector<32x128xf32>
    %98 = arith.mulf %97, %97 : vector<32x128xf32>
    %cst_40 = arith.constant dense<0.000000e+00> : vector<32xf32>
    %99 = vector.multi_reduction <add>, %98, %cst_40 [1] : vector<32x128xf32> to vector<32xf32>
    %100 = vector.shape_cast %99 : vector<32xf32> to vector<32x1xf32>
    %cst_41 = arith.constant 1.280000e+02 : f32
    %101 = vector.broadcast %cst_41 : f32 to vector<32x1xf32>
    %102 = arith.divf %100, %101 : vector<32x1xf32>
    %103 = vector.broadcast %95 : vector<32x1xf32> to vector<32x128xf32>
    %104 = arith.subf %91, %103 : vector<32x128xf32>
    %cst_42 = arith.constant 9.99999974E-6 : f32
    %105 = vector.broadcast %cst_42 : f32 to vector<32x1xf32>
    %106 = arith.addf %102, %105 : vector<32x1xf32>
    %107 = math.rsqrt %106 : vector<32x1xf32>
    %108 = vector.broadcast %107 : vector<32x1xf32> to vector<32x128xf32>
    %109 = arith.mulf %104, %108 : vector<32x128xf32>
    %110 = vector.broadcast %4 : vector<1x128xf32> to vector<32x128xf32>
    %111 = arith.mulf %109, %110 : vector<32x128xf32>
    %112 = vector.broadcast %5 : vector<1x128xf32> to vector<32x128xf32>
    %113 = arith.addf %111, %112 : vector<32x128xf32>
    %114 = vector.broadcast %3 : vector<32x1xf32> to vector<32x128xf32>
    %115 = arith.mulf %113, %114 : vector<32x128xf32>
    %c0_43 = arith.constant 0 : index
    %c0_44 = arith.constant 0 : index
    %116 = vector.load %arg11[%c0_43, %c0_44] : memref<1x128xf32, #tpu.memory_space<vmem>>, vector<1x128xf32>
    %c0_45 = arith.constant 0 : index
    %c0_46 = arith.constant 0 : index
    %117 = vector.load %arg12[%c0_45, %c0_46] : memref<1x128xf32, #tpu.memory_space<vmem>>, vector<1x128xf32>
    %cst_47 = arith.constant dense<0.000000e+00> : vector<32xf32>
    %118 = vector.multi_reduction <add>, %115, %cst_47 [1] : vector<32x128xf32> to vector<32xf32>
    %119 = vector.shape_cast %118 : vector<32xf32> to vector<32x1xf32>
    %cst_48 = arith.constant 1.280000e+02 : f32
    %120 = vector.broadcast %cst_48 : f32 to vector<32x1xf32>
    %121 = arith.divf %119, %120 : vector<32x1xf32>
    %122 = vector.broadcast %121 : vector<32x1xf32> to vector<32x128xf32>
    %123 = arith.subf %115, %122 : vector<32x128xf32>
    %124 = arith.mulf %123, %123 : vector<32x128xf32>
    %cst_49 = arith.constant dense<0.000000e+00> : vector<32xf32>
    %125 = vector.multi_reduction <add>, %124, %cst_49 [1] : vector<32x128xf32> to vector<32xf32>
    %126 = vector.shape_cast %125 : vector<32xf32> to vector<32x1xf32>
    %cst_50 = arith.constant 1.280000e+02 : f32
    %127 = vector.broadcast %cst_50 : f32 to vector<32x1xf32>
    %128 = arith.divf %126, %127 : vector<32x1xf32>
    %129 = vector.broadcast %121 : vector<32x1xf32> to vector<32x128xf32>
    %130 = arith.subf %115, %129 : vector<32x128xf32>
    %cst_51 = arith.constant 9.99999974E-6 : f32
    %131 = vector.broadcast %cst_51 : f32 to vector<32x1xf32>
    %132 = arith.addf %128, %131 : vector<32x1xf32>
    %133 = math.rsqrt %132 : vector<32x1xf32>
    %134 = vector.broadcast %133 : vector<32x1xf32> to vector<32x128xf32>
    %135 = arith.mulf %130, %134 : vector<32x128xf32>
    %136 = vector.broadcast %116 : vector<1x128xf32> to vector<32x128xf32>
    %137 = arith.mulf %135, %136 : vector<32x128xf32>
    %138 = vector.broadcast %117 : vector<1x128xf32> to vector<32x128xf32>
    %139 = arith.addf %137, %138 : vector<32x128xf32>
    %140 = arith.truncf %139 : vector<32x128xf32> to vector<32x128xbf16>
    %c0_i32 = arith.constant 0 : i32
    %141 = arith.cmpi eq, %arg0, %c0_i32 : i32
    %142 = arith.extui %141 : i1 to i32
    %c0_i32_52 = arith.constant 0 : i32
    %143 = arith.cmpi ne, %142, %c0_i32_52 : i32
    scf.if %143 {
      %cst_95 = arith.constant 0.000000e+00 : bf16
      %208 = vector.broadcast %cst_95 : bf16 to vector<40x256xbf16>
      %c0_96 = arith.constant 0 : index
      %c0_97 = arith.constant 0 : index
      %209 = vector.load %arg19[%c0_96, %c0_97] : memref<40x256xbf16, #tpu.memory_space<vmem>>, vector<40x256xbf16>
      tpu.vector_store %arg19[%c0_96, %c0_97], %208 {strides = array<i32>} : memref<40x256xbf16, #tpu.memory_space<vmem>>, vector<40x256xbf16>,
    } else {
    }
    %c4 = arith.constant 4 : index
    %c0_53 = arith.constant 0 : index
    %144 = vector.load %arg19[%c4, %c0_53] : memref<40x256xbf16, #tpu.memory_space<vmem>>, vector<32x128xbf16>
    tpu.vector_store %arg19[%c4, %c0_53], %140 {strides = array<i32>} : memref<40x256xbf16, #tpu.memory_space<vmem>>, vector<32x128xbf16>,
    %c3 = arith.constant 3 : index
    %c128 = arith.constant 128 : index
    %145 = vector.load %arg19[%c3, %c128] : memref<40x256xbf16, #tpu.memory_space<vmem>>, vector<32x128xbf16>
    tpu.vector_store %arg19[%c3, %c128], %140 {strides = array<i32>} : memref<40x256xbf16, #tpu.memory_space<vmem>>, vector<32x128xbf16>,
    %c0_54 = arith.constant 0 : index
    %c0_55 = arith.constant 0 : index
    %146 = vector.load %arg19[%c0_54, %c0_55] : memref<40x256xbf16, #tpu.memory_space<vmem>>, vector<32x256xbf16>
    %c0_56 = arith.constant 0 : index
    %c0_57 = arith.constant 0 : index
    %c0_58 = arith.constant 0 : index
    %147 = vector.load %arg13[%c0_56, %c0_57, %c0_58] : memref<4x256x256xbf16, #tpu.memory_space<vmem>>, vector<1x256x256xbf16>
    %148 = vector.shape_cast %147 : vector<1x256x256xbf16> to vector<256x256xbf16>
    %cst_59 = arith.constant dense<0.000000e+00> : vector<32x256xf32>
    %149 = tpu.matmul %146, %148, %cst_59 {dimension_numbers = #tpu.dot_dimension_numbers<[1], [0], [0], [1], [0, 0, 1, 1], [], []>} : vector<32x256xbf16>, vector<256x256xbf16>, vector<32x256xf32> -> vector<32x256xf32>
    %c2 = arith.constant 2 : index
    %c0_60 = arith.constant 0 : index
    %150 = vector.load %arg19[%c2, %c0_60] : memref<40x256xbf16, #tpu.memory_space<vmem>>, vector<32x256xbf16>
    %c1 = arith.constant 1 : index
    %c0_61 = arith.constant 0 : index
    %c0_62 = arith.constant 0 : index
    %151 = vector.load %arg13[%c1, %c0_61, %c0_62] : memref<4x256x256xbf16, #tpu.memory_space<vmem>>, vector<1x256x256xbf16>
    %152 = vector.shape_cast %151 : vector<1x256x256xbf16> to vector<256x256xbf16>
    %cst_63 = arith.constant dense<0.000000e+00> : vector<32x256xf32>
    %153 = tpu.matmul %150, %152, %cst_63 {dimension_numbers = #tpu.dot_dimension_numbers<[1], [0], [0], [1], [0, 0, 1, 1], [], []>} : vector<32x256xbf16>, vector<256x256xbf16>, vector<32x256xf32> -> vector<32x256xf32>
    %154 = arith.addf %149, %153 : vector<32x256xf32>
    %c4_64 = arith.constant 4 : index
    %c0_65 = arith.constant 0 : index
    %155 = vector.load %arg19[%c4_64, %c0_65] : memref<40x256xbf16, #tpu.memory_space<vmem>>, vector<32x256xbf16>
    %c2_66 = arith.constant 2 : index
    %c0_67 = arith.constant 0 : index
    %c0_68 = arith.constant 0 : index
    %156 = vector.load %arg13[%c2_66, %c0_67, %c0_68] : memref<4x256x256xbf16, #tpu.memory_space<vmem>>, vector<1x256x256xbf16>
    %157 = vector.shape_cast %156 : vector<1x256x256xbf16> to vector<256x256xbf16>
    %cst_69 = arith.constant dense<0.000000e+00> : vector<32x256xf32>
    %158 = tpu.matmul %155, %157, %cst_69 {dimension_numbers = #tpu.dot_dimension_numbers<[1], [0], [0], [1], [0, 0, 1, 1], [], []>} : vector<32x256xbf16>, vector<256x256xbf16>, vector<32x256xf32> -> vector<32x256xf32>
    %159 = arith.addf %154, %158 : vector<32x256xf32>
    %c6 = arith.constant 6 : index
    %c0_70 = arith.constant 0 : index
    %160 = vector.load %arg19[%c6, %c0_70] : memref<40x256xbf16, #tpu.memory_space<vmem>>, vector<32x256xbf16>
    %c3_71 = arith.constant 3 : index
    %c0_72 = arith.constant 0 : index
    %c0_73 = arith.constant 0 : index
    %161 = vector.load %arg13[%c3_71, %c0_72, %c0_73] : memref<4x256x256xbf16, #tpu.memory_space<vmem>>, vector<1x256x256xbf16>
    %162 = vector.shape_cast %161 : vector<1x256x256xbf16> to vector<256x256xbf16>
    %cst_74 = arith.constant dense<0.000000e+00> : vector<32x256xf32>
    %163 = tpu.matmul %160, %162, %cst_74 {dimension_numbers = #tpu.dot_dimension_numbers<[1], [0], [0], [1], [0, 0, 1, 1], [], []>} : vector<32x256xbf16>, vector<256x256xbf16>, vector<32x256xf32> -> vector<32x256xf32>
    %164 = arith.addf %159, %163 : vector<32x256xf32>
    %c8 = arith.constant 8 : index
    %c0_75 = arith.constant 0 : index
    %165 = vector.load %arg19[%c8, %c0_75] : memref<40x256xbf16, #tpu.memory_space<vmem>>, vector<32x128xbf16>
    %c0_76 = arith.constant 0 : index
    %c0_77 = arith.constant 0 : index
    %166 = vector.load %arg14[%c0_76, %c0_77] : memref<128x256xbf16, #tpu.memory_space<vmem>>, vector<128x256xbf16>
    %cst_78 = arith.constant dense<0.000000e+00> : vector<32x256xf32>
    %167 = tpu.matmul %165, %166, %cst_78 {dimension_numbers = #tpu.dot_dimension_numbers<[1], [0], [0], [1], [0, 0, 1, 1], [], []>} : vector<32x128xbf16>, vector<128x256xbf16>, vector<32x256xf32> -> vector<32x256xf32>
    %168 = arith.addf %164, %167 : vector<32x256xf32>
    %c0_79 = arith.constant 0 : index
    %c0_80 = arith.constant 0 : index
    %169 = vector.load %arg15[%c0_79, %c0_80] : memref<1x256xf32, #tpu.memory_space<vmem>>, vector<1x256xf32>
    %170 = vector.broadcast %169 : vector<1x256xf32> to vector<32x256xf32>
    %171 = arith.addf %168, %170 : vector<32x256xf32>
    %cst_81 = arith.constant 0.000000e+00 : f32
    %172 = vector.broadcast %cst_81 : f32 to vector<32x256xf32>
    %173 = arith.maximumf %171, %172 : vector<32x256xf32>
    %174 = arith.truncf %173 : vector<32x256xf32> to vector<32x256xbf16>
    %c0_82 = arith.constant 0 : index
    %c0_83 = arith.constant 0 : index
    %175 = vector.load %arg16[%c0_82, %c0_83] : memref<256x128xbf16, #tpu.memory_space<vmem>>, vector<256x128xbf16>
    %cst_84 = arith.constant dense<0.000000e+00> : vector<32x128xf32>
    %176 = tpu.matmul %174, %175, %cst_84 {dimension_numbers = #tpu.dot_dimension_numbers<[1], [0], [0], [1], [0, 0, 1, 1], [], []>} : vector<32x256xbf16>, vector<256x128xbf16>, vector<32x128xf32> -> vector<32x128xf32>
    %c0_85 = arith.constant 0 : index
    %c0_86 = arith.constant 0 : index
    %177 = vector.load %arg17[%c0_85, %c0_86] : memref<1x128xf32, #tpu.memory_space<vmem>>, vector<1x128xf32>
    %178 = vector.broadcast %177 : vector<1x128xf32> to vector<32x128xf32>
    %179 = arith.addf %176, %178 : vector<32x128xf32>
    %180 = arith.addf %179, %115 : vector<32x128xf32>
    %cst_87 = arith.constant dense<0.000000e+00> : vector<32xf32>
    %181 = vector.multi_reduction <add>, %180, %cst_87 [1] : vector<32x128xf32> to vector<32xf32>
    %182 = vector.shape_cast %181 : vector<32xf32> to vector<32x1xf32>
    %cst_88 = arith.constant 1.280000e+02 : f32
    %183 = vector.broadcast %cst_88 : f32 to vector<32x1xf32>
    %184 = arith.divf %182, %183 : vector<32x1xf32>
    %185 = vector.broadcast %184 : vector<32x1xf32> to vector<32x128xf32>
    %186 = arith.subf %180, %185 : vector<32x128xf32>
    %187 = arith.mulf %186, %186 : vector<32x128xf32>
    %cst_89 = arith.constant dense<0.000000e+00> : vector<32xf32>
    %188 = vector.multi_reduction <add>, %187, %cst_89 [1] : vector<32x128xf32> to vector<32xf32>
    %189 = vector.shape_cast %188 : vector<32xf32> to vector<32x1xf32>
    %cst_90 = arith.constant 1.280000e+02 : f32
    %190 = vector.broadcast %cst_90 : f32 to vector<32x1xf32>
    %191 = arith.divf %189, %190 : vector<32x1xf32>
    %192 = vector.broadcast %184 : vector<32x1xf32> to vector<32x128xf32>
    %193 = arith.subf %180, %192 : vector<32x128xf32>
    %cst_91 = arith.constant 9.99999974E-6 : f32
    %194 = vector.broadcast %cst_91 : f32 to vector<32x1xf32>
    %195 = arith.addf %191, %194 : vector<32x1xf32>
    %196 = math.rsqrt %195 : vector<32x1xf32>
    %197 = vector.broadcast %196 : vector<32x1xf32> to vector<32x128xf32>
    %198 = arith.mulf %193, %197 : vector<32x128xf32>
    %199 = vector.broadcast %116 : vector<1x128xf32> to vector<32x128xf32>
    %200 = arith.mulf %198, %199 : vector<32x128xf32>
    %201 = vector.broadcast %117 : vector<1x128xf32> to vector<32x128xf32>
    %202 = arith.addf %200, %201 : vector<32x128xf32>
    %203 = vector.broadcast %3 : vector<32x1xf32> to vector<32x128xf32>
    %204 = arith.mulf %202, %203 : vector<32x128xf32>
    %c0_92 = arith.constant 0 : index
    %c0_93 = arith.constant 0 : index
    %c0_94 = arith.constant 0 : index
    %205 = vector.load %arg18[%c0_92, %c0_93, %c0_94] : memref<1x32x128xf32, #tpu.memory_space<vmem>>, vector<1x32x128xf32>
    %206 = vector.shape_cast %205 : vector<1x32x128xf32> to vector<32x128xf32>
    %207 = vector.shape_cast %204 : vector<32x128xf32> to vector<1x32x128xf32>
    tpu.vector_store %arg18[%c0_92, %c0_93, %c0_94], %207 {strides = array<i32>} : memref<1x32x128xf32, #tpu.memory_space<vmem>>, vector<1x32x128xf32>,
    return
  }
  func.func @transform_0(%arg0: i32) -> (i32, i32, i32) {
    %c0_i32 = arith.constant 0 : i32
    %c0_i32_0 = arith.constant 0 : i32
    %c0_i32_1 = arith.constant 0 : i32
    return %arg0, %c0_i32, %c0_i32_0 : i32, i32, i32
  }
  func.func @transform_1(%arg0: i32) -> (i32, i32, i32) {
    %c0_i32 = arith.constant 0 : i32
    %c0_i32_0 = arith.constant 0 : i32
    %c0_i32_1 = arith.constant 0 : i32
    return %arg0, %c0_i32, %c0_i32_0 : i32, i32, i32
  }
  func.func @transform_2(%arg0: i32) -> (i32, i32) {
    %c0_i32 = arith.constant 0 : i32
    %c0_i32_0 = arith.constant 0 : i32
    %c0_i32_1 = arith.constant 0 : i32
    return %c0_i32, %c0_i32_0 : i32, i32
  }
  func.func @transform_3(%arg0: i32) -> (i32, i32) {
    %c0_i32 = arith.constant 0 : i32
    %c0_i32_0 = arith.constant 0 : i32
    %c0_i32_1 = arith.constant 0 : i32
    return %c0_i32, %c0_i32_0 : i32, i32
  }
  func.func @transform_4(%arg0: i32) -> (i32, i32) {
    %c0_i32 = arith.constant 0 : i32
    %c0_i32_0 = arith.constant 0 : i32
    %c0_i32_1 = arith.constant 0 : i32
    return %c0_i32, %c0_i32_0 : i32, i32
  }
  func.func @transform_5(%arg0: i32) -> (i32, i32) {
    %c0_i32 = arith.constant 0 : i32
    %c0_i32_0 = arith.constant 0 : i32
    %c0_i32_1 = arith.constant 0 : i32
    return %c0_i32, %c0_i32_0 : i32, i32
  }
  func.func @transform_6(%arg0: i32) -> (i32, i32) {
    %c0_i32 = arith.constant 0 : i32
    %c0_i32_0 = arith.constant 0 : i32
    %c0_i32_1 = arith.constant 0 : i32
    return %c0_i32, %c0_i32_0 : i32, i32
  }
  func.func @transform_7(%arg0: i32) -> (i32, i32) {
    %c0_i32 = arith.constant 0 : i32
    %c0_i32_0 = arith.constant 0 : i32
    %c0_i32_1 = arith.constant 0 : i32
    return %c0_i32, %c0_i32_0 : i32, i32
  }
  func.func @transform_8(%arg0: i32) -> (i32, i32) {
    %c0_i32 = arith.constant 0 : i32
    %c0_i32_0 = arith.constant 0 : i32
    %c0_i32_1 = arith.constant 0 : i32
    return %c0_i32, %c0_i32_0 : i32, i32
  }
  func.func @transform_9(%arg0: i32) -> (i32, i32) {
    %c0_i32 = arith.constant 0 : i32
    %c0_i32_0 = arith.constant 0 : i32
    %c0_i32_1 = arith.constant 0 : i32
    return %c0_i32, %c0_i32_0 : i32, i32
  }
  func.func @transform_10(%arg0: i32) -> (i32, i32) {
    %c0_i32 = arith.constant 0 : i32
    %c0_i32_0 = arith.constant 0 : i32
    %c0_i32_1 = arith.constant 0 : i32
    return %c0_i32, %c0_i32_0 : i32, i32
  }
  func.func @transform_11(%arg0: i32) -> (i32, i32) {
    %c0_i32 = arith.constant 0 : i32
    %c0_i32_0 = arith.constant 0 : i32
    %c0_i32_1 = arith.constant 0 : i32
    return %c0_i32, %c0_i32_0 : i32, i32
  }
  func.func @transform_12(%arg0: i32) -> (i32, i32, i32) {
    %c0_i32 = arith.constant 0 : i32
    %c0_i32_0 = arith.constant 0 : i32
    %c0_i32_1 = arith.constant 0 : i32
    %c0_i32_2 = arith.constant 0 : i32
    return %c0_i32, %c0_i32_0, %c0_i32_1 : i32, i32, i32
  }
  func.func @transform_13(%arg0: i32) -> (i32, i32) {
    %c0_i32 = arith.constant 0 : i32
    %c0_i32_0 = arith.constant 0 : i32
    %c0_i32_1 = arith.constant 0 : i32
    return %c0_i32, %c0_i32_0 : i32, i32
  }
  func.func @transform_14(%arg0: i32) -> (i32, i32) {
    %c0_i32 = arith.constant 0 : i32
    %c0_i32_0 = arith.constant 0 : i32
    %c0_i32_1 = arith.constant 0 : i32
    return %c0_i32, %c0_i32_0 : i32, i32
  }
  func.func @transform_15(%arg0: i32) -> (i32, i32) {
    %c0_i32 = arith.constant 0 : i32
    %c0_i32_0 = arith.constant 0 : i32
    %c0_i32_1 = arith.constant 0 : i32
    return %c0_i32, %c0_i32_0 : i32, i32
  }
  func.func @transform_16(%arg0: i32) -> (i32, i32) {
    %c0_i32 = arith.constant 0 : i32
    %c0_i32_0 = arith.constant 0 : i32
    %c0_i32_1 = arith.constant 0 : i32
    return %c0_i32, %c0_i32_0 : i32, i32
  }
  func.func @transform_17(%arg0: i32) -> (i32, i32, i32) {
    %c0_i32 = arith.constant 0 : i32
    %c0_i32_0 = arith.constant 0 : i32
    %c0_i32_1 = arith.constant 0 : i32
    return %arg0, %c0_i32, %c0_i32_0 : i32, i32, i32
  }
}

</mosaic_0001>

<llo_original>
// kernel: tpu_custom_call.1
$region0: #{tpu_custom_call.1}
  #allocation0 [shape = 'u32[]', space=smem, size = 0x4, offset = 0x4, fixed_abs, tag = 'smem constant byte address 0x4 - core index']
  #allocation1 [shape = 'u32[72,128]{1,0:T(1,128)}', space=vmem, size = 0x9000, scoped, tag = 'internal scratch']
  #allocation2 [shape = 'bf16[40,256]{1,0:T(8,128)(2,1)}', space=vmem, size = 0x5000, scoped, tag = 'scratch operand']
  %s0 = inlined_call_operand.vmem [shape: f32[2,32,128], index: 0, kind: input, shape index: {}]
  %s1 = inlined_call_operand.vmem [shape: f32[2,32,1], index: 1, kind: input, shape index: {}]
  %s2 = inlined_call_operand.hbm [shape: f32[1,128], index: 2, kind: input, shape index: {}]
  %s3 = inlined_call_operand.hbm [shape: f32[1,128], index: 3, kind: input, shape index: {}]
  %s4 = inlined_call_operand.hbm [shape: bf16[128,128], index: 4, kind: input, shape index: {}]
  %s5 = inlined_call_operand.vmem [shape: f32[1,128], index: 5, kind: input, shape index: {}]
  %s6 = inlined_call_operand.hbm [shape: bf16[128,256], index: 6, kind: input, shape index: {}]
  %s7 = inlined_call_operand.vmem [shape: f32[1,256], index: 7, kind: input, shape index: {}]
  %s8 = inlined_call_operand.hbm [shape: bf16[128,128], index: 8, kind: input, shape index: {}]
  %s9 = inlined_call_operand.vmem [shape: f32[1,128], index: 9, kind: input, shape index: {}]
  %s10 = inlined_call_operand.vmem [shape: f32[1,128], index: 10, kind: input, shape index: {}]
  %s11 = inlined_call_operand.vmem [shape: f32[1,128], index: 11, kind: input, shape index: {}]
  %s12 = inlined_call_operand.hbm [shape: bf16[4,256,256], index: 12, kind: input, shape index: {}]
  %s13 = inlined_call_operand.hbm [shape: bf16[128,256], index: 13, kind: input, shape index: {}]
  %s14 = inlined_call_operand.vmem [shape: f32[1,256], index: 14, kind: input, shape index: {}]
  %s15 = inlined_call_operand.hbm [shape: bf16[256,128], index: 15, kind: input, shape index: {}]
  %s16 = inlined_call_operand.vmem [shape: f32[1,128], index: 16, kind: input, shape index: {}]
  %s17 = inlined_call_operand.hbm [shape: f32[2,32,128], index: 17, kind: output, shape index: {}]
  %s18 = sld [smem:[#allocation0]]
  $region137: #{tpu_custom_call.1} parent=0
    _
  %s20 = ssub.s32 1, %s18
  %s21 = scalar_select 0, %s20, %s18
  $region1: #{tpu_custom_call.1} parent=0
    #allocation3 [shape = 'u8[512]{0}', space=vmem, size = 0x400, scoped, tag = 'input window, operand 2, single buffered']
    #allocation4 [shape = 's32[2]{0}', space=sflag, size = 0x8, scoped, tag = 'scoped memory for tpu_custom_call.1']
    #allocation5 [shape = 's32[2]{0}', space=sflag, size = 0x8, scoped, tag = 'scoped memory for tpu_custom_call.1']
    #allocation6 [shape = 'u8[512]{0}', space=vmem, size = 0x400, scoped, tag = 'input window, operand 3, single buffered']
    #allocation7 [shape = 's32[1]{0}', space=sflag, size = 0x4, scoped, tag = 'scoped memory for tpu_custom_call.1']
    #allocation8 [shape = 'u8[32768]{0}', space=vmem, size = 0x8000, scoped, tag = 'input window, operand 4, single buffered']
    #allocation9 [shape = 'u8[65536]{0}', space=vmem, size = 0x10000, scoped, tag = 'input window, operand 6, single buffered']
    #allocation10 [shape = 's32[1]{0}', space=sflag, size = 0x4, scoped, tag = 'scoped memory for tpu_custom_call.1']
    #allocation11 [shape = 'u8[32768]{0}', space=vmem, size = 0x8000, scoped, tag = 'input window, operand 8, single buffered']
    #allocation12 [shape = 'u8[524288]{0}', space=vmem, size = 0x80000, scoped, tag = 'input window, operand 12, single buffered']
    #allocation13 [shape = 's32[1]{0}', space=sflag, size = 0x4, scoped, tag = 'scoped memory for tpu_custom_call.1']
    #allocation14 [shape = 'u8[65536]{0}', space=vmem, size = 0x10000, scoped, tag = 'input window, operand 13, single buffered']
    #allocation15 [shape = 'u8[65536]{0}', space=vmem, size = 0x10000, scoped, tag = 'input window, operand 15, single buffered']
    #allocation16 [shape = 's32[1]{0}', space=sflag, size = 0x4, scoped, tag = 'scoped memory for tpu_custom_call.1']
    #allocation17 [shape = 'u8[32768]{0}', space=vmem, size = 0x8000, scoped, tag = 'output window, operand 0']
    %22 = vsyncpa [#allocation4], 0
    %23 = vsyncpa [#allocation7], 0
    %24 = vsyncpa [#allocation10], 0
    %25 = vsyncpa [#allocation13], 0
    %26 = vsyncpa [#allocation16], 0
    %27 = vsyncpa [#allocation5], 0
    %s28 = scalar_lea.sflag [#allocation5], 1
    %29 = vsyncpa %s28, 0
    loop: start=0, step=1, limit=4
    $region2: #{tpu_custom_call.1} parent=1 // loop_pre_header
      _
    $region3: #{tpu_custom_call.1} parent=1 // loop_header
      %s31 = sphi 0, %s35
      %p32 = scmp.ge.s32.totalorder %s31, 4
      %s41 = sphi 0, %s43
      %s44 = sphi 0, %s41
      %s45 = sphi 0, %s44
      %s61 = sphi 0, %s45
      %s67 = sphi 0, %s69
      %s70 = sphi 0, %s67
      %s71 = sphi 0, %s70
      %s87 = sphi 0, %s71
      %s91 = sphi 0, %s91
      %s93 = sphi 0, %s91
      %s94 = sphi 0, %s93
      %s108 = sphi 0, %s94
      %s112 = sphi 0, %s112
      %s114 = sphi 0, %s112
      %s115 = sphi 0, %s114
      %s129 = sphi 0, %s115
      %s133 = sphi 0, %s133
      %s135 = sphi 0, %s133
      %s136 = sphi 0, %s135
      %s150 = sphi 0, %s136
      %s154 = sphi 0, %s154
      %s156 = sphi 0, %s154
      %s157 = sphi 0, %s156
      %s171 = sphi 0, %s157
      %s175 = sphi 0, %s175
      %s177 = sphi 0, %s175
      %s178 = sphi 0, %s177
      %s192 = sphi 0, %s178
      %s196 = sphi 0, %s196
      %s198 = sphi 0, %s196
      %s199 = sphi 0, %s198
      %s213 = sphi 0, %s199
      %s217 = sphi 0, %s217
      %s219 = sphi 0, %s217
      %s220 = sphi 0, %s219
      %s234 = sphi 0, %s220
      %s238 = sphi 0, %s238
      %s240 = sphi 0, %s238
      %s241 = sphi 0, %s240
      %s255 = sphi 0, %s241
      %s259 = sphi 0, %s259
      %s261 = sphi 0, %s259
      %s262 = sphi 0, %s261
      %s276 = sphi 0, %s262
      %s280 = sphi 0, %s280
      %s282 = sphi 0, %s280
      %s283 = sphi 0, %s282
      %s297 = sphi 0, %s283
      %s301 = sphi 0, %s301
      %s303 = sphi 0, %s301
      %s304 = sphi 0, %s303
      %s318 = sphi 0, %s304
      %s322 = sphi 0, %s322
      %s324 = sphi 0, %s322
      %s325 = sphi 0, %s324
      %s339 = sphi 0, %s325
      %s343 = sphi 0, %s343
      %s345 = sphi 0, %s343
      %s346 = sphi 0, %s345
      %s360 = sphi 0, %s346
      %s364 = sphi 0, %s364
      %s366 = sphi 0, %s364
      %s367 = sphi 0, %s366
      %s381 = sphi 0, %s367
      %s385 = sphi 0, %s385
      %s387 = sphi 0, %s385
      %s388 = sphi 0, %s387
      %s402 = sphi 0, %s388
      %s408 = sphi 0, %s410
      %s411 = sphi 0, %s408
      %s412 = sphi 0, %s411
      %s428 = sphi 0, %s412
    $region4: #{tpu_custom_call.1} parent=1 // loop_header_branch
      %34 = sbr.rel (%p32) target = $region8
    $region5: #{tpu_custom_call.1} parent=1 // loop_body
      %s36 = ssub.s32 %s31, 1
      %s37 = ssub.s32 %s31, 2
      %s38 = sadd.s32 %s31, 1
      %s39 = ssub.s32 %s31, %s38
      %p40 = scmp.eq.s32.totalorder %s39, 0
      %s42 = sadd.s32 %s41, 1
      %s43 = scalar_select %p40, %s41, %s42
      %p46 = pneg %p40
      %p47 = scmp.eq.s32.totalorder %s31, 1
      %p48 = por %p46, %p47
      %p49 = scmp.ne.s32.totalorder %s41, %s44
      %p50 = scmp.eq.s32.totalorder %s31, 0
      %p51 = por %p49, %p50
      %p52 = scmp.ne.s32.totalorder %s41, %s44
      %p53 = scmp.eq.s32.totalorder %s36, 1
      %p54 = por %p52, %p53
      %p55 = scmp.ne.s32.totalorder %s44, %s45
      %p56 = scmp.eq.s32.totalorder %s36, 0
      %p57 = por %p55, %p56
      %p58 = scmp.ne.s32.totalorder %s44, %s45
      %p59 = scmp.eq.s32.totalorder %s37, 1
      %p60 = por %p58, %p59
      %p62 = scmp.ne.s32.totalorder %s45, %s61
      %p63 = scmp.eq.s32.totalorder %s37, 0
      %p64 = por %p62, %p63
      %s65 = ssub.s32 %s31, %s38
      %p66 = scmp.eq.s32.totalorder %s65, 0
      %s68 = sadd.s32 %s67, 1
      %s69 = scalar_select %p66, %s67, %s68
      %p72 = pneg %p66
      %p73 = scmp.eq.s32.totalorder %s31, 1
      %p74 = por %p72, %p73
      %p75 = scmp.ne.s32.totalorder %s67, %s70
      %p76 = scmp.eq.s32.totalorder %s31, 0
      %p77 = por %p75, %p76
      %p78 = scmp.ne.s32.totalorder %s67, %s70
      %p79 = scmp.eq.s32.totalorder %s36, 1
      %p80 = por %p78, %p79
      %p81 = scmp.ne.s32.totalorder %s70, %s71
      %p82 = scmp.eq.s32.totalorder %s36, 0
      %p83 = por %p81, %p82
      %p84 = scmp.ne.s32.totalorder %s70, %s71
      %p85 = scmp.eq.s32.totalorder %s37, 1
      %p86 = por %p84, %p85
      %p88 = scmp.ne.s32.totalorder %s71, %s87
      %p89 = scmp.eq.s32.totalorder %s37, 0
      %p90 = por %p88, %p89
      %s92 = sadd.s32 %s91, 1
      %p95 = scmp.eq.s32.totalorder %s31, 1
      %p96 = scmp.ne.s32.totalorder %s91, %s93
      %p97 = scmp.eq.s32.totalorder %s31, 0
      %p98 = por %p96, %p97
      %p99 = scmp.ne.s32.totalorder %s91, %s93
      %p100 = scmp.eq.s32.totalorder %s36, 1
      %p101 = por %p99, %p100
      %p102 = scmp.ne.s32.totalorder %s93, %s94
      %p103 = scmp.eq.s32.totalorder %s36, 0
      %p104 = por %p102, %p103
      %p105 = scmp.ne.s32.totalorder %s93, %s94
      %p106 = scmp.eq.s32.totalorder %s37, 1
      %p107 = por %p105, %p106
      %p109 = scmp.ne.s32.totalorder %s94, %s108
      %p110 = scmp.eq.s32.totalorder %s37, 0
      %p111 = por %p109, %p110
      %s113 = sadd.s32 %s112, 1
      %p116 = scmp.eq.s32.totalorder %s31, 1
      %p117 = scmp.ne.s32.totalorder %s112, %s114
      %p118 = scmp.eq.s32.totalorder %s31, 0
      %p119 = por %p117, %p118
      %p120 = scmp.ne.s32.totalorder %s112, %s114
      %p121 = scmp.eq.s32.totalorder %s36, 1
      %p122 = por %p120, %p121
      %p123 = scmp.ne.s32.totalorder %s114, %s115
      %p124 = scmp.eq.s32.totalorder %s36, 0
      %p125 = por %p123, %p124
      %p126 = scmp.ne.s32.totalorder %s114, %s115
      %p127 = scmp.eq.s32.totalorder %s37, 1
      %p128 = por %p126, %p127
      %p130 = scmp.ne.s32.totalorder %s115, %s129
      %p131 = scmp.eq.s32.totalorder %s37, 0
      %p132 = por %p130, %p131
      %s134 = sadd.s32 %s133, 1
      %p137 = scmp.eq.s32.totalorder %s31, 1
      %p138 = scmp.ne.s32.totalorder %s133, %s135
      %p139 = scmp.eq.s32.totalorder %s31, 0
      %p140 = por %p138, %p139
      %p141 = scmp.ne.s32.totalorder %s133, %s135
      %p142 = scmp.eq.s32.totalorder %s36, 1
      %p143 = por %p141, %p142
      %p144 = scmp.ne.s32.totalorder %s135, %s136
      %p145 = scmp.eq.s32.totalorder %s36, 0
      %p146 = por %p144, %p145
      %p147 = scmp.ne.s32.totalorder %s135, %s136
      %p148 = scmp.eq.s32.totalorder %s37, 1
      %p149 = por %p147, %p148
      %p151 = scmp.ne.s32.totalorder %s136, %s150
      %p152 = scmp.eq.s32.totalorder %s37, 0
      %p153 = por %p151, %p152
      %s155 = sadd.s32 %s154, 1
      %p158 = scmp.eq.s32.totalorder %s31, 1
      %p159 = scmp.ne.s32.totalorder %s154, %s156
      %p160 = scmp.eq.s32.totalorder %s31, 0
      %p161 = por %p159, %p160
      %p162 = scmp.ne.s32.totalorder %s154, %s156
      %p163 = scmp.eq.s32.totalorder %s36, 1
      %p164 = por %p162, %p163
      %p165 = scmp.ne.s32.totalorder %s156, %s157
      %p166 = scmp.eq.s32.totalorder %s36, 0
      %p167 = por %p165, %p166
      %p168 = scmp.ne.s32.totalorder %s156, %s157
      %p169 = scmp.eq.s32.totalorder %s37, 1
      %p170 = por %p168, %p169
      %p172 = scmp.ne.s32.totalorder %s157, %s171
      %p173 = scmp.eq.s32.totalorder %s37, 0
      %p174 = por %p172, %p173
      %s176 = sadd.s32 %s175, 1
      %p179 = scmp.eq.s32.totalorder %s31, 1
      %p180 = scmp.ne.s32.totalorder %s175, %s177
      %p181 = scmp.eq.s32.totalorder %s31, 0
      %p182 = por %p180, %p181
      %p183 = scmp.ne.s32.totalorder %s175, %s177
      %p184 = scmp.eq.s32.totalorder %s36, 1
      %p185 = por %p183, %p184
      %p186 = scmp.ne.s32.totalorder %s177, %s178
      %p187 = scmp.eq.s32.totalorder %s36, 0
      %p188 = por %p186, %p187
      %p189 = scmp.ne.s32.totalorder %s177, %s178
      %p190 = scmp.eq.s32.totalorder %s37, 1
      %p191 = por %p189, %p190
      %p193 = scmp.ne.s32.totalorder %s178, %s192
      %p194 = scmp.eq.s32.totalorder %s37, 0
      %p195 = por %p193, %p194
      %s197 = sadd.s32 %s196, 1
      %p200 = scmp.eq.s32.totalorder %s31, 1
      %p201 = scmp.ne.s32.totalorder %s196, %s198
      %p202 = scmp.eq.s32.totalorder %s31, 0
      %p203 = por %p201, %p202
      %p204 = scmp.ne.s32.totalorder %s196, %s198
      %p205 = scmp.eq.s32.totalorder %s36, 1
      %p206 = por %p204, %p205
      %p207 = scmp.ne.s32.totalorder %s198, %s199
      %p208 = scmp.eq.s32.totalorder %s36, 0
      %p209 = por %p207, %p208
      %p210 = scmp.ne.s32.totalorder %s198, %s199
      %p211 = scmp.eq.s32.totalorder %s37, 1
      %p212 = por %p210, %p211
      %p214 = scmp.ne.s32.totalorder %s199, %s213
      %p215 = scmp.eq.s32.totalorder %s37, 0
      %p216 = por %p214, %p215
      %s218 = sadd.s32 %s217, 1
      %p221 = scmp.eq.s32.totalorder %s31, 1
      %p222 = scmp.ne.s32.totalorder %s217, %s219
      %p223 = scmp.eq.s32.totalorder %s31, 0
      %p224 = por %p222, %p223
      %p225 = scmp.ne.s32.totalorder %s217, %s219
      %p226 = scmp.eq.s32.totalorder %s36, 1
      %p227 = por %p225, %p226
      %p228 = scmp.ne.s32.totalorder %s219, %s220
      %p229 = scmp.eq.s32.totalorder %s36, 0
      %p230 = por %p228, %p229
      %p231 = scmp.ne.s32.totalorder %s219, %s220
      %p232 = scmp.eq.s32.totalorder %s37, 1
      %p233 = por %p231, %p232
      %p235 = scmp.ne.s32.totalorder %s220, %s234
      %p236 = scmp.eq.s32.totalorder %s37, 0
      %p237 = por %p235, %p236
      %s239 = sadd.s32 %s238, 1
      %p242 = scmp.eq.s32.totalorder %s31, 1
      %p243 = scmp.ne.s32.totalorder %s238, %s240
      %p244 = scmp.eq.s32.totalorder %s31, 0
      %p245 = por %p243, %p244
      %p246 = scmp.ne.s32.totalorder %s238, %s240
      %p247 = scmp.eq.s32.totalorder %s36, 1
      %p248 = por %p246, %p247
      %p249 = scmp.ne.s32.totalorder %s240, %s241
      %p250 = scmp.eq.s32.totalorder %s36, 0
      %p251 = por %p249, %p250
      %p252 = scmp.ne.s32.totalorder %s240, %s241
      %p253 = scmp.eq.s32.totalorder %s37, 1
      %p254 = por %p252, %p253
      %p256 = scmp.ne.s32.totalorder %s241, %s255
      %p257 = scmp.eq.s32.totalorder %s37, 0
      %p258 = por %p256, %p257
      %s260 = sadd.s32 %s259, 1
      %p263 = scmp.eq.s32.totalorder %s31, 1
      %p264 = scmp.ne.s32.totalorder %s259, %s261
      %p265 = scmp.eq.s32.totalorder %s31, 0
      %p266 = por %p264, %p265
      %p267 = scmp.ne.s32.totalorder %s259, %s261
      %p268 = scmp.eq.s32.totalorder %s36, 1
      %p269 = por %p267, %p268
      %p270 = scmp.ne.s32.totalorder %s261, %s262
      %p271 = scmp.eq.s32.totalorder %s36, 0
      %p272 = por %p270, %p271
      %p273 = scmp.ne.s32.totalorder %s261, %s262
      %p274 = scmp.eq.s32.totalorder %s37, 1
      %p275 = por %p273, %p274
      %p277 = scmp.ne.s32.totalorder %s262, %s276
      %p278 = scmp.eq.s32.totalorder %s37, 0
      %p279 = por %p277, %p278
      %s281 = sadd.s32 %s280, 1
      %p284 = scmp.eq.s32.totalorder %s31, 1
      %p285 = scmp.ne.s32.totalorder %s280, %s282
      %p286 = scmp.eq.s32.totalorder %s31, 0
      %p287 = por %p285, %p286
      %p288 = scmp.ne.s32.totalorder %s280, %s282
      %p289 = scmp.eq.s32.totalorder %s36, 1
      %p290 = por %p288, %p289
      %p291 = scmp.ne.s32.totalorder %s282, %s283
      %p292 = scmp.eq.s32.totalorder %s36, 0
      %p293 = por %p291, %p292
      %p294 = scmp.ne.s32.totalorder %s282, %s283
      %p295 = scmp.eq.s32.totalorder %s37, 1
      %p296 = por %p294, %p295
      %p298 = scmp.ne.s32.totalorder %s283, %s297
      %p299 = scmp.eq.s32.totalorder %s37, 0
      %p300 = por %p298, %p299
      %s302 = sadd.s32 %s301, 1
      %p305 = scmp.eq.s32.totalorder %s31, 1
      %p306 = scmp.ne.s32.totalorder %s301, %s303
      %p307 = scmp.eq.s32.totalorder %s31, 0
      %p308 = por %p306, %p307
      %p309 = scmp.ne.s32.totalorder %s301, %s303
      %p310 = scmp.eq.s32.totalorder %s36, 1
      %p311 = por %p309, %p310
      %p312 = scmp.ne.s32.totalorder %s303, %s304
      %p313 = scmp.eq.s32.totalorder %s36, 0
      %p314 = por %p312, %p313
      %p315 = scmp.ne.s32.totalorder %s303, %s304
      %p316 = scmp.eq.s32.totalorder %s37, 1
      %p317 = por %p315, %p316
      %p319 = scmp.ne.s32.totalorder %s304, %s318
      %p320 = scmp.eq.s32.totalorder %s37, 0
      %p321 = por %p319, %p320
      %s323 = sadd.s32 %s322, 1
      %p326 = scmp.eq.s32.totalorder %s31, 1
      %p327 = scmp.ne.s32.totalorder %s322, %s324
      %p328 = scmp.eq.s32.totalorder %s31, 0
      %p329 = por %p327, %p328
      %p330 = scmp.ne.s32.totalorder %s322, %s324
      %p331 = scmp.eq.s32.totalorder %s36, 1
      %p332 = por %p330, %p331
      %p333 = scmp.ne.s32.totalorder %s324, %s325
      %p334 = scmp.eq.s32.totalorder %s36, 0
      %p335 = por %p333, %p334
      %p336 = scmp.ne.s32.totalorder %s324, %s325
      %p337 = scmp.eq.s32.totalorder %s37, 1
      %p338 = por %p336, %p337
      %p340 = scmp.ne.s32.totalorder %s325, %s339
      %p341 = scmp.eq.s32.totalorder %s37, 0
      %p342 = por %p340, %p341
      %s344 = sadd.s32 %s343, 1
      %p347 = scmp.eq.s32.totalorder %s31, 1
      %p348 = scmp.ne.s32.totalorder %s343, %s345
      %p349 = scmp.eq.s32.totalorder %s31, 0
      %p350 = por %p348, %p349
      %p351 = scmp.ne.s32.totalorder %s343, %s345
      %p352 = scmp.eq.s32.totalorder %s36, 1
      %p353 = por %p351, %p352
      %p354 = scmp.ne.s32.totalorder %s345, %s346
      %p355 = scmp.eq.s32.totalorder %s36, 0
      %p356 = por %p354, %p355
      %p357 = scmp.ne.s32.totalorder %s345, %s346
      %p358 = scmp.eq.s32.totalorder %s37, 1
      %p359 = por %p357, %p358
      %p361 = scmp.ne.s32.totalorder %s346, %s360
      %p362 = scmp.eq.s32.totalorder %s37, 0
      %p363 = por %p361, %p362
      %s365 = sadd.s32 %s364, 1
      %p368 = scmp.eq.s32.totalorder %s31, 1
      %p369 = scmp.ne.s32.totalorder %s364, %s366
      %p370 = scmp.eq.s32.totalorder %s31, 0
      %p371 = por %p369, %p370
      %p372 = scmp.ne.s32.totalorder %s364, %s366
      %p373 = scmp.eq.s32.totalorder %s36, 1
      %p374 = por %p372, %p373
      %p375 = scmp.ne.s32.totalorder %s366, %s367
      %p376 = scmp.eq.s32.totalorder %s36, 0
      %p377 = por %p375, %p376
      %p378 = scmp.ne.s32.totalorder %s366, %s367
      %p379 = scmp.eq.s32.totalorder %s37, 1
      %p380 = por %p378, %p379
      %p382 = scmp.ne.s32.totalorder %s367, %s381
      %p383 = scmp.eq.s32.totalorder %s37, 0
      %p384 = por %p382, %p383
      %s386 = sadd.s32 %s385, 1
      %p389 = scmp.eq.s32.totalorder %s31, 1
      %p390 = scmp.ne.s32.totalorder %s385, %s387
      %p391 = scmp.eq.s32.totalorder %s31, 0
      %p392 = por %p390, %p391
      %p393 = scmp.ne.s32.totalorder %s385, %s387
      %p394 = scmp.eq.s32.totalorder %s36, 1
      %p395 = por %p393, %p394
      %p396 = scmp.ne.s32.totalorder %s387, %s388
      %p397 = scmp.eq.s32.totalorder %s36, 0
      %p398 = por %p396, %p397
      %p399 = scmp.ne.s32.totalorder %s387, %s388
      %p400 = scmp.eq.s32.totalorder %s37, 1
      %p401 = por %p399, %p400
      %p403 = scmp.ne.s32.totalorder %s388, %s402
      %p404 = scmp.eq.s32.totalorder %s37, 0
      %p405 = por %p403, %p404
      %s406 = ssub.s32 %s31, %s38
      %p407 = scmp.eq.s32.totalorder %s406, 0
      %s409 = sadd.s32 %s408, 1
      %s410 = scalar_select %p407, %s408, %s409
      %p413 = pneg %p407
      %p414 = scmp.eq.s32.totalorder %s31, 1
      %p415 = por %p413, %p414
      %p416 = scmp.ne.s32.totalorder %s408, %s411
      %p417 = scmp.eq.s32.totalorder %s31, 0
      %p418 = por %p416, %p417
      %p419 = scmp.ne.s32.totalorder %s408, %s411
      %p420 = scmp.eq.s32.totalorder %s36, 1
      %p421 = por %p419, %p420
      %p422 = scmp.ne.s32.totalorder %s411, %s412
      %p423 = scmp.eq.s32.totalorder %s36, 0
      %p424 = por %p422, %p423
      %p425 = scmp.ne.s32.totalorder %s411, %s412
      %p426 = scmp.eq.s32.totalorder %s37, 1
      %p427 = por %p425, %p426
      %p429 = scmp.ne.s32.totalorder %s412, %s428
      %p430 = scmp.eq.s32.totalorder %s37, 0
      %p431 = por %p429, %p430
      %p432 = scmp.le.s32.totalorder 1, %s31
      %p433 = scmp.lt.s32.totalorder %s31, 3
      %p434 = pnand %p432, %p433
      %p435 = pneg %p434
      // Predicated region
      $region9: #{tpu_custom_call.1} parent=5 // pred_check
        _
      $region10: #{tpu_custom_call.1} parent=5 // pred_check_branch
        %437 = sbr.rel (%p434) target = $region12
      $region11: #{tpu_custom_call.1} parent=5 // pred_region
        %s438 = ssub.s32 %s31, 1
        // Predicated region
        $region13: #{tpu_custom_call.1} parent=11 // pred_check
          %p439 = pneg %p104
        $region14: #{tpu_custom_call.1} parent=11 // pred_check_branch
          %441 = sbr.rel (%p439) target = $region16
        $region15: #{tpu_custom_call.1} parent=11 // pred_region
          %443 = vsyncadd [#allocation4], 0
          %s445 = sshll.u32 %s2, 4
          %s446 = int_to_ptr.hbm [resolvable:$true] %s445
          %s447 = sshll.u32 [#allocation3], 4
          %s448 = int_to_ptr.vmem [resolvable:$true] %s447
          %450 = dma.hbm_to_vmem [thread:$0]  %s446, 16, %s448, [#allocation4]
        $region16: #{tpu_custom_call.1} parent=11 // pred_fallthru
          _
        // Predicated region
        $region17: #{tpu_custom_call.1} parent=11 // pred_check
          %p451 = pneg %p125
        $region18: #{tpu_custom_call.1} parent=11 // pred_check_branch
          %453 = sbr.rel (%p451) target = $region20
        $region19: #{tpu_custom_call.1} parent=11 // pred_region
          %455 = vsyncadd [#allocation7], 0
          %s457 = sshll.u32 %s3, 4
          %s458 = int_to_ptr.hbm [resolvable:$true] %s457
          %s459 = sshll.u32 [#allocation6], 4
          %s460 = int_to_ptr.vmem [resolvable:$true] %s459
          %462 = dma.hbm_to_vmem [thread:$0]  %s458, 16, %s460, [#allocation7]
        $region20: #{tpu_custom_call.1} parent=11 // pred_fallthru
          _
        // Predicated region
        $region21: #{tpu_custom_call.1} parent=11 // pred_check
          %p463 = pneg %p146
        $region22: #{tpu_custom_call.1} parent=11 // pred_check_branch
          %465 = sbr.rel (%p463) target = $region24
        $region23: #{tpu_custom_call.1} parent=11 // pred_region
          %467 = vsyncadd [#allocation7], 0
          %s468 = sshll.u32 %s4, 4
          %s469 = int_to_ptr.hbm [resolvable:$true] %s468
          %s470 = sshll.u32 [#allocation8], 4
          %s471 = int_to_ptr.vmem [resolvable:$true] %s470
          %476 = dma.hbm_to_vmem [thread:$0]  %s469, 1024, %s471, [#allocation7], 64, 64, 4
        $region24: #{tpu_custom_call.1} parent=11 // pred_fallthru
          _
        // Predicated region
        $region25: #{tpu_custom_call.1} parent=11 // pred_check
          %p477 = pneg %p167
        $region26: #{tpu_custom_call.1} parent=11 // pred_check_branch
          %479 = sbr.rel (%p477) target = $region28
        $region27: #{tpu_custom_call.1} parent=11 // pred_region
          _
        $region28: #{tpu_custom_call.1} parent=11 // pred_fallthru
          _
        // Predicated region
        $region29: #{tpu_custom_call.1} parent=11 // pred_check
          %p480 = pneg %p188
        $region30: #{tpu_custom_call.1} parent=11 // pred_check_branch
          %482 = sbr.rel (%p480) target = $region32
        $region31: #{tpu_custom_call.1} parent=11 // pred_region
          %484 = vsyncadd [#allocation10], 0
          %s485 = sshll.u32 %s6, 4
          %s486 = int_to_ptr.hbm [resolvable:$true] %s485
          %s487 = sshll.u32 [#allocation9], 4
          %s488 = int_to_ptr.vmem [resolvable:$true] %s487
          %493 = dma.hbm_to_vmem [thread:$0]  %s486, 2048, %s488, [#allocation10], 128, 128, 8
        $region32: #{tpu_custom_call.1} parent=11 // pred_fallthru
          _
        // Predicated region
        $region33: #{tpu_custom_call.1} parent=11 // pred_check
          %p494 = pneg %p209
        $region34: #{tpu_custom_call.1} parent=11 // pred_check_branch
          %496 = sbr.rel (%p494) target = $region36
        $region35: #{tpu_custom_call.1} parent=11 // pred_region
          _
        $region36: #{tpu_custom_call.1} parent=11 // pred_fallthru
          _
        // Predicated region
        $region37: #{tpu_custom_call.1} parent=11 // pred_check
          %p497 = pneg %p230
        $region38: #{tpu_custom_call.1} parent=11 // pred_check_branch
          %499 = sbr.rel (%p497) target = $region40
        $region39: #{tpu_custom_call.1} parent=11 // pred_region
          %501 = vsyncadd [#allocation10], 0
          %s502 = sshll.u32 %s8, 4
          %s503 = int_to_ptr.hbm [resolvable:$true] %s502
          %s504 = sshll.u32 [#allocation11], 4
          %s505 = int_to_ptr.vmem [resolvable:$true] %s504
          %510 = dma.hbm_to_vmem [thread:$0]  %s503, 1024, %s505, [#allocation10], 64, 64, 4
        $region40: #{tpu_custom_call.1} parent=11 // pred_fallthru
          _
        // Predicated region
        $region41: #{tpu_custom_call.1} parent=11 // pred_check
          %p511 = pneg %p251
        $region42: #{tpu_custom_call.1} parent=11 // pred_check_branch
          %513 = sbr.rel (%p511) target = $region44
        $region43: #{tpu_custom_call.1} parent=11 // pred_region
          _
        $region44: #{tpu_custom_call.1} parent=11 // pred_fallthru
          _
        // Predicated region
        $region45: #{tpu_custom_call.1} parent=11 // pred_check
          %p514 = pneg %p272
        $region46: #{tpu_custom_call.1} parent=11 // pred_check_branch
          %516 = sbr.rel (%p514) target = $region48
        $region47: #{tpu_custom_call.1} parent=11 // pred_region
          _
        $region48: #{tpu_custom_call.1} parent=11 // pred_fallthru
          _
        // Predicated region
        $region49: #{tpu_custom_call.1} parent=11 // pred_check
          %p517 = pneg %p293
        $region50: #{tpu_custom_call.1} parent=11 // pred_check_branch
          %519 = sbr.rel (%p517) target = $region52
        $region51: #{tpu_custom_call.1} parent=11 // pred_region
          _
        $region52: #{tpu_custom_call.1} parent=11 // pred_fallthru
          _
        // Predicated region
        $region53: #{tpu_custom_call.1} parent=11 // pred_check
          %p520 = pneg %p314
        $region54: #{tpu_custom_call.1} parent=11 // pred_check_branch
          %522 = sbr.rel (%p520) target = $region56
        $region55: #{tpu_custom_call.1} parent=11 // pred_region
          %524 = vsyncadd [#allocation13], 0
          %s525 = sshll.u32 %s12, 4
          %s526 = int_to_ptr.hbm [resolvable:$true] %s525
          %s527 = sshll.u32 [#allocation12], 4
          %s528 = int_to_ptr.vmem [resolvable:$true] %s527
          %533 = dma.hbm_to_vmem [thread:$0]  %s526, 16384, %s528, [#allocation13], 128, 128, 8
        $region56: #{tpu_custom_call.1} parent=11 // pred_fallthru
          _
        // Predicated region
        $region57: #{tpu_custom_call.1} parent=11 // pred_check
          %p534 = pneg %p335
        $region58: #{tpu_custom_call.1} parent=11 // pred_check_branch
          %536 = sbr.rel (%p534) target = $region60
        $region59: #{tpu_custom_call.1} parent=11 // pred_region
          %538 = vsyncadd [#allocation13], 0
          %s539 = sshll.u32 %s13, 4
          %s540 = int_to_ptr.hbm [resolvable:$true] %s539
          %s541 = sshll.u32 [#allocation14], 4
          %s542 = int_to_ptr.vmem [resolvable:$true] %s541
          %547 = dma.hbm_to_vmem [thread:$0]  %s540, 2048, %s542, [#allocation13], 128, 128, 8
        $region60: #{tpu_custom_call.1} parent=11 // pred_fallthru
          _
        // Predicated region
        $region61: #{tpu_custom_call.1} parent=11 // pred_check
          %p548 = pneg %p356
        $region62: #{tpu_custom_call.1} parent=11 // pred_check_branch
          %550 = sbr.rel (%p548) target = $region64
        $region63: #{tpu_custom_call.1} parent=11 // pred_region
          _
        $region64: #{tpu_custom_call.1} parent=11 // pred_fallthru
          _
        // Predicated region
        $region65: #{tpu_custom_call.1} parent=11 // pred_check
          %p551 = pneg %p377
        $region66: #{tpu_custom_call.1} parent=11 // pred_check_branch
          %553 = sbr.rel (%p551) target = $region68
        $region67: #{tpu_custom_call.1} parent=11 // pred_region
          %555 = vsyncadd [#allocation16], 0
          %s556 = sshll.u32 %s15, 4
          %s557 = int_to_ptr.hbm [resolvable:$true] %s556
          %s558 = sshll.u32 [#allocation15], 4
          %s559 = int_to_ptr.vmem [resolvable:$true] %s558
          %564 = dma.hbm_to_vmem [thread:$0]  %s557, 2048, %s559, [#allocation16], 64, 64, 4
        $region68: #{tpu_custom_call.1} parent=11 // pred_fallthru
          _
        // Predicated region
        $region69: #{tpu_custom_call.1} parent=11 // pred_check
          %p565 = pneg %p398
        $region70: #{tpu_custom_call.1} parent=11 // pred_check_branch
          %567 = sbr.rel (%p565) target = $region72
        $region71: #{tpu_custom_call.1} parent=11 // pred_region
          _
        $region72: #{tpu_custom_call.1} parent=11 // pred_fallthru
          _
      $region12: #{tpu_custom_call.1} parent=5 // pred_fallthru
        _
      %p568 = scmp.lt.s32.totalorder %s31, 2
      // Predicated region
      $region73: #{tpu_custom_call.1} parent=5 // pred_check
        %p569 = pneg %p568
      $region74: #{tpu_custom_call.1} parent=5 // pred_check_branch
        %571 = sbr.rel (%p569) target = $region76
      $region75: #{tpu_custom_call.1} parent=5 // pred_region
        // Predicated region
        $region77: #{tpu_custom_call.1} parent=75 // pred_check
          %p572 = pneg %p51
        $region78: #{tpu_custom_call.1} parent=75 // pred_check_branch
          %574 = sbr.rel (%p572) target = $region80
        $region79: #{tpu_custom_call.1} parent=75 // pred_region
          %p575 = scmp.lt.s32.totalorder %s31, 1
          %s576 = scalar_select %p575, %s31, 1
          %s577 = smul.addr %s576, 4
          %s578 = smul.addr %s577, 8
          %s579 = scalar_lea.vmem %s0, %s578
        $region80: #{tpu_custom_call.1} parent=75 // pred_fallthru
          _
        // Predicated region
        $region81: #{tpu_custom_call.1} parent=75 // pred_check
          %p580 = pneg %p77
        $region82: #{tpu_custom_call.1} parent=75 // pred_check_branch
          %582 = sbr.rel (%p580) target = $region84
        $region83: #{tpu_custom_call.1} parent=75 // pred_region
          %p583 = scmp.lt.s32.totalorder %s31, 1
          %s584 = scalar_select %p583, %s31, 1
          %s585 = smul.addr %s584, 4
          %s586 = smul.addr %s585, 8
          %s587 = scalar_lea.vmem %s1, %s586
        $region84: #{tpu_custom_call.1} parent=75 // pred_fallthru
          _
      $region76: #{tpu_custom_call.1} parent=5 // pred_fallthru
        _
      %p588 = scmp.le.s32.totalorder 1, %s31
      %p589 = scmp.lt.s32.totalorder %s31, 3
      %p590 = pnand %p588, %p589
      %p591 = pneg %p590
      // Predicated region
      $region85: #{tpu_custom_call.1} parent=5 // pred_check
        _
      $region86: #{tpu_custom_call.1} parent=5 // pred_check_branch
        %593 = sbr.rel (%p590) target = $region88
      $region87: #{tpu_custom_call.1} parent=5 // pred_region
        %s594 = ssub.s32 %s31, 1
        // Predicated region
        $region89: #{tpu_custom_call.1} parent=87 // pred_check
          %p595 = pneg %p104
        $region90: #{tpu_custom_call.1} parent=87 // pred_check_branch
          %597 = sbr.rel (%p595) target = $region92
        $region91: #{tpu_custom_call.1} parent=87 // pred_region
          %599 = dma.done [#allocation4], 16
        $region92: #{tpu_custom_call.1} parent=87 // pred_fallthru
          _
        // Predicated region
        $region93: #{tpu_custom_call.1} parent=87 // pred_check
          %p600 = pneg %p125
        $region94: #{tpu_custom_call.1} parent=87 // pred_check_branch
          %602 = sbr.rel (%p600) target = $region96
        $region95: #{tpu_custom_call.1} parent=87 // pred_region
          %604 = dma.done [#allocation7], 16
        $region96: #{tpu_custom_call.1} parent=87 // pred_fallthru
          _
        // Predicated region
        $region97: #{tpu_custom_call.1} parent=87 // pred_check
          %p605 = pneg %p146
        $region98: #{tpu_custom_call.1} parent=87 // pred_check_branch
          %607 = sbr.rel (%p605) target = $region100
        $region99: #{tpu_custom_call.1} parent=87 // pred_region
          %609 = dma.done [#allocation7], 1024
        $region100: #{tpu_custom_call.1} parent=87 // pred_fallthru
          _
        // Predicated region
        $region101: #{tpu_custom_call.1} parent=87 // pred_check
          %p610 = pneg %p188
        $region102: #{tpu_custom_call.1} parent=87 // pred_check_branch
          %612 = sbr.rel (%p610) target = $region104
        $region103: #{tpu_custom_call.1} parent=87 // pred_region
          %614 = dma.done [#allocation10], 2048
        $region104: #{tpu_custom_call.1} parent=87 // pred_fallthru
          _
        // Predicated region
        $region105: #{tpu_custom_call.1} parent=87 // pred_check
          %p615 = pneg %p230
        $region106: #{tpu_custom_call.1} parent=87 // pred_check_branch
          %617 = sbr.rel (%p615) target = $region108
        $region107: #{tpu_custom_call.1} parent=87 // pred_region
          %619 = dma.done [#allocation10], 1024
        $region108: #{tpu_custom_call.1} parent=87 // pred_fallthru
          _
        // Predicated region
        $region109: #{tpu_custom_call.1} parent=87 // pred_check
          %p620 = pneg %p314
        $region110: #{tpu_custom_call.1} parent=87 // pred_check_branch
          %622 = sbr.rel (%p620) target = $region112
        $region111: #{tpu_custom_call.1} parent=87 // pred_region
          %624 = dma.done [#allocation13], 16384
        $region112: #{tpu_custom_call.1} parent=87 // pred_fallthru
          _
        // Predicated region
        $region113: #{tpu_custom_call.1} parent=87 // pred_check
          %p625 = pneg %p335
        $region114: #{tpu_custom_call.1} parent=87 // pred_check_branch
          %627 = sbr.rel (%p625) target = $region116
        $region115: #{tpu_custom_call.1} parent=87 // pred_region
          %629 = dma.done [#allocation13], 2048
        $region116: #{tpu_custom_call.1} parent=87 // pred_fallthru
          _
        // Predicated region
        $region117: #{tpu_custom_call.1} parent=87 // pred_check
          %p630 = pneg %p377
        $region118: #{tpu_custom_call.1} parent=87 // pred_check_branch
          %632 = sbr.rel (%p630) target = $region120
        $region119: #{tpu_custom_call.1} parent=87 // pred_region
          %634 = dma.done [#allocation16], 2048
        $region120: #{tpu_custom_call.1} parent=87 // pred_fallthru
          _
        %p635 = scmp.lt.s32.totalorder %s36, 1
        %s636 = scalar_select %p635, %s36, 1
        %s637 = smul.addr %s636, 4
        %s638 = smul.addr %s637, 8
        %s639 = scalar_lea.vmem %s0, %s638
        %p640 = pneg %p57
        %p641 = pneg %p54
        %p642 = scmp.lt.s32.totalorder %s36, 1
        %s643 = scalar_select %p642, %s36, 1
        %s644 = smul.addr %s643, 4
        %s645 = smul.addr %s644, 8
        %s646 = scalar_lea.vmem %s1, %s645
        %p647 = pneg %p83
        %p648 = pneg %p80
        %p649 = pneg %p104
        %p650 = pneg %p101
        %p651 = pneg %p125
        %p652 = pneg %p122
        %p653 = pneg %p146
        %p654 = pneg %p143
        %p655 = pneg %p167
        %p656 = pneg %p164
        %p657 = pneg %p188
        %p658 = pneg %p185
        %p659 = pneg %p209
        %p660 = pneg %p206
        %p661 = pneg %p230
        %p662 = pneg %p227
        %p663 = pneg %p251
        %p664 = pneg %p248
        %p665 = pneg %p272
        %p666 = pneg %p269
        %p667 = pneg %p293
        %p668 = pneg %p290
        %p669 = pneg %p314
        %p670 = pneg %p311
        %p671 = pneg %p335
        %p672 = pneg %p332
        %p673 = pneg %p356
        %p674 = pneg %p353
        %p675 = pneg %p377
        %p676 = pneg %p374
        %p677 = pneg %p398
        %p678 = pneg %p395
        %p679 = pneg %p424
        %p680 = pneg %p421
        %s681 = sand.u32 %s411, 1
        %s682 = scalar_lea.sflag [#allocation5], %s681
        %s683 = sand.u32 %s411, 1
        %s684 = smul.addr %s683, 32
        %s685 = scalar_lea.vmem [#allocation17], %s684
        %p686 = scmp.lt.s32.totalorder %s36, 1
        %s687 = scalar_select %p686, %s36, 1
        %s688 = smul.addr %s687, 4
        %s689 = smul.addr %s688, 8
        %s690 = scalar_lea.vmem %s0, %s689
        %p691 = scmp.lt.s32.totalorder %s36, 1
        %s692 = scalar_select %p691, %s36, 1
        %s693 = smul.addr %s692, 4
        %s694 = smul.addr %s693, 8
        %s695 = scalar_lea.vmem %s1, %s694
        %v697 = vld [vmem:[%s690] sm:$0xff]
        %v698 = vld [vmem:[%s690 + $0x8] sm:$0xff]
        %v699 = vld [vmem:[%s690 + $0x10] sm:$0xff]
        %v700 = vld [vmem:[%s690 + $0x18] sm:$0xff]
        %v701 = vld [vmem:[%s695] sm:$0xff]
        %v702 = vld [vmem:[%s695 + $0x8] sm:$0xff]
        %v703 = vld [vmem:[%s695 + $0x10] sm:$0xff]
        %v704 = vld [vmem:[%s695 + $0x18] sm:$0xff]
        %v705 = vld [vmem:[#allocation3] sm:$0x1]
        %v706 = vld [vmem:[#allocation6] sm:$0x1]
        %707 = vadd.xlane.f32.xlu0 %v697
        %v708 = vpop.xlane.xlu0 %707
        %709 = vadd.xlane.f32.xlu0 %v698
        %v710 = vpop.xlane.xlu0 %709
        %711 = vadd.xlane.f32.xlu0 %v699
        %v712 = vpop.xlane.xlu0 %711
        %713 = vadd.xlane.f32.xlu0 %v700
        %v714 = vpop.xlane.xlu0 %713
        %v715 = vrcp.pop 128.0
        %v716 = vmul.f32 128.0, %v715
        %v717 = vsub.f32 1.0, %v716
        %v718 = vmul.f32 %v715, %v717
        %v719 = vadd.f32 %v715, %v718
        %vm720 = vweird.f32 %v715
        %v721 = vsel %vm720, %v715, %v719
        %v722 = vmul.f32 %v708, %v721
        %v723 = vmul.f32 %v710, %v721
        %v724 = vmul.f32 %v712, %v721
        %v725 = vmul.f32 %v714, %v721
        %v726 = vsub.f32 %v697, %v722
        %v727 = vsub.f32 %v698, %v723
        %v728 = vsub.f32 %v699, %v724
        %v729 = vsub.f32 %v700, %v725
        %v730 = vmul.f32 %v726, %v726
        %v731 = vmul.f32 %v727, %v727
        %v732 = vmul.f32 %v728, %v728
        %v733 = vmul.f32 %v729, %v729
        %734 = vadd.xlane.f32.xlu0 %v730
        %v735 = vpop.xlane.xlu0 %734
        %736 = vadd.xlane.f32.xlu0 %v731
        %v737 = vpop.xlane.xlu0 %736
        %738 = vadd.xlane.f32.xlu0 %v732
        %v739 = vpop.xlane.xlu0 %738
        %740 = vadd.xlane.f32.xlu0 %v733
        %v741 = vpop.xlane.xlu0 %740
        %v742 = vmul.f32 %v735, %v721
        %v743 = vmul.f32 %v737, %v721
        %v744 = vmul.f32 %v739, %v721
        %v745 = vmul.f32 %v741, %v721
        %v746 = vadd.f32 %v742, 1e-05
        %v747 = vadd.f32 %v743, 1e-05
        %v748 = vadd.f32 %v744, 1e-05
        %v749 = vadd.f32 %v745, 1e-05
        %v750 = vrsqrt.pop %v746
        %v751 = vmul.f32 %v750, %v746
        %v752 = vmul.f32 %v751, %v750
        %v753 = vmul.f32 0.5, %v752
        %v754 = vsub.f32 1.5, %v753
        %v755 = vmul.f32 %v750, %v754
        %vm756 = vweird.f32 %v746
        %vm757 = vweird.f32 %v750
        %vm758 = vmor %vm756, %vm757
        %v759 = vsel %vm758, %v750, %v755
        %v760 = vrsqrt.pop %v747
        %v761 = vmul.f32 %v760, %v747
        %v762 = vmul.f32 %v761, %v760
        %v763 = vmul.f32 0.5, %v762
        %v764 = vsub.f32 1.5, %v763
        %v765 = vmul.f32 %v760, %v764
        %vm766 = vweird.f32 %v747
        %vm767 = vweird.f32 %v760
        %vm768 = vmor %vm766, %vm767
        %v769 = vsel %vm768, %v760, %v765
        %v770 = vrsqrt.pop %v748
        %v771 = vmul.f32 %v770, %v748
        %v772 = vmul.f32 %v771, %v770
        %v773 = vmul.f32 0.5, %v772
        %v774 = vsub.f32 1.5, %v773
        %v775 = vmul.f32 %v770, %v774
        %vm776 = vweird.f32 %v748
        %vm777 = vweird.f32 %v770
        %vm778 = vmor %vm776, %vm777
        %v779 = vsel %vm778, %v770, %v775
        %v780 = vrsqrt.pop %v749
        %v781 = vmul.f32 %v780, %v749
        %v782 = vmul.f32 %v781, %v780
        %v783 = vmul.f32 0.5, %v782
        %v784 = vsub.f32 1.5, %v783
        %v785 = vmul.f32 %v780, %v784
        %vm786 = vweird.f32 %v749
        %vm787 = vweird.f32 %v780
        %vm788 = vmor %vm786, %vm787
        %v789 = vsel %vm788, %v780, %v785
        %v790 = vmul.f32 %v726, %v759
        %v791 = vmul.f32 %v727, %v769
        %v792 = vmul.f32 %v728, %v779
        %v793 = vmul.f32 %v729, %v789
        %v795 = vperm.slane %v705, 0
        %v797 = vmul.f32 %v790, %v795
        %v798 = vmul.f32 %v791, %v795
        %v799 = vmul.f32 %v792, %v795
        %v800 = vmul.f32 %v793, %v795
        %v802 = vperm.slane %v706, 0
        %v804 = vadd.f32 %v797, %v802
        %v805 = vadd.f32 %v798, %v802
        %v806 = vadd.f32 %v799, %v802
        %v807 = vadd.f32 %v800, %v802
        %v808 = vpack.c.bf16 %v698, %v697
        %v809 = vpack.c.bf16 %v700, %v699
        %v810 = vpack.c.bf16 %v805, %v804
        %v811 = vpack.c.bf16 %v807, %v806
        %v812 = vld [vmem:[#allocation8] sm:$0xf]
        %v813 = vld [vmem:[#allocation8 + $0x4] sm:$0xf]
        %v814 = vld [vmem:[#allocation8 + $0x8] sm:$0xf]
        %v815 = vld [vmem:[#allocation8 + $0xc] sm:$0xf]
        %v816 = vld [vmem:[#allocation8 + $0x10] sm:$0xf]
        %v817 = vld [vmem:[#allocation8 + $0x14] sm:$0xf]
        %v818 = vld [vmem:[#allocation8 + $0x18] sm:$0xf]
        %v819 = vld [vmem:[#allocation8 + $0x1c] sm:$0xf]
        %v820 = vld [vmem:[#allocation8 + $0x20] sm:$0xf]
        %v821 = vld [vmem:[#allocation8 + $0x24] sm:$0xf]
        %v822 = vld [vmem:[#allocation8 + $0x28] sm:$0xf]
        %v823 = vld [vmem:[#allocation8 + $0x2c] sm:$0xf]
        %v824 = vld [vmem:[#allocation8 + $0x30] sm:$0xf]
        %v825 = vld [vmem:[#allocation8 + $0x34] sm:$0xf]
        %v826 = vld [vmem:[#allocation8 + $0x38] sm:$0xf]
        %v827 = vld [vmem:[#allocation8 + $0x3c] sm:$0xf]
        %v828 = vld [vmem:[%s5] sm:$0x1]
        %v830 = vperm.slane %v828, 0
        %v848 = vunpack.c.l.b16 %v812
        %v849 = vunpack.c.l.b16 %v813
        %v850 = vunpack.c.l.b16 %v814
        %v851 = vunpack.c.l.b16 %v815
        %v852 = vunpack.c.l.b16 %v816
        %v853 = vunpack.c.l.b16 %v817
        %v854 = vunpack.c.l.b16 %v818
        %v855 = vunpack.c.l.b16 %v819
        %v856 = vunpack.c.l.b16 %v820
        %v857 = vunpack.c.l.b16 %v821
        %v858 = vunpack.c.l.b16 %v822
        %v859 = vunpack.c.l.b16 %v823
        %v860 = vunpack.c.l.b16 %v824
        %v861 = vunpack.c.l.b16 %v825
        %v862 = vunpack.c.l.b16 %v826
        %v863 = vunpack.c.l.b16 %v827
        %v864 = vpack.c.b16 %v849, %v848
        %v865 = vpack.c.b16 %v851, %v850
        %v866 = vpack.c.b16 %v853, %v852
        %v867 = vpack.c.b16 %v855, %v854
        %v868 = vpack.c.b16 %v857, %v856
        %v869 = vpack.c.b16 %v859, %v858
        %v870 = vpack.c.b16 %v861, %v860
        %v871 = vpack.c.b16 %v863, %v862
        %880 = vmatpush.bf16.msra.mxu0 %v871
        %881 = vmatpush.bf16.msra.mxu0 %v870
        %882 = vmatpush.bf16.msra.mxu0 %v869
        %883 = vmatpush.bf16.msra.mxu0 %v868
        %884 = vmatpush.bf16.msra.mxu0 %v867
        %885 = vmatpush.bf16.msra.mxu0 %v866
        %886 = vmatpush.bf16.msra.mxu0 %v865
        %887 = vmatpush.bf16.msra.mxu0 %v864
        %888 = vmatmul.bf16.gmra.mxu0 %v810
        %v889 = vpop.f32.mrf.mxu0
        %v890 = vadd.f32 %v830, %v889
        %v891 = vpop.f32.mrf.mxu0
        %v892 = vadd.f32 %v830, %v891
        %893 = vmatmul.bf16.gmra.mxu0 %v811
        %v894 = vpop.f32.mrf.mxu0
        %v895 = vadd.f32 %v830, %v894
        %v896 = vpop.f32.mrf.mxu0
        %v897 = vadd.f32 %v830, %v896
        %898 = vdwg.mxu0
        %v899 = vld [vmem:[#allocation9] sm:$0xff]
        %v900 = vld [vmem:[#allocation9 + $0x8] sm:$0xff]
        %v901 = vld [vmem:[#allocation9 + $0x10] sm:$0xff]
        %v902 = vld [vmem:[#allocation9 + $0x18] sm:$0xff]
        %v903 = vld [vmem:[#allocation9 + $0x20] sm:$0xff]
        %v904 = vld [vmem:[#allocation9 + $0x28] sm:$0xff]
        %v905 = vld [vmem:[#allocation9 + $0x30] sm:$0xff]
        %v906 = vld [vmem:[#allocation9 + $0x38] sm:$0xff]
        %v907 = vld [vmem:[#allocation9 + $0x40] sm:$0xff]
        %v908 = vld [vmem:[#allocation9 + $0x48] sm:$0xff]
        %v909 = vld [vmem:[#allocation9 + $0x50] sm:$0xff]
        %v910 = vld [vmem:[#allocation9 + $0x58] sm:$0xff]
        %v911 = vld [vmem:[#allocation9 + $0x60] sm:$0xff]
        %v912 = vld [vmem:[#allocation9 + $0x68] sm:$0xff]
        %v913 = vld [vmem:[#allocation9 + $0x70] sm:$0xff]
        %v914 = vld [vmem:[#allocation9 + $0x78] sm:$0xff]
        %v915 = vld [vmem:[%s7] sm:$0x3]
        %v917 = vperm.slane %v915, 0
        %v918 = vperm.slane %v915, 1
        %v937 = vunpack.c.l.b16 %v899
        %v938 = vunpack.c.h.b16 %v899
        %v939 = vunpack.c.l.b16 %v900
        %v940 = vunpack.c.h.b16 %v900
        %v941 = vunpack.c.l.b16 %v901
        %v942 = vunpack.c.h.b16 %v901
        %v943 = vunpack.c.l.b16 %v902
        %v944 = vunpack.c.h.b16 %v902
        %v945 = vunpack.c.l.b16 %v903
        %v946 = vunpack.c.h.b16 %v903
        %v947 = vunpack.c.l.b16 %v904
        %v948 = vunpack.c.h.b16 %v904
        %v949 = vunpack.c.l.b16 %v905
        %v950 = vunpack.c.h.b16 %v905
        %v951 = vunpack.c.l.b16 %v906
        %v952 = vunpack.c.h.b16 %v906
        %v953 = vunpack.c.l.b16 %v907
        %v954 = vunpack.c.h.b16 %v907
        %v955 = vunpack.c.l.b16 %v908
        %v956 = vunpack.c.h.b16 %v908
        %v957 = vunpack.c.l.b16 %v909
        %v958 = vunpack.c.h.b16 %v909
        %v959 = vunpack.c.l.b16 %v910
        %v960 = vunpack.c.h.b16 %v910
        %v961 = vunpack.c.l.b16 %v911
        %v962 = vunpack.c.h.b16 %v911
        %v963 = vunpack.c.l.b16 %v912
        %v964 = vunpack.c.h.b16 %v912
        %v965 = vunpack.c.l.b16 %v913
        %v966 = vunpack.c.h.b16 %v913
        %v967 = vunpack.c.l.b16 %v914
        %v968 = vunpack.c.h.b16 %v914
        %v969 = vpack.c.b16 %v939, %v937
        %v970 = vpack.c.b16 %v940, %v938
        %v971 = vpack.c.b16 %v943, %v941
        %v972 = vpack.c.b16 %v944, %v942
        %v973 = vpack.c.b16 %v947, %v945
        %v974 = vpack.c.b16 %v948, %v946
        %v975 = vpack.c.b16 %v951, %v949
        %v976 = vpack.c.b16 %v952, %v950
        %v977 = vpack.c.b16 %v955, %v953
        %v978 = vpack.c.b16 %v956, %v954
        %v979 = vpack.c.b16 %v959, %v957
        %v980 = vpack.c.b16 %v960, %v958
        %v981 = vpack.c.b16 %v963, %v961
        %v982 = vpack.c.b16 %v964, %v962
        %v983 = vpack.c.b16 %v967, %v965
        %v984 = vpack.c.b16 %v968, %v966
        %1001 = vmatpush.bf16.msra.mxu0 %v983
        %1002 = vmatpush.bf16.msra.mxu0 %v981
        %1003 = vmatpush.bf16.msra.mxu0 %v979
        %1004 = vmatpush.bf16.msra.mxu0 %v977
        %1005 = vmatpush.bf16.msra.mxu0 %v975
        %1006 = vmatpush.bf16.msra.mxu0 %v973
        %1007 = vmatpush.bf16.msra.mxu0 %v971
        %1008 = vmatpush.bf16.msra.mxu0 %v969
        %1009 = vmatmul.bf16.gmra.mxu0 %v808
        %v1010 = vpop.f32.mrf.mxu0
        %v1011 = vadd.f32 %v917, %v1010
        %v1012 = vpop.f32.mrf.mxu0
        %v1013 = vadd.f32 %v917, %v1012
        %1014 = vmatmul.bf16.gmra.mxu0 %v809
        %v1015 = vpop.f32.mrf.mxu0
        %v1016 = vadd.f32 %v917, %v1015
        %v1017 = vpop.f32.mrf.mxu0
        %v1018 = vadd.f32 %v917, %v1017
        %1019 = vdwg.mxu0
        %1020 = vmatpush.bf16.msra.mxu0 %v984
        %1021 = vmatpush.bf16.msra.mxu0 %v982
        %1022 = vmatpush.bf16.msra.mxu0 %v980
        %1023 = vmatpush.bf16.msra.mxu0 %v978
        %1024 = vmatpush.bf16.msra.mxu0 %v976
        %1025 = vmatpush.bf16.msra.mxu0 %v974
        %1026 = vmatpush.bf16.msra.mxu0 %v972
        %1027 = vmatpush.bf16.msra.mxu0 %v970
        %1028 = vmatmul.bf16.gmra.mxu0 %v808
        %v1029 = vpop.f32.mrf.mxu0
        %v1030 = vadd.f32 %v918, %v1029
        %v1031 = vpop.f32.mrf.mxu0
        %v1032 = vadd.f32 %v918, %v1031
        %1033 = vmatmul.bf16.gmra.mxu0 %v809
        %v1034 = vpop.f32.mrf.mxu0
        %v1035 = vadd.f32 %v918, %v1034
        %v1036 = vpop.f32.mrf.mxu0
        %v1037 = vadd.f32 %v918, %v1036
        %1038 = vdwg.mxu0
        %v1039 = vpack.c.bf16 %v892, %v890
        %v1040 = vpack.c.bf16 %v897, %v895
        %v1041 = vpack.c.bf16 %v1013, %v1011
        %v1042 = vpack.c.bf16 %v1018, %v1016
        %v1043 = vpack.c.bf16 %v1032, %v1030
        %v1044 = vpack.c.bf16 %v1037, %v1035
        %vm1045 = vcmask 523264
        %v1047 = vsel %vm1045, %v1039, 0
        %v1050 = vsel %vm1045, %v1040, 0
        %v1053 = vsel %vm1045, %v1041, 0
        %v1056 = vsel %vm1045, %v1042, 0
        %1058 = vmatpush.bf16.xpose.msra.mxu0 0
        %1059 = vmatpush.bf16.xpose.msra.mxu0 0
        %1060 = vmatpush.bf16.xpose.msra.mxu0 0
        %1061 = vmatpush.bf16.xpose.msra.mxu0 0
        %1062 = vmatpush.bf16.xpose.msra.mxu0 0
        %1063 = vmatpush.bf16.xpose.msra.mxu0 0
        %1064 = vmatpush.bf16.xpose.msra.mxu0 %v1056
        %1065 = vmatpush.bf16.xpose.msra.mxu0 %v1053
        %1066 = vmatmul.bf16.gmra.mxu0 %v1047
        %v1067 = vpop.f32.mrf.mxu0
        %v1068 = vadd.f32 0.0, %v1067
        %v1069 = vpop.f32.mrf.mxu0
        %v1070 = vadd.f32 0.0, %v1069
        %1071 = vmatmul.bf16.gmra.mxu0 %v1050
        %v1072 = vpop.f32.mrf.mxu0
        %v1073 = vadd.f32 0.0, %v1072
        %v1074 = vpop.f32.mrf.mxu0
        %v1075 = vadd.f32 0.0, %v1074
        %1076 = vdwg.mxu0
        %v1077 = vmul.f32 %v1068, 0.125
        %v1078 = vmul.f32 %v1070, 0.125
        %v1079 = vmul.f32 %v1073, 0.125
        %v1080 = vmul.f32 %v1075, 0.125
        %vm1081 = vcmask 261120
        %v1082 = vsel %vm1081, %v1077, -inf
        %1083 = vmax.xlane.f32.xlu0 %v1082
        %v1084 = vpop.xlane.xlu0 %1083
        %v1085 = vsel %vm1081, %v1078, -inf
        %1086 = vmax.xlane.f32.xlu0 %v1085
        %v1087 = vpop.xlane.xlu0 %1086
        %v1088 = vsel %vm1081, %v1079, -inf
        %1089 = vmax.xlane.f32.xlu0 %v1088
        %v1090 = vpop.xlane.xlu0 %1089
        %v1091 = vsel %vm1081, %v1080, -inf
        %1092 = vmax.xlane.f32.xlu0 %v1091
        %v1093 = vpop.xlane.xlu0 %1092
        %v1094 = vsub.f32 %v1077, %v1084
        %v1095 = vsub.f32 %v1078, %v1087
        %v1096 = vsub.f32 %v1079, %v1090
        %v1097 = vsub.f32 %v1080, %v1093
        %v1098 = vmul.f32 %v1094, 1.442695
        %v1099 = vpow.pop %v1098
        %v1100 = vmul.f32 %v1095, 1.442695
        %v1101 = vpow.pop %v1100
        %v1102 = vmul.f32 %v1096, 1.442695
        %v1103 = vpow.pop %v1102
        %v1104 = vmul.f32 %v1097, 1.442695
        %v1105 = vpow.pop %v1104
        %v1106 = vsel %vm1081, %v1099, 0.0
        %1107 = vadd.xlane.f32.xlu0 %v1106
        %v1108 = vpop.xlane.xlu0 %1107
        %v1109 = vsel %vm1081, %v1101, 0.0
        %1110 = vadd.xlane.f32.xlu0 %v1109
        %v1111 = vpop.xlane.xlu0 %1110
        %v1112 = vsel %vm1081, %v1103, 0.0
        %1113 = vadd.xlane.f32.xlu0 %v1112
        %v1114 = vpop.xlane.xlu0 %1113
        %v1115 = vsel %vm1081, %v1105, 0.0
        %1116 = vadd.xlane.f32.xlu0 %v1115
        %v1117 = vpop.xlane.xlu0 %1116
        %v1118 = vrcp.pop %v1108
        %v1119 = vrcp.pop %v1111
        %v1120 = vrcp.pop %v1114
        %v1121 = vrcp.pop %v1117
        %v1122 = vmul.f32 %v1099, %v1118
        %v1123 = vmul.f32 %v1101, %v1119
        %v1124 = vmul.f32 %v1103, %v1120
        %v1125 = vmul.f32 %v1105, %v1121
        %v1126 = vpack.c.bf16 %v1123, %v1122
        %v1127 = vpack.c.bf16 %v1125, %v1124
        %v1129 = vsel %vm1081, %v1126, 0
        %v1132 = vsel %vm1081, %v1127, 0
        %1134 = vmatpush.bf16.msra.mxu0 0
        %1135 = vmatpush.bf16.msra.mxu0 0
        %1136 = vmatpush.bf16.msra.mxu0 0
        %1137 = vmatpush.bf16.msra.mxu0 0
        %1138 = vmatpush.bf16.msra.mxu0 0
        %1139 = vmatpush.bf16.msra.mxu0 0
        %1140 = vmatpush.bf16.msra.mxu0 %v1044
        %1141 = vmatpush.bf16.msra.mxu0 %v1043
        %1142 = vmatmul.bf16.gmra.mxu0 %v1129
        %v1143 = vpop.f32.mrf.mxu0
        %v1144 = vadd.f32 0.0, %v1143
        %v1145 = vpop.f32.mrf.mxu0
        %v1146 = vadd.f32 0.0, %v1145
        %1147 = vmatmul.bf16.gmra.mxu0 %v1132
        %v1148 = vpop.f32.mrf.mxu0
        %v1149 = vadd.f32 0.0, %v1148
        %v1150 = vpop.f32.mrf.mxu0
        %v1151 = vadd.f32 0.0, %v1150
        %1152 = vdwg.mxu0
        %1155 = vrot.lane.b32.xlu0 %v1039, 64
        %v1156 = vpop.permute.xlu0 %1155
        %1157 = vrot.lane.b32.xlu0 %v1040, 64
        %v1158 = vpop.permute.xlu0 %1157
        %1161 = vrot.lane.b32.xlu0 %v1041, 64
        %v1162 = vpop.permute.xlu0 %1161
        %1163 = vrot.lane.b32.xlu0 %v1042, 64
        %v1164 = vpop.permute.xlu0 %1163
        %v1166 = vsel %vm1045, %v1156, 0
        %v1169 = vsel %vm1045, %v1158, 0
        %v1172 = vsel %vm1045, %v1162, 0
        %v1175 = vsel %vm1045, %v1164, 0
        %1177 = vmatpush.bf16.xpose.msra.mxu0 0
        %1178 = vmatpush.bf16.xpose.msra.mxu0 0
        %1179 = vmatpush.bf16.xpose.msra.mxu0 0
        %1180 = vmatpush.bf16.xpose.msra.mxu0 0
        %1181 = vmatpush.bf16.xpose.msra.mxu0 0
        %1182 = vmatpush.bf16.xpose.msra.mxu0 0
        %1183 = vmatpush.bf16.xpose.msra.mxu0 %v1175
        %1184 = vmatpush.bf16.xpose.msra.mxu0 %v1172
        %1185 = vmatmul.bf16.gmra.mxu0 %v1166
        %v1186 = vpop.f32.mrf.mxu0
        %v1187 = vadd.f32 0.0, %v1186
        %v1188 = vpop.f32.mrf.mxu0
        %v1189 = vadd.f32 0.0, %v1188
        %1190 = vmatmul.bf16.gmra.mxu0 %v1169
        %v1191 = vpop.f32.mrf.mxu0
        %v1192 = vadd.f32 0.0, %v1191
        %v1193 = vpop.f32.mrf.mxu0
        %v1194 = vadd.f32 0.0, %v1193
        %1195 = vdwg.mxu0
        %v1196 = vmul.f32 %v1187, 0.125
        %v1197 = vmul.f32 %v1189, 0.125
        %v1198 = vmul.f32 %v1192, 0.125
        %v1199 = vmul.f32 %v1194, 0.125
        %v1200 = vsel %vm1081, %v1196, -inf
        %1201 = vmax.xlane.f32.xlu0 %v1200
        %v1202 = vpop.xlane.xlu0 %1201
        %v1203 = vsel %vm1081, %v1197, -inf
        %1204 = vmax.xlane.f32.xlu0 %v1203
        %v1205 = vpop.xlane.xlu0 %1204
        %v1206 = vsel %vm1081, %v1198, -inf
        %1207 = vmax.xlane.f32.xlu0 %v1206
        %v1208 = vpop.xlane.xlu0 %1207
        %v1209 = vsel %vm1081, %v1199, -inf
        %1210 = vmax.xlane.f32.xlu0 %v1209
        %v1211 = vpop.xlane.xlu0 %1210
        %v1212 = vsub.f32 %v1196, %v1202
        %v1213 = vsub.f32 %v1197, %v1205
        %v1214 = vsub.f32 %v1198, %v1208
        %v1215 = vsub.f32 %v1199, %v1211
        %v1216 = vmul.f32 %v1212, 1.442695
        %v1217 = vpow.pop %v1216
        %v1218 = vmul.f32 %v1213, 1.442695
        %v1219 = vpow.pop %v1218
        %v1220 = vmul.f32 %v1214, 1.442695
        %v1221 = vpow.pop %v1220
        %v1222 = vmul.f32 %v1215, 1.442695
        %v1223 = vpow.pop %v1222
        %v1224 = vsel %vm1081, %v1217, 0.0
        %1225 = vadd.xlane.f32.xlu0 %v1224
        %v1226 = vpop.xlane.xlu0 %1225
        %v1227 = vsel %vm1081, %v1219, 0.0
        %1228 = vadd.xlane.f32.xlu0 %v1227
        %v1229 = vpop.xlane.xlu0 %1228
        %v1230 = vsel %vm1081, %v1221, 0.0
        %1231 = vadd.xlane.f32.xlu0 %v1230
        %v1232 = vpop.xlane.xlu0 %1231
        %v1233 = vsel %vm1081, %v1223, 0.0
        %1234 = vadd.xlane.f32.xlu0 %v1233
        %v1235 = vpop.xlane.xlu0 %1234
        %v1236 = vrcp.pop %v1226
        %v1237 = vrcp.pop %v1229
        %v1238 = vrcp.pop %v1232
        %v1239 = vrcp.pop %v1235
        %v1240 = vmul.f32 %v1217, %v1236
        %v1241 = vmul.f32 %v1219, %v1237
        %v1242 = vmul.f32 %v1221, %v1238
        %v1243 = vmul.f32 %v1223, %v1239
        %v1244 = vpack.c.bf16 %v1241, %v1240
        %v1245 = vpack.c.bf16 %v1243, %v1242
        %1248 = vrot.lane.b32.xlu0 %v1043, 64
        %v1249 = vpop.permute.xlu0 %1248
        %1250 = vrot.lane.b32.xlu0 %v1044, 64
        %v1251 = vpop.permute.xlu0 %1250
        %v1255 = vsel %vm1081, %v1244, 0
        %v1258 = vsel %vm1081, %v1245, 0
        %1260 = vmatpush.bf16.msra.mxu0 0
        %1261 = vmatpush.bf16.msra.mxu0 0
        %1262 = vmatpush.bf16.msra.mxu0 0
        %1263 = vmatpush.bf16.msra.mxu0 0
        %1264 = vmatpush.bf16.msra.mxu0 0
        %1265 = vmatpush.bf16.msra.mxu0 0
        %1266 = vmatpush.bf16.msra.mxu0 %v1251
        %1267 = vmatpush.bf16.msra.mxu0 %v1249
        %1268 = vmatmul.bf16.gmra.mxu0 %v1255
        %v1269 = vpop.f32.mrf.mxu0
        %v1270 = vadd.f32 0.0, %v1269
        %v1271 = vpop.f32.mrf.mxu0
        %v1272 = vadd.f32 0.0, %v1271
        %1273 = vmatmul.bf16.gmra.mxu0 %v1258
        %v1274 = vpop.f32.mrf.mxu0
        %v1275 = vadd.f32 0.0, %v1274
        %v1276 = vpop.f32.mrf.mxu0
        %v1277 = vadd.f32 0.0, %v1276
        %1278 = vdwg.mxu0
        %1283 = vrot.lane.b32.xlu0 %v1270, 64
        %v1284 = vpop.permute.xlu0 %1283
        %1285 = vrot.lane.b32.xlu0 %v1272, 64
        %v1286 = vpop.permute.xlu0 %1285
        %1287 = vrot.lane.b32.xlu0 %v1275, 64
        %v1288 = vpop.permute.xlu0 %1287
        %1289 = vrot.lane.b32.xlu0 %v1277, 64
        %v1290 = vpop.permute.xlu0 %1289
        %v1295 = vsel %vm1045, %v1144, %v1284
        %v1296 = vsel %vm1045, %v1146, %v1286
        %v1297 = vsel %vm1045, %v1149, %v1288
        %v1298 = vsel %vm1045, %v1151, %v1290
        %v1299 = vpack.c.bf16 %v1296, %v1295
        %v1300 = vpack.c.bf16 %v1298, %v1297
        %v1301 = vld [vmem:[#allocation11] sm:$0xf]
        %v1302 = vld [vmem:[#allocation11 + $0x4] sm:$0xf]
        %v1303 = vld [vmem:[#allocation11 + $0x8] sm:$0xf]
        %v1304 = vld [vmem:[#allocation11 + $0xc] sm:$0xf]
        %v1305 = vld [vmem:[#allocation11 + $0x10] sm:$0xf]
        %v1306 = vld [vmem:[#allocation11 + $0x14] sm:$0xf]
        %v1307 = vld [vmem:[#allocation11 + $0x18] sm:$0xf]
        %v1308 = vld [vmem:[#allocation11 + $0x1c] sm:$0xf]
        %v1309 = vld [vmem:[#allocation11 + $0x20] sm:$0xf]
        %v1310 = vld [vmem:[#allocation11 + $0x24] sm:$0xf]
        %v1311 = vld [vmem:[#allocation11 + $0x28] sm:$0xf]
        %v1312 = vld [vmem:[#allocation11 + $0x2c] sm:$0xf]
        %v1313 = vld [vmem:[#allocation11 + $0x30] sm:$0xf]
        %v1314 = vld [vmem:[#allocation11 + $0x34] sm:$0xf]
        %v1315 = vld [vmem:[#allocation11 + $0x38] sm:$0xf]
        %v1316 = vld [vmem:[#allocation11 + $0x3c] sm:$0xf]
        %v1317 = vld [vmem:[%s9] sm:$0x1]
        %v1319 = vperm.slane %v1317, 0
        %v1337 = vunpack.c.l.b16 %v1301
        %v1338 = vunpack.c.l.b16 %v1302
        %v1339 = vunpack.c.l.b16 %v1303
        %v1340 = vunpack.c.l.b16 %v1304
        %v1341 = vunpack.c.l.b16 %v1305
        %v1342 = vunpack.c.l.b16 %v1306
        %v1343 = vunpack.c.l.b16 %v1307
        %v1344 = vunpack.c.l.b16 %v1308
        %v1345 = vunpack.c.l.b16 %v1309
        %v1346 = vunpack.c.l.b16 %v1310
        %v1347 = vunpack.c.l.b16 %v1311
        %v1348 = vunpack.c.l.b16 %v1312
        %v1349 = vunpack.c.l.b16 %v1313
        %v1350 = vunpack.c.l.b16 %v1314
        %v1351 = vunpack.c.l.b16 %v1315
        %v1352 = vunpack.c.l.b16 %v1316
        %v1353 = vpack.c.b16 %v1338, %v1337
        %v1354 = vpack.c.b16 %v1340, %v1339
        %v1355 = vpack.c.b16 %v1342, %v1341
        %v1356 = vpack.c.b16 %v1344, %v1343
        %v1357 = vpack.c.b16 %v1346, %v1345
        %v1358 = vpack.c.b16 %v1348, %v1347
        %v1359 = vpack.c.b16 %v1350, %v1349
        %v1360 = vpack.c.b16 %v1352, %v1351
        %1369 = vmatpush.bf16.msra.mxu0 %v1360
        %1370 = vmatpush.bf16.msra.mxu0 %v1359
        %1371 = vmatpush.bf16.msra.mxu0 %v1358
        %1372 = vmatpush.bf16.msra.mxu0 %v1357
        %1373 = vmatpush.bf16.msra.mxu0 %v1356
        %1374 = vmatpush.bf16.msra.mxu0 %v1355
        %1375 = vmatpush.bf16.msra.mxu0 %v1354
        %1376 = vmatpush.bf16.msra.mxu0 %v1353
        %1377 = vmatmul.bf16.gmra.mxu0 %v1299
        %v1378 = vpop.f32.mrf.mxu0
        %v1379 = vadd.f32 %v1319, %v1378
        %v1380 = vpop.f32.mrf.mxu0
        %v1381 = vadd.f32 %v1319, %v1380
        %1382 = vmatmul.bf16.gmra.mxu0 %v1300
        %v1383 = vpop.f32.mrf.mxu0
        %v1384 = vadd.f32 %v1319, %v1383
        %v1385 = vpop.f32.mrf.mxu0
        %v1386 = vadd.f32 %v1319, %v1385
        %1387 = vdwg.mxu0
        %v1388 = vadd.f32 %v1379, %v697
        %v1389 = vadd.f32 %v1381, %v698
        %v1390 = vadd.f32 %v1384, %v699
        %v1391 = vadd.f32 %v1386, %v700
        %1392 = vadd.xlane.f32.xlu0 %v1388
        %v1393 = vpop.xlane.xlu0 %1392
        %1394 = vadd.xlane.f32.xlu0 %v1389
        %v1395 = vpop.xlane.xlu0 %1394
        %1396 = vadd.xlane.f32.xlu0 %v1390
        %v1397 = vpop.xlane.xlu0 %1396
        %1398 = vadd.xlane.f32.xlu0 %v1391
        %v1399 = vpop.xlane.xlu0 %1398
        %v1400 = vmul.f32 %v1393, %v721
        %v1401 = vmul.f32 %v1395, %v721
        %v1402 = vmul.f32 %v1397, %v721
        %v1403 = vmul.f32 %v1399, %v721
        %v1404 = vsub.f32 %v1388, %v1400
        %v1405 = vsub.f32 %v1389, %v1401
        %v1406 = vsub.f32 %v1390, %v1402
        %v1407 = vsub.f32 %v1391, %v1403
        %v1408 = vmul.f32 %v1404, %v1404
        %v1409 = vmul.f32 %v1405, %v1405
        %v1410 = vmul.f32 %v1406, %v1406
        %v1411 = vmul.f32 %v1407, %v1407
        %1412 = vadd.xlane.f32.xlu0 %v1408
        %v1413 = vpop.xlane.xlu0 %1412
        %1414 = vadd.xlane.f32.xlu0 %v1409
        %v1415 = vpop.xlane.xlu0 %1414
        %1416 = vadd.xlane.f32.xlu0 %v1410
        %v1417 = vpop.xlane.xlu0 %1416
        %1418 = vadd.xlane.f32.xlu0 %v1411
        %v1419 = vpop.xlane.xlu0 %1418
        %v1420 = vmul.f32 %v1413, %v721
        %v1421 = vmul.f32 %v1415, %v721
        %v1422 = vmul.f32 %v1417, %v721
        %v1423 = vmul.f32 %v1419, %v721
        %v1424 = vadd.f32 %v1420, 1e-05
        %v1425 = vadd.f32 %v1421, 1e-05
        %v1426 = vadd.f32 %v1422, 1e-05
        %v1427 = vadd.f32 %v1423, 1e-05
        %v1428 = vrsqrt.pop %v1424
        %v1429 = vmul.f32 %v1428, %v1424
        %v1430 = vmul.f32 %v1429, %v1428
        %v1431 = vmul.f32 0.5, %v1430
        %v1432 = vsub.f32 1.5, %v1431
        %v1433 = vmul.f32 %v1428, %v1432
        %vm1434 = vweird.f32 %v1424
        %vm1435 = vweird.f32 %v1428
        %vm1436 = vmor %vm1434, %vm1435
        %v1437 = vsel %vm1436, %v1428, %v1433
        %v1438 = vrsqrt.pop %v1425
        %v1439 = vmul.f32 %v1438, %v1425
        %v1440 = vmul.f32 %v1439, %v1438
        %v1441 = vmul.f32 0.5, %v1440
        %v1442 = vsub.f32 1.5, %v1441
        %v1443 = vmul.f32 %v1438, %v1442
        %vm1444 = vweird.f32 %v1425
        %vm1445 = vweird.f32 %v1438
        %vm1446 = vmor %vm1444, %vm1445
        %v1447 = vsel %vm1446, %v1438, %v1443
        %v1448 = vrsqrt.pop %v1426
        %v1449 = vmul.f32 %v1448, %v1426
        %v1450 = vmul.f32 %v1449, %v1448
        %v1451 = vmul.f32 0.5, %v1450
        %v1452 = vsub.f32 1.5, %v1451
        %v1453 = vmul.f32 %v1448, %v1452
        %vm1454 = vweird.f32 %v1426
        %vm1455 = vweird.f32 %v1448
        %vm1456 = vmor %vm1454, %vm1455
        %v1457 = vsel %vm1456, %v1448, %v1453
        %v1458 = vrsqrt.pop %v1427
        %v1459 = vmul.f32 %v1458, %v1427
        %v1460 = vmul.f32 %v1459, %v1458
        %v1461 = vmul.f32 0.5, %v1460
        %v1462 = vsub.f32 1.5, %v1461
        %v1463 = vmul.f32 %v1458, %v1462
        %vm1464 = vweird.f32 %v1427
        %vm1465 = vweird.f32 %v1458
        %vm1466 = vmor %vm1464, %vm1465
        %v1467 = vsel %vm1466, %v1458, %v1463
        %v1468 = vmul.f32 %v1404, %v1437
        %v1469 = vmul.f32 %v1405, %v1447
        %v1470 = vmul.f32 %v1406, %v1457
        %v1471 = vmul.f32 %v1407, %v1467
        %v1472 = vmul.f32 %v1468, %v795
        %v1473 = vmul.f32 %v1469, %v795
        %v1474 = vmul.f32 %v1470, %v795
        %v1475 = vmul.f32 %v1471, %v795
        %v1476 = vadd.f32 %v1472, %v802
        %v1477 = vadd.f32 %v1473, %v802
        %v1478 = vadd.f32 %v1474, %v802
        %v1479 = vadd.f32 %v1475, %v802
        %1481 = vset.pattern.permute.xlu0 0
        %1482 = vperm.xlu0 %1481, %v701
        %v1483 = vpop.permute.xlu0 %1482
        %1486 = vset.pattern.permute.xlu0 0
        %1487 = vperm.xlu0 %1486, %v702
        %v1488 = vpop.permute.xlu0 %1487
        %1491 = vset.pattern.permute.xlu0 0
        %1492 = vperm.xlu0 %1491, %v703
        %v1493 = vpop.permute.xlu0 %1492
        %1496 = vset.pattern.permute.xlu0 0
        %1497 = vperm.xlu0 %1496, %v704
        %v1498 = vpop.permute.xlu0 %1497
        %v1500 = vmul.f32 %v1476, %v1483
        %v1501 = vmul.f32 %v1477, %v1488
        %v1502 = vmul.f32 %v1478, %v1493
        %v1503 = vmul.f32 %v1479, %v1498
        %v1504 = vld [vmem:[%s10] sm:$0x1]
        %v1505 = vld [vmem:[%s11] sm:$0x1]
        %1506 = vadd.xlane.f32.xlu0 %v1500
        %v1507 = vpop.xlane.xlu0 %1506
        %1508 = vadd.xlane.f32.xlu0 %v1501
        %v1509 = vpop.xlane.xlu0 %1508
        %1510 = vadd.xlane.f32.xlu0 %v1502
        %v1511 = vpop.xlane.xlu0 %1510
        %1512 = vadd.xlane.f32.xlu0 %v1503
        %v1513 = vpop.xlane.xlu0 %1512
        %v1514 = vmul.f32 %v1507, %v721
        %v1515 = vmul.f32 %v1509, %v721
        %v1516 = vmul.f32 %v1511, %v721
        %v1517 = vmul.f32 %v1513, %v721
        %v1518 = vsub.f32 %v1500, %v1514
        %v1519 = vsub.f32 %v1501, %v1515
        %v1520 = vsub.f32 %v1502, %v1516
        %v1521 = vsub.f32 %v1503, %v1517
        %v1522 = vmul.f32 %v1518, %v1518
        %v1523 = vmul.f32 %v1519, %v1519
        %v1524 = vmul.f32 %v1520, %v1520
        %v1525 = vmul.f32 %v1521, %v1521
        %1526 = vadd.xlane.f32.xlu0 %v1522
        %v1527 = vpop.xlane.xlu0 %1526
        %1528 = vadd.xlane.f32.xlu0 %v1523
        %v1529 = vpop.xlane.xlu0 %1528
        %1530 = vadd.xlane.f32.xlu0 %v1524
        %v1531 = vpop.xlane.xlu0 %1530
        %1532 = vadd.xlane.f32.xlu0 %v1525
        %v1533 = vpop.xlane.xlu0 %1532
        %v1534 = vmul.f32 %v1527, %v721
        %v1535 = vmul.f32 %v1529, %v721
        %v1536 = vmul.f32 %v1531, %v721
        %v1537 = vmul.f32 %v1533, %v721
        %v1538 = vadd.f32 %v1534, 1e-05
        %v1539 = vadd.f32 %v1535, 1e-05
        %v1540 = vadd.f32 %v1536, 1e-05
        %v1541 = vadd.f32 %v1537, 1e-05
        %v1542 = vrsqrt.pop %v1538
        %v1543 = vmul.f32 %v1542, %v1538
        %v1544 = vmul.f32 %v1543, %v1542
        %v1545 = vmul.f32 0.5, %v1544
        %v1546 = vsub.f32 1.5, %v1545
        %v1547 = vmul.f32 %v1542, %v1546
        %vm1548 = vweird.f32 %v1538
        %vm1549 = vweird.f32 %v1542
        %vm1550 = vmor %vm1548, %vm1549
        %v1551 = vsel %vm1550, %v1542, %v1547
        %v1552 = vrsqrt.pop %v1539
        %v1553 = vmul.f32 %v1552, %v1539
        %v1554 = vmul.f32 %v1553, %v1552
        %v1555 = vmul.f32 0.5, %v1554
        %v1556 = vsub.f32 1.5, %v1555
        %v1557 = vmul.f32 %v1552, %v1556
        %vm1558 = vweird.f32 %v1539
        %vm1559 = vweird.f32 %v1552
        %vm1560 = vmor %vm1558, %vm1559
        %v1561 = vsel %vm1560, %v1552, %v1557
        %v1562 = vrsqrt.pop %v1540
        %v1563 = vmul.f32 %v1562, %v1540
        %v1564 = vmul.f32 %v1563, %v1562
        %v1565 = vmul.f32 0.5, %v1564
        %v1566 = vsub.f32 1.5, %v1565
        %v1567 = vmul.f32 %v1562, %v1566
        %vm1568 = vweird.f32 %v1540
        %vm1569 = vweird.f32 %v1562
        %vm1570 = vmor %vm1568, %vm1569
        %v1571 = vsel %vm1570, %v1562, %v1567
        %v1572 = vrsqrt.pop %v1541
        %v1573 = vmul.f32 %v1572, %v1541
        %v1574 = vmul.f32 %v1573, %v1572
        %v1575 = vmul.f32 0.5, %v1574
        %v1576 = vsub.f32 1.5, %v1575
        %v1577 = vmul.f32 %v1572, %v1576
        %vm1578 = vweird.f32 %v1541
        %vm1579 = vweird.f32 %v1572
        %vm1580 = vmor %vm1578, %vm1579
        %v1581 = vsel %vm1580, %v1572, %v1577
        %v1582 = vmul.f32 %v1518, %v1551
        %v1583 = vmul.f32 %v1519, %v1561
        %v1584 = vmul.f32 %v1520, %v1571
        %v1585 = vmul.f32 %v1521, %v1581
        %v1587 = vperm.slane %v1504, 0
        %v1589 = vmul.f32 %v1582, %v1587
        %v1590 = vmul.f32 %v1583, %v1587
        %v1591 = vmul.f32 %v1584, %v1587
        %v1592 = vmul.f32 %v1585, %v1587
        %v1594 = vperm.slane %v1505, 0
        %v1596 = vadd.f32 %v1589, %v1594
        %v1597 = vadd.f32 %v1590, %v1594
        %v1598 = vadd.f32 %v1591, %v1594
        %v1599 = vadd.f32 %v1592, %v1594
        %v1600 = vpack.c.bf16 %v1596, %v1596
        %v1601 = vpack.c.bf16 %v1597, %v1597
        %v1602 = vpack.c.bf16 %v1598, %v1598
        %v1603 = vpack.c.bf16 %v1599, %v1599
        %p1604 = scmp.eq.s32.totalorder %s36, 0
        // Predicated region
        $region121: #{tpu_custom_call.1} parent=87 // pred_check
          %p1605 = pneg %p1604
        $region122: #{tpu_custom_call.1} parent=87 // pred_check_branch
          %1607 = sbr.rel (%p1605) target = $region124
        $region123: #{tpu_custom_call.1} parent=87 // pred_region
          %1608 = vst [vmem:[#allocation2] sm:$0xff] 0
          %1609 = vst [vmem:[#allocation2 + $0x8] sm:$0xff] 0
          %1610 = vst [vmem:[#allocation2 + $0x10] sm:$0xff] 0
          %1611 = vst [vmem:[#allocation2 + $0x18] sm:$0xff] 0
          %1612 = vst [vmem:[#allocation2 + $0x20] sm:$0xff] 0
        $region124: #{tpu_custom_call.1} parent=87 // pred_fallthru
          _
        %vm1617 = vcmask 1041408
        %vm1618 = vcmask 1045508
        %vm1619 = vmor %vm1617, %vm1618
        %v1620 = vrot.slane %v1600, 6
        %v1621 = vrot.slane %v1620, 4
        %v1622 = vrot.slane %v1601, 6
        %v1623 = vsel %vm1619, %v1621, %v1622
        %v1624 = vrot.slane %v1622, 4
        %v1625 = vrot.slane %v1602, 6
        %v1626 = vsel %vm1619, %v1624, %v1625
        %v1627 = vrot.slane %v1625, 4
        %v1628 = vrot.slane %v1603, 6
        %v1629 = vsel %vm1619, %v1627, %v1628
        %v1630 = vrot.slane %v1628, 4
        %1636 = vst [vmem:[#allocation2] sm:$0xc] %v1620
        %1637 = vst [vmem:[#allocation2 + $0x8] sm:$0xf] %v1623
        %1638 = vst [vmem:[#allocation2 + $0x10] sm:$0xf] %v1626
        %1639 = vst [vmem:[#allocation2 + $0x18] sm:$0xf] %v1629
        %1640 = vst [vmem:[#allocation2 + $0x20] sm:$0x3] %v1630
        %vm1641 = vsmask.f32 1280
        %vm1642 = vsmask.f32 5392
        %vm1643 = vmor %vm1641, %vm1642
        %v1645 = vshrl.u32 %v1600, 16
        %v1647 = vrot.slane %v1645, 6
        %v1648 = vshll.u32 %v1600, 16
        %v1650 = vrot.slane %v1648, 7
        %v1651 = vor.u32 %v1647, %v1650
        %v1652 = vrot.slane %v1651, 4
        %v1654 = vshrl.u32 %v1601, 16
        %v1656 = vrot.slane %v1654, 6
        %v1657 = vshll.u32 %v1601, 16
        %v1659 = vrot.slane %v1657, 7
        %v1660 = vor.u32 %v1656, %v1659
        %v1661 = vsel %vm1643, %v1652, %v1660
        %v1662 = vrot.slane %v1660, 4
        %v1664 = vshrl.u32 %v1602, 16
        %v1666 = vrot.slane %v1664, 6
        %v1667 = vshll.u32 %v1602, 16
        %v1669 = vrot.slane %v1667, 7
        %v1670 = vor.u32 %v1666, %v1669
        %v1671 = vsel %vm1643, %v1662, %v1670
        %v1672 = vrot.slane %v1670, 4
        %v1674 = vshrl.u32 %v1603, 16
        %v1676 = vrot.slane %v1674, 6
        %v1677 = vshll.u32 %v1603, 16
        %v1679 = vrot.slane %v1677, 7
        %v1680 = vor.u32 %v1676, %v1679
        %v1681 = vsel %vm1643, %v1672, %v1680
        %v1682 = vrot.slane %v1680, 4
        %vm1688 = vcmask 1043457
        %vm1689 = vsmask.f32 7942
        %vm1690 = vmand %vm1688, %vm1689
        %v1691 = vld [vmem:[#allocation2 + $0x4] sm:$0xe]
        %v1692 = vsel %vm1690, %v1651, %v1691
        %1693 = vst [vmem:[#allocation2 + $0x4] sm:$0xe] %v1692
        %1694 = vst [vmem:[#allocation2 + $0xc] sm:$0xf] %v1661
        %1695 = vst [vmem:[#allocation2 + $0x14] sm:$0xf] %v1671
        %1696 = vst [vmem:[#allocation2 + $0x1c] sm:$0xf] %v1681
        %vm1697 = vmand %vm1617, %vm1641
        %v1698 = vld [vmem:[#allocation2 + $0x24] sm:$0x3]
        %v1699 = vsel %vm1697, %v1682, %v1698
        %1700 = vst [vmem:[#allocation2 + $0x24] sm:$0x3] %v1699
        %v1701 = vld [vmem:[#allocation2] sm:$0xff]
        %v1702 = vld [vmem:[#allocation2 + $0x8] sm:$0xff]
        %v1703 = vld [vmem:[#allocation2 + $0x10] sm:$0xff]
        %v1704 = vld [vmem:[#allocation2 + $0x18] sm:$0xff]
        %v1705 = vld [vmem:[#allocation12] sm:$0xff]
        %v1706 = vld [vmem:[#allocation12 + $0x8] sm:$0xff]
        %v1707 = vld [vmem:[#allocation12 + $0x10] sm:$0xff]
        %v1708 = vld [vmem:[#allocation12 + $0x18] sm:$0xff]
        %v1709 = vld [vmem:[#allocation12 + $0x20] sm:$0xff]
        %v1710 = vld [vmem:[#allocation12 + $0x28] sm:$0xff]
        %v1711 = vld [vmem:[#allocation12 + $0x30] sm:$0xff]
        %v1712 = vld [vmem:[#allocation12 + $0x38] sm:$0xff]
        %v1713 = vld [vmem:[#allocation12 + $0x40] sm:$0xff]
        %v1714 = vld [vmem:[#allocation12 + $0x48] sm:$0xff]
        %v1715 = vld [vmem:[#allocation12 + $0x50] sm:$0xff]
        %v1716 = vld [vmem:[#allocation12 + $0x58] sm:$0xff]
        %v1717 = vld [vmem:[#allocation12 + $0x60] sm:$0xff]
        %v1718 = vld [vmem:[#allocation12 + $0x68] sm:$0xff]
        %v1719 = vld [vmem:[#allocation12 + $0x70] sm:$0xff]
        %v1720 = vld [vmem:[#allocation12 + $0x78] sm:$0xff]
        %v1721 = vld [vmem:[#allocation12 + $0x80] sm:$0xff]
        %v1722 = vld [vmem:[#allocation12 + $0x88] sm:$0xff]
        %v1723 = vld [vmem:[#allocation12 + $0x90] sm:$0xff]
        %v1724 = vld [vmem:[#allocation12 + $0x98] sm:$0xff]
        %v1725 = vld [vmem:[#allocation12 + $0xa0] sm:$0xff]
        %v1726 = vld [vmem:[#allocation12 + $0xa8] sm:$0xff]
        %v1727 = vld [vmem:[#allocation12 + $0xb0] sm:$0xff]
        %v1728 = vld [vmem:[#allocation12 + $0xb8] sm:$0xff]
        %v1729 = vld [vmem:[#allocation12 + $0xc0] sm:$0xff]
        %v1730 = vld [vmem:[#allocation12 + $0xc8] sm:$0xff]
        %v1731 = vld [vmem:[#allocation12 + $0xd0] sm:$0xff]
        %v1732 = vld [vmem:[#allocation12 + $0xd8] sm:$0xff]
        %v1733 = vld [vmem:[#allocation12 + $0xe0] sm:$0xff]
        %v1734 = vld [vmem:[#allocation12 + $0xe8] sm:$0xff]
        %v1735 = vld [vmem:[#allocation12 + $0xf0] sm:$0xff]
        %v1736 = vld [vmem:[#allocation12 + $0xf8] sm:$0xff]
        %v1737 = vld [vmem:[#allocation2] sm:$0xee]
        %v1738 = vld [vmem:[#allocation2 + $0x8] sm:$0xff]
        %v1739 = vld [vmem:[#allocation2 + $0x10] sm:$0xff]
        %v1740 = vld [vmem:[#allocation2 + $0x18] sm:$0xff]
        %v1741 = vld [vmem:[#allocation2 + $0x20] sm:$0x11]
        %s1742 = scalar_lea.vmem [#allocation12], 256
        %v1743 = vld [vmem:[%s1742] sm:$0xff]
        %v1744 = vld [vmem:[%s1742 + $0x8] sm:$0xff]
        %v1745 = vld [vmem:[%s1742 + $0x10] sm:$0xff]
        %v1746 = vld [vmem:[%s1742 + $0x18] sm:$0xff]
        %v1747 = vld [vmem:[%s1742 + $0x20] sm:$0xff]
        %v1748 = vld [vmem:[%s1742 + $0x28] sm:$0xff]
        %v1749 = vld [vmem:[%s1742 + $0x30] sm:$0xff]
        %v1750 = vld [vmem:[%s1742 + $0x38] sm:$0xff]
        %v1751 = vld [vmem:[%s1742 + $0x40] sm:$0xff]
        %v1752 = vld [vmem:[%s1742 + $0x48] sm:$0xff]
        %v1753 = vld [vmem:[%s1742 + $0x50] sm:$0xff]
        %v1754 = vld [vmem:[%s1742 + $0x58] sm:$0xff]
        %v1755 = vld [vmem:[%s1742 + $0x60] sm:$0xff]
        %v1756 = vld [vmem:[%s1742 + $0x68] sm:$0xff]
        %v1757 = vld [vmem:[%s1742 + $0x70] sm:$0xff]
        %v1758 = vld [vmem:[%s1742 + $0x78] sm:$0xff]
        %v1759 = vld [vmem:[%s1742 + $0x80] sm:$0xff]
        %v1760 = vld [vmem:[%s1742 + $0x88] sm:$0xff]
        %v1761 = vld [vmem:[%s1742 + $0x90] sm:$0xff]
        %v1762 = vld [vmem:[%s1742 + $0x98] sm:$0xff]
        %v1763 = vld [vmem:[%s1742 + $0xa0] sm:$0xff]
        %v1764 = vld [vmem:[%s1742 + $0xa8] sm:$0xff]
        %v1765 = vld [vmem:[%s1742 + $0xb0] sm:$0xff]
        %v1766 = vld [vmem:[%s1742 + $0xb8] sm:$0xff]
        %v1767 = vld [vmem:[%s1742 + $0xc0] sm:$0xff]
        %v1768 = vld [vmem:[%s1742 + $0xc8] sm:$0xff]
        %v1769 = vld [vmem:[%s1742 + $0xd0] sm:$0xff]
        %v1770 = vld [vmem:[%s1742 + $0xd8] sm:$0xff]
        %v1771 = vld [vmem:[%s1742 + $0xe0] sm:$0xff]
        %v1772 = vld [vmem:[%s1742 + $0xe8] sm:$0xff]
        %v1773 = vld [vmem:[%s1742 + $0xf0] sm:$0xff]
        %v1774 = vld [vmem:[%s1742 + $0xf8] sm:$0xff]
        %v1780 = vunpack.c.l.b16 %v1737
        %v1781 = vunpack.c.h.b16 %v1737
        %v1782 = vunpack.c.l.b16 %v1738
        %v1783 = vunpack.c.h.b16 %v1738
        %v1784 = vunpack.c.l.b16 %v1739
        %v1785 = vunpack.c.h.b16 %v1739
        %v1786 = vunpack.c.l.b16 %v1740
        %v1787 = vunpack.c.h.b16 %v1740
        %v1788 = vunpack.c.l.b16 %v1741
        %v1789 = vunpack.c.h.b16 %v1741
        %v1790 = vpack.c.b16 %v1782, %v1780
        %v1791 = vpack.c.b16 %v1783, %v1781
        %v1792 = vpack.c.b16 %v1786, %v1784
        %v1793 = vpack.c.b16 %v1787, %v1785
        %v1794 = vpack.c.b16 %v1788, %v1788
        %v1795 = vpack.c.b16 %v1789, %v1789
        %vm1796 = vcmask 1046528
        %v1797 = vrot.slane %v1790, 1
        %v1798 = vrot.slane %v1792, 1
        %v1799 = vsel %vm1796, %v1797, %v1798
        %v1800 = vrot.slane %v1791, 1
        %v1801 = vrot.slane %v1793, 1
        %v1802 = vsel %vm1796, %v1800, %v1801
        %v1803 = vrot.slane %v1794, 1
        %v1804 = vsel %vm1796, %v1798, %v1803
        %v1805 = vrot.slane %v1795, 1
        %v1806 = vsel %vm1796, %v1801, %v1805
        %v1843 = vunpack.c.l.b16 %v1743
        %v1844 = vunpack.c.h.b16 %v1743
        %v1845 = vunpack.c.l.b16 %v1744
        %v1846 = vunpack.c.h.b16 %v1744
        %v1847 = vunpack.c.l.b16 %v1745
        %v1848 = vunpack.c.h.b16 %v1745
        %v1849 = vunpack.c.l.b16 %v1746
        %v1850 = vunpack.c.h.b16 %v1746
        %v1851 = vunpack.c.l.b16 %v1747
        %v1852 = vunpack.c.h.b16 %v1747
        %v1853 = vunpack.c.l.b16 %v1748
        %v1854 = vunpack.c.h.b16 %v1748
        %v1855 = vunpack.c.l.b16 %v1749
        %v1856 = vunpack.c.h.b16 %v1749
        %v1857 = vunpack.c.l.b16 %v1750
        %v1858 = vunpack.c.h.b16 %v1750
        %v1859 = vunpack.c.l.b16 %v1751
        %v1860 = vunpack.c.h.b16 %v1751
        %v1861 = vunpack.c.l.b16 %v1752
        %v1862 = vunpack.c.h.b16 %v1752
        %v1863 = vunpack.c.l.b16 %v1753
        %v1864 = vunpack.c.h.b16 %v1753
        %v1865 = vunpack.c.l.b16 %v1754
        %v1866 = vunpack.c.h.b16 %v1754
        %v1867 = vunpack.c.l.b16 %v1755
        %v1868 = vunpack.c.h.b16 %v1755
        %v1869 = vunpack.c.l.b16 %v1756
        %v1870 = vunpack.c.h.b16 %v1756
        %v1871 = vunpack.c.l.b16 %v1757
        %v1872 = vunpack.c.h.b16 %v1757
        %v1873 = vunpack.c.l.b16 %v1758
        %v1874 = vunpack.c.h.b16 %v1758
        %v1875 = vunpack.c.l.b16 %v1759
        %v1876 = vunpack.c.h.b16 %v1759
        %v1877 = vunpack.c.l.b16 %v1760
        %v1878 = vunpack.c.h.b16 %v1760
        %v1879 = vunpack.c.l.b16 %v1761
        %v1880 = vunpack.c.h.b16 %v1761
        %v1881 = vunpack.c.l.b16 %v1762
        %v1882 = vunpack.c.h.b16 %v1762
        %v1883 = vunpack.c.l.b16 %v1763
        %v1884 = vunpack.c.h.b16 %v1763
        %v1885 = vunpack.c.l.b16 %v1764
        %v1886 = vunpack.c.h.b16 %v1764
        %v1887 = vunpack.c.l.b16 %v1765
        %v1888 = vunpack.c.h.b16 %v1765
        %v1889 = vunpack.c.l.b16 %v1766
        %v1890 = vunpack.c.h.b16 %v1766
        %v1891 = vunpack.c.l.b16 %v1767
        %v1892 = vunpack.c.h.b16 %v1767
        %v1893 = vunpack.c.l.b16 %v1768
        %v1894 = vunpack.c.h.b16 %v1768
        %v1895 = vunpack.c.l.b16 %v1769
        %v1896 = vunpack.c.h.b16 %v1769
        %v1897 = vunpack.c.l.b16 %v1770
        %v1898 = vunpack.c.h.b16 %v1770
        %v1899 = vunpack.c.l.b16 %v1771
        %v1900 = vunpack.c.h.b16 %v1771
        %v1901 = vunpack.c.l.b16 %v1772
        %v1902 = vunpack.c.h.b16 %v1772
        %v1903 = vunpack.c.l.b16 %v1773
        %v1904 = vunpack.c.h.b16 %v1773
        %v1905 = vunpack.c.l.b16 %v1774
        %v1906 = vunpack.c.h.b16 %v1774
        %v1907 = vpack.c.b16 %v1845, %v1843
        %v1908 = vpack.c.b16 %v1846, %v1844
        %v1909 = vpack.c.b16 %v1849, %v1847
        %v1910 = vpack.c.b16 %v1850, %v1848
        %v1911 = vpack.c.b16 %v1853, %v1851
        %v1912 = vpack.c.b16 %v1854, %v1852
        %v1913 = vpack.c.b16 %v1857, %v1855
        %v1914 = vpack.c.b16 %v1858, %v1856
        %v1915 = vpack.c.b16 %v1861, %v1859
        %v1916 = vpack.c.b16 %v1862, %v1860
        %v1917 = vpack.c.b16 %v1865, %v1863
        %v1918 = vpack.c.b16 %v1866, %v1864
        %v1919 = vpack.c.b16 %v1869, %v1867
        %v1920 = vpack.c.b16 %v1870, %v1868
        %v1921 = vpack.c.b16 %v1873, %v1871
        %v1922 = vpack.c.b16 %v1874, %v1872
        %v1923 = vpack.c.b16 %v1877, %v1875
        %v1924 = vpack.c.b16 %v1878, %v1876
        %v1925 = vpack.c.b16 %v1881, %v1879
        %v1926 = vpack.c.b16 %v1882, %v1880
        %v1927 = vpack.c.b16 %v1885, %v1883
        %v1928 = vpack.c.b16 %v1886, %v1884
        %v1929 = vpack.c.b16 %v1889, %v1887
        %v1930 = vpack.c.b16 %v1890, %v1888
        %v1931 = vpack.c.b16 %v1893, %v1891
        %v1932 = vpack.c.b16 %v1894, %v1892
        %v1933 = vpack.c.b16 %v1897, %v1895
        %v1934 = vpack.c.b16 %v1898, %v1896
        %v1935 = vpack.c.b16 %v1901, %v1899
        %v1936 = vpack.c.b16 %v1902, %v1900
        %v1937 = vpack.c.b16 %v1905, %v1903
        %v1938 = vpack.c.b16 %v1906, %v1904
        %1971 = vmatpush.bf16.msra.mxu0 %v1921
        %1972 = vmatpush.bf16.msra.mxu0 %v1919
        %1973 = vmatpush.bf16.msra.mxu0 %v1917
        %1974 = vmatpush.bf16.msra.mxu0 %v1915
        %1975 = vmatpush.bf16.msra.mxu0 %v1913
        %1976 = vmatpush.bf16.msra.mxu0 %v1911
        %1977 = vmatpush.bf16.msra.mxu0 %v1909
        %1978 = vmatpush.bf16.msra.mxu0 %v1907
        %1979 = vmatmul.bf16.gmra.mxu0 %v1799
        %v1980 = vpop.f32.mrf.mxu0
        %v1981 = vadd.f32 0.0, %v1980
        %v1982 = vpop.f32.mrf.mxu0
        %v1983 = vadd.f32 0.0, %v1982
        %1984 = vmatmul.bf16.gmra.mxu0 %v1804
        %v1985 = vpop.f32.mrf.mxu0
        %v1986 = vadd.f32 0.0, %v1985
        %v1987 = vpop.f32.mrf.mxu0
        %v1988 = vadd.f32 0.0, %v1987
        %1989 = vdwg.mxu0
        %1990 = vmatpush.bf16.msra.mxu0 %v1937
        %1991 = vmatpush.bf16.msra.mxu0 %v1935
        %1992 = vmatpush.bf16.msra.mxu0 %v1933
        %1993 = vmatpush.bf16.msra.mxu0 %v1931
        %1994 = vmatpush.bf16.msra.mxu0 %v1929
        %1995 = vmatpush.bf16.msra.mxu0 %v1927
        %1996 = vmatpush.bf16.msra.mxu0 %v1925
        %1997 = vmatpush.bf16.msra.mxu0 %v1923
        %1998 = vmatmul.bf16.gmra.mxu0 %v1802
        %v1999 = vpop.f32.mrf.mxu0
        %v2000 = vadd.f32 %v1981, %v1999
        %v2001 = vpop.f32.mrf.mxu0
        %v2002 = vadd.f32 %v1983, %v2001
        %2003 = vmatmul.bf16.gmra.mxu0 %v1806
        %v2004 = vpop.f32.mrf.mxu0
        %v2005 = vadd.f32 %v1986, %v2004
        %v2006 = vpop.f32.mrf.mxu0
        %v2007 = vadd.f32 %v1988, %v2006
        %2008 = vdwg.mxu0
        %2009 = vmatpush.bf16.msra.mxu0 %v1922
        %2010 = vmatpush.bf16.msra.mxu0 %v1920
        %2011 = vmatpush.bf16.msra.mxu0 %v1918
        %2012 = vmatpush.bf16.msra.mxu0 %v1916
        %2013 = vmatpush.bf16.msra.mxu0 %v1914
        %2014 = vmatpush.bf16.msra.mxu0 %v1912
        %2015 = vmatpush.bf16.msra.mxu0 %v1910
        %2016 = vmatpush.bf16.msra.mxu0 %v1908
        %2017 = vmatmul.bf16.gmra.mxu0 %v1799
        %v2018 = vpop.f32.mrf.mxu0
        %v2019 = vadd.f32 0.0, %v2018
        %v2020 = vpop.f32.mrf.mxu0
        %v2021 = vadd.f32 0.0, %v2020
        %2022 = vmatmul.bf16.gmra.mxu0 %v1804
        %v2023 = vpop.f32.mrf.mxu0
        %v2024 = vadd.f32 0.0, %v2023
        %v2025 = vpop.f32.mrf.mxu0
        %v2026 = vadd.f32 0.0, %v2025
        %2027 = vdwg.mxu0
        %2028 = vmatpush.bf16.msra.mxu0 %v1938
        %2029 = vmatpush.bf16.msra.mxu0 %v1936
        %2030 = vmatpush.bf16.msra.mxu0 %v1934
        %2031 = vmatpush.bf16.msra.mxu0 %v1932
        %2032 = vmatpush.bf16.msra.mxu0 %v1930
        %2033 = vmatpush.bf16.msra.mxu0 %v1928
        %2034 = vmatpush.bf16.msra.mxu0 %v1926
        %2035 = vmatpush.bf16.msra.mxu0 %v1924
        %2036 = vmatmul.bf16.gmra.mxu0 %v1802
        %v2037 = vpop.f32.mrf.mxu0
        %v2038 = vadd.f32 %v2019, %v2037
        %v2039 = vpop.f32.mrf.mxu0
        %v2040 = vadd.f32 %v2021, %v2039
        %2041 = vmatmul.bf16.gmra.mxu0 %v1806
        %v2042 = vpop.f32.mrf.mxu0
        %v2043 = vadd.f32 %v2024, %v2042
        %v2044 = vpop.f32.mrf.mxu0
        %v2045 = vadd.f32 %v2026, %v2044
        %2046 = vdwg.mxu0
        %v2051 = vunpack.c.l.b16 %v1701
        %v2052 = vunpack.c.h.b16 %v1701
        %v2053 = vunpack.c.l.b16 %v1702
        %v2054 = vunpack.c.h.b16 %v1702
        %v2055 = vunpack.c.l.b16 %v1703
        %v2056 = vunpack.c.h.b16 %v1703
        %v2057 = vunpack.c.l.b16 %v1704
        %v2058 = vunpack.c.h.b16 %v1704
        %v2059 = vpack.c.b16 %v2053, %v2051
        %v2060 = vpack.c.b16 %v2054, %v2052
        %v2061 = vpack.c.b16 %v2057, %v2055
        %v2062 = vpack.c.b16 %v2058, %v2056
        %v2099 = vunpack.c.l.b16 %v1705
        %v2100 = vunpack.c.h.b16 %v1705
        %v2101 = vunpack.c.l.b16 %v1706
        %v2102 = vunpack.c.h.b16 %v1706
        %v2103 = vunpack.c.l.b16 %v1707
        %v2104 = vunpack.c.h.b16 %v1707
        %v2105 = vunpack.c.l.b16 %v1708
        %v2106 = vunpack.c.h.b16 %v1708
        %v2107 = vunpack.c.l.b16 %v1709
        %v2108 = vunpack.c.h.b16 %v1709
        %v2109 = vunpack.c.l.b16 %v1710
        %v2110 = vunpack.c.h.b16 %v1710
        %v2111 = vunpack.c.l.b16 %v1711
        %v2112 = vunpack.c.h.b16 %v1711
        %v2113 = vunpack.c.l.b16 %v1712
        %v2114 = vunpack.c.h.b16 %v1712
        %v2115 = vunpack.c.l.b16 %v1713
        %v2116 = vunpack.c.h.b16 %v1713
        %v2117 = vunpack.c.l.b16 %v1714
        %v2118 = vunpack.c.h.b16 %v1714
        %v2119 = vunpack.c.l.b16 %v1715
        %v2120 = vunpack.c.h.b16 %v1715
        %v2121 = vunpack.c.l.b16 %v1716
        %v2122 = vunpack.c.h.b16 %v1716
        %v2123 = vunpack.c.l.b16 %v1717
        %v2124 = vunpack.c.h.b16 %v1717
        %v2125 = vunpack.c.l.b16 %v1718
        %v2126 = vunpack.c.h.b16 %v1718
        %v2127 = vunpack.c.l.b16 %v1719
        %v2128 = vunpack.c.h.b16 %v1719
        %v2129 = vunpack.c.l.b16 %v1720
        %v2130 = vunpack.c.h.b16 %v1720
        %v2131 = vunpack.c.l.b16 %v1721
        %v2132 = vunpack.c.h.b16 %v1721
        %v2133 = vunpack.c.l.b16 %v1722
        %v2134 = vunpack.c.h.b16 %v1722
        %v2135 = vunpack.c.l.b16 %v1723
        %v2136 = vunpack.c.h.b16 %v1723
        %v2137 = vunpack.c.l.b16 %v1724
        %v2138 = vunpack.c.h.b16 %v1724
        %v2139 = vunpack.c.l.b16 %v1725
        %v2140 = vunpack.c.h.b16 %v1725
        %v2141 = vunpack.c.l.b16 %v1726
        %v2142 = vunpack.c.h.b16 %v1726
        %v2143 = vunpack.c.l.b16 %v1727
        %v2144 = vunpack.c.h.b16 %v1727
        %v2145 = vunpack.c.l.b16 %v1728
        %v2146 = vunpack.c.h.b16 %v1728
        %v2147 = vunpack.c.l.b16 %v1729
        %v2148 = vunpack.c.h.b16 %v1729
        %v2149 = vunpack.c.l.b16 %v1730
        %v2150 = vunpack.c.h.b16 %v1730
        %v2151 = vunpack.c.l.b16 %v1731
        %v2152 = vunpack.c.h.b16 %v1731
        %v2153 = vunpack.c.l.b16 %v1732
        %v2154 = vunpack.c.h.b16 %v1732
        %v2155 = vunpack.c.l.b16 %v1733
        %v2156 = vunpack.c.h.b16 %v1733
        %v2157 = vunpack.c.l.b16 %v1734
        %v2158 = vunpack.c.h.b16 %v1734
        %v2159 = vunpack.c.l.b16 %v1735
        %v2160 = vunpack.c.h.b16 %v1735
        %v2161 = vunpack.c.l.b16 %v1736
        %v2162 = vunpack.c.h.b16 %v1736
        %v2163 = vpack.c.b16 %v2101, %v2099
        %v2164 = vpack.c.b16 %v2102, %v2100
        %v2165 = vpack.c.b16 %v2105, %v2103
        %v2166 = vpack.c.b16 %v2106, %v2104
        %v2167 = vpack.c.b16 %v2109, %v2107
        %v2168 = vpack.c.b16 %v2110, %v2108
        %v2169 = vpack.c.b16 %v2113, %v2111
        %v2170 = vpack.c.b16 %v2114, %v2112
        %v2171 = vpack.c.b16 %v2117, %v2115
        %v2172 = vpack.c.b16 %v2118, %v2116
        %v2173 = vpack.c.b16 %v2121, %v2119
        %v2174 = vpack.c.b16 %v2122, %v2120
        %v2175 = vpack.c.b16 %v2125, %v2123
        %v2176 = vpack.c.b16 %v2126, %v2124
        %v2177 = vpack.c.b16 %v2129, %v2127
        %v2178 = vpack.c.b16 %v2130, %v2128
        %v2179 = vpack.c.b16 %v2133, %v2131
        %v2180 = vpack.c.b16 %v2134, %v2132
        %v2181 = vpack.c.b16 %v2137, %v2135
        %v2182 = vpack.c.b16 %v2138, %v2136
        %v2183 = vpack.c.b16 %v2141, %v2139
        %v2184 = vpack.c.b16 %v2142, %v2140
        %v2185 = vpack.c.b16 %v2145, %v2143
        %v2186 = vpack.c.b16 %v2146, %v2144
        %v2187 = vpack.c.b16 %v2149, %v2147
        %v2188 = vpack.c.b16 %v2150, %v2148
        %v2189 = vpack.c.b16 %v2153, %v2151
        %v2190 = vpack.c.b16 %v2154, %v2152
        %v2191 = vpack.c.b16 %v2157, %v2155
        %v2192 = vpack.c.b16 %v2158, %v2156
        %v2193 = vpack.c.b16 %v2161, %v2159
        %v2194 = vpack.c.b16 %v2162, %v2160
        %2227 = vmatpush.bf16.msra.mxu0 %v2177
        %2228 = vmatpush.bf16.msra.mxu0 %v2175
        %2229 = vmatpush.bf16.msra.mxu0 %v2173
        %2230 = vmatpush.bf16.msra.mxu0 %v2171
        %2231 = vmatpush.bf16.msra.mxu0 %v2169
        %2232 = vmatpush.bf16.msra.mxu0 %v2167
        %2233 = vmatpush.bf16.msra.mxu0 %v2165
        %2234 = vmatpush.bf16.msra.mxu0 %v2163
        %2235 = vmatmul.bf16.gmra.mxu0 %v2059
        %v2236 = vpop.f32.mrf.mxu0
        %v2237 = vadd.f32 %v2000, %v2236
        %v2238 = vpop.f32.mrf.mxu0
        %v2239 = vadd.f32 %v2002, %v2238
        %2240 = vmatmul.bf16.gmra.mxu0 %v2061
        %v2241 = vpop.f32.mrf.mxu0
        %v2242 = vadd.f32 %v2005, %v2241
        %v2243 = vpop.f32.mrf.mxu0
        %v2244 = vadd.f32 %v2007, %v2243
        %2245 = vdwg.mxu0
        %2246 = vmatpush.bf16.msra.mxu0 %v2193
        %2247 = vmatpush.bf16.msra.mxu0 %v2191
        %2248 = vmatpush.bf16.msra.mxu0 %v2189
        %2249 = vmatpush.bf16.msra.mxu0 %v2187
        %2250 = vmatpush.bf16.msra.mxu0 %v2185
        %2251 = vmatpush.bf16.msra.mxu0 %v2183
        %2252 = vmatpush.bf16.msra.mxu0 %v2181
        %2253 = vmatpush.bf16.msra.mxu0 %v2179
        %2254 = vmatmul.bf16.gmra.mxu0 %v2060
        %v2255 = vpop.f32.mrf.mxu0
        %v2256 = vadd.f32 %v2237, %v2255
        %v2257 = vpop.f32.mrf.mxu0
        %v2258 = vadd.f32 %v2239, %v2257
        %2259 = vmatmul.bf16.gmra.mxu0 %v2062
        %v2260 = vpop.f32.mrf.mxu0
        %v2261 = vadd.f32 %v2242, %v2260
        %v2262 = vpop.f32.mrf.mxu0
        %v2263 = vadd.f32 %v2244, %v2262
        %2264 = vdwg.mxu0
        %2265 = vmatpush.bf16.msra.mxu0 %v2178
        %2266 = vmatpush.bf16.msra.mxu0 %v2176
        %2267 = vmatpush.bf16.msra.mxu0 %v2174
        %2268 = vmatpush.bf16.msra.mxu0 %v2172
        %2269 = vmatpush.bf16.msra.mxu0 %v2170
        %2270 = vmatpush.bf16.msra.mxu0 %v2168
        %2271 = vmatpush.bf16.msra.mxu0 %v2166
        %2272 = vmatpush.bf16.msra.mxu0 %v2164
        %2273 = vmatmul.bf16.gmra.mxu0 %v2059
        %v2274 = vpop.f32.mrf.mxu0
        %v2275 = vadd.f32 %v2038, %v2274
        %v2276 = vpop.f32.mrf.mxu0
        %v2277 = vadd.f32 %v2040, %v2276
        %2278 = vmatmul.bf16.gmra.mxu0 %v2061
        %v2279 = vpop.f32.mrf.mxu0
        %v2280 = vadd.f32 %v2043, %v2279
        %v2281 = vpop.f32.mrf.mxu0
        %v2282 = vadd.f32 %v2045, %v2281
        %2283 = vdwg.mxu0
        %2284 = vmatpush.bf16.msra.mxu0 %v2194
        %2285 = vmatpush.bf16.msra.mxu0 %v2192
        %2286 = vmatpush.bf16.msra.mxu0 %v2190
        %2287 = vmatpush.bf16.msra.mxu0 %v2188
        %2288 = vmatpush.bf16.msra.mxu0 %v2186
        %2289 = vmatpush.bf16.msra.mxu0 %v2184
        %2290 = vmatpush.bf16.msra.mxu0 %v2182
        %2291 = vmatpush.bf16.msra.mxu0 %v2180
        %2292 = vmatmul.bf16.gmra.mxu0 %v2060
        %v2293 = vpop.f32.mrf.mxu0
        %v2294 = vadd.f32 %v2275, %v2293
        %v2295 = vpop.f32.mrf.mxu0
        %v2296 = vadd.f32 %v2277, %v2295
        %2297 = vmatmul.bf16.gmra.mxu0 %v2062
        %v2298 = vpop.f32.mrf.mxu0
        %v2299 = vadd.f32 %v2280, %v2298
        %v2300 = vpop.f32.mrf.mxu0
        %v2301 = vadd.f32 %v2282, %v2300
        %2302 = vdwg.mxu0
        %v2303 = vld [vmem:[#allocation2] sm:$0xcc]
        %v2304 = vld [vmem:[#allocation2 + $0x20] sm:$0x33]
        %s2305 = scalar_lea.vmem [#allocation12], 512
        %v2306 = vld [vmem:[%s2305] sm:$0xff]
        %v2307 = vld [vmem:[%s2305 + $0x8] sm:$0xff]
        %v2308 = vld [vmem:[%s2305 + $0x10] sm:$0xff]
        %v2309 = vld [vmem:[%s2305 + $0x18] sm:$0xff]
        %v2310 = vld [vmem:[%s2305 + $0x20] sm:$0xff]
        %v2311 = vld [vmem:[%s2305 + $0x28] sm:$0xff]
        %v2312 = vld [vmem:[%s2305 + $0x30] sm:$0xff]
        %v2313 = vld [vmem:[%s2305 + $0x38] sm:$0xff]
        %v2314 = vld [vmem:[%s2305 + $0x40] sm:$0xff]
        %v2315 = vld [vmem:[%s2305 + $0x48] sm:$0xff]
        %v2316 = vld [vmem:[%s2305 + $0x50] sm:$0xff]
        %v2317 = vld [vmem:[%s2305 + $0x58] sm:$0xff]
        %v2318 = vld [vmem:[%s2305 + $0x60] sm:$0xff]
        %v2319 = vld [vmem:[%s2305 + $0x68] sm:$0xff]
        %v2320 = vld [vmem:[%s2305 + $0x70] sm:$0xff]
        %v2321 = vld [vmem:[%s2305 + $0x78] sm:$0xff]
        %v2322 = vld [vmem:[%s2305 + $0x80] sm:$0xff]
        %v2323 = vld [vmem:[%s2305 + $0x88] sm:$0xff]
        %v2324 = vld [vmem:[%s2305 + $0x90] sm:$0xff]
        %v2325 = vld [vmem:[%s2305 + $0x98] sm:$0xff]
        %v2326 = vld [vmem:[%s2305 + $0xa0] sm:$0xff]
        %v2327 = vld [vmem:[%s2305 + $0xa8] sm:$0xff]
        %v2328 = vld [vmem:[%s2305 + $0xb0] sm:$0xff]
        %v2329 = vld [vmem:[%s2305 + $0xb8] sm:$0xff]
        %v2330 = vld [vmem:[%s2305 + $0xc0] sm:$0xff]
        %v2331 = vld [vmem:[%s2305 + $0xc8] sm:$0xff]
        %v2332 = vld [vmem:[%s2305 + $0xd0] sm:$0xff]
        %v2333 = vld [vmem:[%s2305 + $0xd8] sm:$0xff]
        %v2334 = vld [vmem:[%s2305 + $0xe0] sm:$0xff]
        %v2335 = vld [vmem:[%s2305 + $0xe8] sm:$0xff]
        %v2336 = vld [vmem:[%s2305 + $0xf0] sm:$0xff]
        %v2337 = vld [vmem:[%s2305 + $0xf8] sm:$0xff]
        %v2340 = vunpack.c.l.b16 %v2303
        %v2341 = vunpack.c.h.b16 %v2303
        %v2342 = vunpack.c.l.b16 %v2304
        %v2343 = vunpack.c.h.b16 %v2304
        %v2344 = vpack.c.b16 %v1782, %v2340
        %v2345 = vpack.c.b16 %v1783, %v2341
        %v2346 = vpack.c.b16 %v2342, %v2342
        %v2347 = vpack.c.b16 %v2343, %v2343
        %vm2348 = vcmask 1045504
        %v2349 = vrot.slane %v2344, 2
        %v2350 = vrot.slane %v1792, 2
        %v2351 = vsel %vm2348, %v2349, %v2350
        %v2352 = vrot.slane %v2345, 2
        %v2353 = vrot.slane %v1793, 2
        %v2354 = vsel %vm2348, %v2352, %v2353
        %v2355 = vrot.slane %v2346, 2
        %v2356 = vsel %vm2348, %v2350, %v2355
        %v2357 = vrot.slane %v2347, 2
        %v2358 = vsel %vm2348, %v2353, %v2357
        %v2395 = vunpack.c.l.b16 %v2306
        %v2396 = vunpack.c.h.b16 %v2306
        %v2397 = vunpack.c.l.b16 %v2307
        %v2398 = vunpack.c.h.b16 %v2307
        %v2399 = vunpack.c.l.b16 %v2308
        %v2400 = vunpack.c.h.b16 %v2308
        %v2401 = vunpack.c.l.b16 %v2309
        %v2402 = vunpack.c.h.b16 %v2309
        %v2403 = vunpack.c.l.b16 %v2310
        %v2404 = vunpack.c.h.b16 %v2310
        %v2405 = vunpack.c.l.b16 %v2311
        %v2406 = vunpack.c.h.b16 %v2311
        %v2407 = vunpack.c.l.b16 %v2312
        %v2408 = vunpack.c.h.b16 %v2312
        %v2409 = vunpack.c.l.b16 %v2313
        %v2410 = vunpack.c.h.b16 %v2313
        %v2411 = vunpack.c.l.b16 %v2314
        %v2412 = vunpack.c.h.b16 %v2314
        %v2413 = vunpack.c.l.b16 %v2315
        %v2414 = vunpack.c.h.b16 %v2315
        %v2415 = vunpack.c.l.b16 %v2316
        %v2416 = vunpack.c.h.b16 %v2316
        %v2417 = vunpack.c.l.b16 %v2317
        %v2418 = vunpack.c.h.b16 %v2317
        %v2419 = vunpack.c.l.b16 %v2318
        %v2420 = vunpack.c.h.b16 %v2318
        %v2421 = vunpack.c.l.b16 %v2319
        %v2422 = vunpack.c.h.b16 %v2319
        %v2423 = vunpack.c.l.b16 %v2320
        %v2424 = vunpack.c.h.b16 %v2320
        %v2425 = vunpack.c.l.b16 %v2321
        %v2426 = vunpack.c.h.b16 %v2321
        %v2427 = vunpack.c.l.b16 %v2322
        %v2428 = vunpack.c.h.b16 %v2322
        %v2429 = vunpack.c.l.b16 %v2323
        %v2430 = vunpack.c.h.b16 %v2323
        %v2431 = vunpack.c.l.b16 %v2324
        %v2432 = vunpack.c.h.b16 %v2324
        %v2433 = vunpack.c.l.b16 %v2325
        %v2434 = vunpack.c.h.b16 %v2325
        %v2435 = vunpack.c.l.b16 %v2326
        %v2436 = vunpack.c.h.b16 %v2326
        %v2437 = vunpack.c.l.b16 %v2327
        %v2438 = vunpack.c.h.b16 %v2327
        %v2439 = vunpack.c.l.b16 %v2328
        %v2440 = vunpack.c.h.b16 %v2328
        %v2441 = vunpack.c.l.b16 %v2329
        %v2442 = vunpack.c.h.b16 %v2329
        %v2443 = vunpack.c.l.b16 %v2330
        %v2444 = vunpack.c.h.b16 %v2330
        %v2445 = vunpack.c.l.b16 %v2331
        %v2446 = vunpack.c.h.b16 %v2331
        %v2447 = vunpack.c.l.b16 %v2332
        %v2448 = vunpack.c.h.b16 %v2332
        %v2449 = vunpack.c.l.b16 %v2333
        %v2450 = vunpack.c.h.b16 %v2333
        %v2451 = vunpack.c.l.b16 %v2334
        %v2452 = vunpack.c.h.b16 %v2334
        %v2453 = vunpack.c.l.b16 %v2335
        %v2454 = vunpack.c.h.b16 %v2335
        %v2455 = vunpack.c.l.b16 %v2336
        %v2456 = vunpack.c.h.b16 %v2336
        %v2457 = vunpack.c.l.b16 %v2337
        %v2458 = vunpack.c.h.b16 %v2337
        %v2459 = vpack.c.b16 %v2397, %v2395
        %v2460 = vpack.c.b16 %v2398, %v2396
        %v2461 = vpack.c.b16 %v2401, %v2399
        %v2462 = vpack.c.b16 %v2402, %v2400
        %v2463 = vpack.c.b16 %v2405, %v2403
        %v2464 = vpack.c.b16 %v2406, %v2404
        %v2465 = vpack.c.b16 %v2409, %v2407
        %v2466 = vpack.c.b16 %v2410, %v2408
        %v2467 = vpack.c.b16 %v2413, %v2411
        %v2468 = vpack.c.b16 %v2414, %v2412
        %v2469 = vpack.c.b16 %v2417, %v2415
        %v2470 = vpack.c.b16 %v2418, %v2416
        %v2471 = vpack.c.b16 %v2421, %v2419
        %v2472 = vpack.c.b16 %v2422, %v2420
        %v2473 = vpack.c.b16 %v2425, %v2423
        %v2474 = vpack.c.b16 %v2426, %v2424
        %v2475 = vpack.c.b16 %v2429, %v2427
        %v2476 = vpack.c.b16 %v2430, %v2428
        %v2477 = vpack.c.b16 %v2433, %v2431
        %v2478 = vpack.c.b16 %v2434, %v2432
        %v2479 = vpack.c.b16 %v2437, %v2435
        %v2480 = vpack.c.b16 %v2438, %v2436
        %v2481 = vpack.c.b16 %v2441, %v2439
        %v2482 = vpack.c.b16 %v2442, %v2440
        %v2483 = vpack.c.b16 %v2445, %v2443
        %v2484 = vpack.c.b16 %v2446, %v2444
        %v2485 = vpack.c.b16 %v2449, %v2447
        %v2486 = vpack.c.b16 %v2450, %v2448
        %v2487 = vpack.c.b16 %v2453, %v2451
        %v2488 = vpack.c.b16 %v2454, %v2452
        %v2489 = vpack.c.b16 %v2457, %v2455
        %v2490 = vpack.c.b16 %v2458, %v2456
        %2523 = vmatpush.bf16.msra.mxu0 %v2473
        %2524 = vmatpush.bf16.msra.mxu0 %v2471
        %2525 = vmatpush.bf16.msra.mxu0 %v2469
        %2526 = vmatpush.bf16.msra.mxu0 %v2467
        %2527 = vmatpush.bf16.msra.mxu0 %v2465
        %2528 = vmatpush.bf16.msra.mxu0 %v2463
        %2529 = vmatpush.bf16.msra.mxu0 %v2461
        %2530 = vmatpush.bf16.msra.mxu0 %v2459
        %2531 = vmatmul.bf16.gmra.mxu0 %v2351
        %v2532 = vpop.f32.mrf.mxu0
        %v2533 = vadd.f32 0.0, %v2532
        %v2534 = vpop.f32.mrf.mxu0
        %v2535 = vadd.f32 0.0, %v2534
        %2536 = vmatmul.bf16.gmra.mxu0 %v2356
        %v2537 = vpop.f32.mrf.mxu0
        %v2538 = vadd.f32 0.0, %v2537
        %v2539 = vpop.f32.mrf.mxu0
        %v2540 = vadd.f32 0.0, %v2539
        %2541 = vdwg.mxu0
        %2542 = vmatpush.bf16.msra.mxu0 %v2489
        %2543 = vmatpush.bf16.msra.mxu0 %v2487
        %2544 = vmatpush.bf16.msra.mxu0 %v2485
        %2545 = vmatpush.bf16.msra.mxu0 %v2483
        %2546 = vmatpush.bf16.msra.mxu0 %v2481
        %2547 = vmatpush.bf16.msra.mxu0 %v2479
        %2548 = vmatpush.bf16.msra.mxu0 %v2477
        %2549 = vmatpush.bf16.msra.mxu0 %v2475
        %2550 = vmatmul.bf16.gmra.mxu0 %v2354
        %v2551 = vpop.f32.mrf.mxu0
        %v2552 = vadd.f32 %v2533, %v2551
        %v2553 = vpop.f32.mrf.mxu0
        %v2554 = vadd.f32 %v2535, %v2553
        %2555 = vmatmul.bf16.gmra.mxu0 %v2358
        %v2556 = vpop.f32.mrf.mxu0
        %v2557 = vadd.f32 %v2538, %v2556
        %v2558 = vpop.f32.mrf.mxu0
        %v2559 = vadd.f32 %v2540, %v2558
        %2560 = vdwg.mxu0
        %2561 = vmatpush.bf16.msra.mxu0 %v2474
        %2562 = vmatpush.bf16.msra.mxu0 %v2472
        %2563 = vmatpush.bf16.msra.mxu0 %v2470
        %2564 = vmatpush.bf16.msra.mxu0 %v2468
        %2565 = vmatpush.bf16.msra.mxu0 %v2466
        %2566 = vmatpush.bf16.msra.mxu0 %v2464
        %2567 = vmatpush.bf16.msra.mxu0 %v2462
        %2568 = vmatpush.bf16.msra.mxu0 %v2460
        %2569 = vmatmul.bf16.gmra.mxu0 %v2351
        %v2570 = vpop.f32.mrf.mxu0
        %v2571 = vadd.f32 0.0, %v2570
        %v2572 = vpop.f32.mrf.mxu0
        %v2573 = vadd.f32 0.0, %v2572
        %2574 = vmatmul.bf16.gmra.mxu0 %v2356
        %v2575 = vpop.f32.mrf.mxu0
        %v2576 = vadd.f32 0.0, %v2575
        %v2577 = vpop.f32.mrf.mxu0
        %v2578 = vadd.f32 0.0, %v2577
        %2579 = vdwg.mxu0
        %2580 = vmatpush.bf16.msra.mxu0 %v2490
        %2581 = vmatpush.bf16.msra.mxu0 %v2488
        %2582 = vmatpush.bf16.msra.mxu0 %v2486
        %2583 = vmatpush.bf16.msra.mxu0 %v2484
        %2584 = vmatpush.bf16.msra.mxu0 %v2482
        %2585 = vmatpush.bf16.msra.mxu0 %v2480
        %2586 = vmatpush.bf16.msra.mxu0 %v2478
        %2587 = vmatpush.bf16.msra.mxu0 %v2476
        %2588 = vmatmul.bf16.gmra.mxu0 %v2354
        %v2589 = vpop.f32.mrf.mxu0
        %v2590 = vadd.f32 %v2571, %v2589
        %v2591 = vpop.f32.mrf.mxu0
        %v2592 = vadd.f32 %v2573, %v2591
        %2593 = vmatmul.bf16.gmra.mxu0 %v2358
        %v2594 = vpop.f32.mrf.mxu0
        %v2595 = vadd.f32 %v2576, %v2594
        %v2596 = vpop.f32.mrf.mxu0
        %v2597 = vadd.f32 %v2578, %v2596
        %2598 = vdwg.mxu0
        %v2599 = vadd.f32 %v2256, %v2552
        %v2600 = vadd.f32 %v2294, %v2590
        %v2601 = vadd.f32 %v2258, %v2554
        %v2602 = vadd.f32 %v2296, %v2592
        %v2603 = vadd.f32 %v2261, %v2557
        %v2604 = vadd.f32 %v2299, %v2595
        %v2605 = vadd.f32 %v2263, %v2559
        %v2606 = vadd.f32 %v2301, %v2597
        %v2607 = vld [vmem:[#allocation2] sm:$0x88]
        %v2608 = vld [vmem:[#allocation2 + $0x20] sm:$0x77]
        %s2609 = scalar_lea.vmem [#allocation12], 768
        %v2610 = vld [vmem:[%s2609] sm:$0xff]
        %v2611 = vld [vmem:[%s2609 + $0x8] sm:$0xff]
        %v2612 = vld [vmem:[%s2609 + $0x10] sm:$0xff]
        %v2613 = vld [vmem:[%s2609 + $0x18] sm:$0xff]
        %v2614 = vld [vmem:[%s2609 + $0x20] sm:$0xff]
        %v2615 = vld [vmem:[%s2609 + $0x28] sm:$0xff]
        %v2616 = vld [vmem:[%s2609 + $0x30] sm:$0xff]
        %v2617 = vld [vmem:[%s2609 + $0x38] sm:$0xff]
        %v2618 = vld [vmem:[%s2609 + $0x40] sm:$0xff]
        %v2619 = vld [vmem:[%s2609 + $0x48] sm:$0xff]
        %v2620 = vld [vmem:[%s2609 + $0x50] sm:$0xff]
        %v2621 = vld [vmem:[%s2609 + $0x58] sm:$0xff]
        %v2622 = vld [vmem:[%s2609 + $0x60] sm:$0xff]
        %v2623 = vld [vmem:[%s2609 + $0x68] sm:$0xff]
        %v2624 = vld [vmem:[%s2609 + $0x70] sm:$0xff]
        %v2625 = vld [vmem:[%s2609 + $0x78] sm:$0xff]
        %v2626 = vld [vmem:[%s2609 + $0x80] sm:$0xff]
        %v2627 = vld [vmem:[%s2609 + $0x88] sm:$0xff]
        %v2628 = vld [vmem:[%s2609 + $0x90] sm:$0xff]
        %v2629 = vld [vmem:[%s2609 + $0x98] sm:$0xff]
        %v2630 = vld [vmem:[%s2609 + $0xa0] sm:$0xff]
        %v2631 = vld [vmem:[%s2609 + $0xa8] sm:$0xff]
        %v2632 = vld [vmem:[%s2609 + $0xb0] sm:$0xff]
        %v2633 = vld [vmem:[%s2609 + $0xb8] sm:$0xff]
        %v2634 = vld [vmem:[%s2609 + $0xc0] sm:$0xff]
        %v2635 = vld [vmem:[%s2609 + $0xc8] sm:$0xff]
        %v2636 = vld [vmem:[%s2609 + $0xd0] sm:$0xff]
        %v2637 = vld [vmem:[%s2609 + $0xd8] sm:$0xff]
        %v2638 = vld [vmem:[%s2609 + $0xe0] sm:$0xff]
        %v2639 = vld [vmem:[%s2609 + $0xe8] sm:$0xff]
        %v2640 = vld [vmem:[%s2609 + $0xf0] sm:$0xff]
        %v2641 = vld [vmem:[%s2609 + $0xf8] sm:$0xff]
        %v2644 = vunpack.c.l.b16 %v2607
        %v2645 = vunpack.c.h.b16 %v2607
        %v2646 = vunpack.c.l.b16 %v2608
        %v2647 = vunpack.c.h.b16 %v2608
        %v2648 = vpack.c.b16 %v1782, %v2644
        %v2649 = vpack.c.b16 %v1783, %v2645
        %v2650 = vpack.c.b16 %v2646, %v2646
        %v2651 = vpack.c.b16 %v2647, %v2647
        %vm2652 = vcmask 1044480
        %v2653 = vrot.slane %v2648, 3
        %v2654 = vrot.slane %v1792, 3
        %v2655 = vsel %vm2652, %v2653, %v2654
        %v2656 = vrot.slane %v2649, 3
        %v2657 = vrot.slane %v1793, 3
        %v2658 = vsel %vm2652, %v2656, %v2657
        %v2659 = vrot.slane %v2650, 3
        %v2660 = vsel %vm2652, %v2654, %v2659
        %v2661 = vrot.slane %v2651, 3
        %v2662 = vsel %vm2652, %v2657, %v2661
        %v2699 = vunpack.c.l.b16 %v2610
        %v2700 = vunpack.c.h.b16 %v2610
        %v2701 = vunpack.c.l.b16 %v2611
        %v2702 = vunpack.c.h.b16 %v2611
        %v2703 = vunpack.c.l.b16 %v2612
        %v2704 = vunpack.c.h.b16 %v2612
        %v2705 = vunpack.c.l.b16 %v2613
        %v2706 = vunpack.c.h.b16 %v2613
        %v2707 = vunpack.c.l.b16 %v2614
        %v2708 = vunpack.c.h.b16 %v2614
        %v2709 = vunpack.c.l.b16 %v2615
        %v2710 = vunpack.c.h.b16 %v2615
        %v2711 = vunpack.c.l.b16 %v2616
        %v2712 = vunpack.c.h.b16 %v2616
        %v2713 = vunpack.c.l.b16 %v2617
        %v2714 = vunpack.c.h.b16 %v2617
        %v2715 = vunpack.c.l.b16 %v2618
        %v2716 = vunpack.c.h.b16 %v2618
        %v2717 = vunpack.c.l.b16 %v2619
        %v2718 = vunpack.c.h.b16 %v2619
        %v2719 = vunpack.c.l.b16 %v2620
        %v2720 = vunpack.c.h.b16 %v2620
        %v2721 = vunpack.c.l.b16 %v2621
        %v2722 = vunpack.c.h.b16 %v2621
        %v2723 = vunpack.c.l.b16 %v2622
        %v2724 = vunpack.c.h.b16 %v2622
        %v2725 = vunpack.c.l.b16 %v2623
        %v2726 = vunpack.c.h.b16 %v2623
        %v2727 = vunpack.c.l.b16 %v2624
        %v2728 = vunpack.c.h.b16 %v2624
        %v2729 = vunpack.c.l.b16 %v2625
        %v2730 = vunpack.c.h.b16 %v2625
        %v2731 = vunpack.c.l.b16 %v2626
        %v2732 = vunpack.c.h.b16 %v2626
        %v2733 = vunpack.c.l.b16 %v2627
        %v2734 = vunpack.c.h.b16 %v2627
        %v2735 = vunpack.c.l.b16 %v2628
        %v2736 = vunpack.c.h.b16 %v2628
        %v2737 = vunpack.c.l.b16 %v2629
        %v2738 = vunpack.c.h.b16 %v2629
        %v2739 = vunpack.c.l.b16 %v2630
        %v2740 = vunpack.c.h.b16 %v2630
        %v2741 = vunpack.c.l.b16 %v2631
        %v2742 = vunpack.c.h.b16 %v2631
        %v2743 = vunpack.c.l.b16 %v2632
        %v2744 = vunpack.c.h.b16 %v2632
        %v2745 = vunpack.c.l.b16 %v2633
        %v2746 = vunpack.c.h.b16 %v2633
        %v2747 = vunpack.c.l.b16 %v2634
        %v2748 = vunpack.c.h.b16 %v2634
        %v2749 = vunpack.c.l.b16 %v2635
        %v2750 = vunpack.c.h.b16 %v2635
        %v2751 = vunpack.c.l.b16 %v2636
        %v2752 = vunpack.c.h.b16 %v2636
        %v2753 = vunpack.c.l.b16 %v2637
        %v2754 = vunpack.c.h.b16 %v2637
        %v2755 = vunpack.c.l.b16 %v2638
        %v2756 = vunpack.c.h.b16 %v2638
        %v2757 = vunpack.c.l.b16 %v2639
        %v2758 = vunpack.c.h.b16 %v2639
        %v2759 = vunpack.c.l.b16 %v2640
        %v2760 = vunpack.c.h.b16 %v2640
        %v2761 = vunpack.c.l.b16 %v2641
        %v2762 = vunpack.c.h.b16 %v2641
        %v2763 = vpack.c.b16 %v2701, %v2699
        %v2764 = vpack.c.b16 %v2702, %v2700
        %v2765 = vpack.c.b16 %v2705, %v2703
        %v2766 = vpack.c.b16 %v2706, %v2704
        %v2767 = vpack.c.b16 %v2709, %v2707
        %v2768 = vpack.c.b16 %v2710, %v2708
        %v2769 = vpack.c.b16 %v2713, %v2711
        %v2770 = vpack.c.b16 %v2714, %v2712
        %v2771 = vpack.c.b16 %v2717, %v2715
        %v2772 = vpack.c.b16 %v2718, %v2716
        %v2773 = vpack.c.b16 %v2721, %v2719
        %v2774 = vpack.c.b16 %v2722, %v2720
        %v2775 = vpack.c.b16 %v2725, %v2723
        %v2776 = vpack.c.b16 %v2726, %v2724
        %v2777 = vpack.c.b16 %v2729, %v2727
        %v2778 = vpack.c.b16 %v2730, %v2728
        %v2779 = vpack.c.b16 %v2733, %v2731
        %v2780 = vpack.c.b16 %v2734, %v2732
        %v2781 = vpack.c.b16 %v2737, %v2735
        %v2782 = vpack.c.b16 %v2738, %v2736
        %v2783 = vpack.c.b16 %v2741, %v2739
        %v2784 = vpack.c.b16 %v2742, %v2740
        %v2785 = vpack.c.b16 %v2745, %v2743
        %v2786 = vpack.c.b16 %v2746, %v2744
        %v2787 = vpack.c.b16 %v2749, %v2747
        %v2788 = vpack.c.b16 %v2750, %v2748
        %v2789 = vpack.c.b16 %v2753, %v2751
        %v2790 = vpack.c.b16 %v2754, %v2752
        %v2791 = vpack.c.b16 %v2757, %v2755
        %v2792 = vpack.c.b16 %v2758, %v2756
        %v2793 = vpack.c.b16 %v2761, %v2759
        %v2794 = vpack.c.b16 %v2762, %v2760
        %2827 = vmatpush.bf16.msra.mxu0 %v2777
        %2828 = vmatpush.bf16.msra.mxu0 %v2775
        %2829 = vmatpush.bf16.msra.mxu0 %v2773
        %2830 = vmatpush.bf16.msra.mxu0 %v2771
        %2831 = vmatpush.bf16.msra.mxu0 %v2769
        %2832 = vmatpush.bf16.msra.mxu0 %v2767
        %2833 = vmatpush.bf16.msra.mxu0 %v2765
        %2834 = vmatpush.bf16.msra.mxu0 %v2763
        %2835 = vmatmul.bf16.gmra.mxu0 %v2655
        %v2836 = vpop.f32.mrf.mxu0
        %v2837 = vadd.f32 0.0, %v2836
        %v2838 = vpop.f32.mrf.mxu0
        %v2839 = vadd.f32 0.0, %v2838
        %2840 = vmatmul.bf16.gmra.mxu0 %v2660
        %v2841 = vpop.f32.mrf.mxu0
        %v2842 = vadd.f32 0.0, %v2841
        %v2843 = vpop.f32.mrf.mxu0
        %v2844 = vadd.f32 0.0, %v2843
        %2845 = vdwg.mxu0
        %2846 = vmatpush.bf16.msra.mxu0 %v2793
        %2847 = vmatpush.bf16.msra.mxu0 %v2791
        %2848 = vmatpush.bf16.msra.mxu0 %v2789
        %2849 = vmatpush.bf16.msra.mxu0 %v2787
        %2850 = vmatpush.bf16.msra.mxu0 %v2785
        %2851 = vmatpush.bf16.msra.mxu0 %v2783
        %2852 = vmatpush.bf16.msra.mxu0 %v2781
        %2853 = vmatpush.bf16.msra.mxu0 %v2779
        %2854 = vmatmul.bf16.gmra.mxu0 %v2658
        %v2855 = vpop.f32.mrf.mxu0
        %v2856 = vadd.f32 %v2837, %v2855
        %v2857 = vpop.f32.mrf.mxu0
        %v2858 = vadd.f32 %v2839, %v2857
        %2859 = vmatmul.bf16.gmra.mxu0 %v2662
        %v2860 = vpop.f32.mrf.mxu0
        %v2861 = vadd.f32 %v2842, %v2860
        %v2862 = vpop.f32.mrf.mxu0
        %v2863 = vadd.f32 %v2844, %v2862
        %2864 = vdwg.mxu0
        %2865 = vmatpush.bf16.msra.mxu0 %v2778
        %2866 = vmatpush.bf16.msra.mxu0 %v2776
        %2867 = vmatpush.bf16.msra.mxu0 %v2774
        %2868 = vmatpush.bf16.msra.mxu0 %v2772
        %2869 = vmatpush.bf16.msra.mxu0 %v2770
        %2870 = vmatpush.bf16.msra.mxu0 %v2768
        %2871 = vmatpush.bf16.msra.mxu0 %v2766
        %2872 = vmatpush.bf16.msra.mxu0 %v2764
        %2873 = vmatmul.bf16.gmra.mxu0 %v2655
        %v2874 = vpop.f32.mrf.mxu0
        %v2875 = vadd.f32 0.0, %v2874
        %v2876 = vpop.f32.mrf.mxu0
        %v2877 = vadd.f32 0.0, %v2876
        %2878 = vmatmul.bf16.gmra.mxu0 %v2660
        %v2879 = vpop.f32.mrf.mxu0
        %v2880 = vadd.f32 0.0, %v2879
        %v2881 = vpop.f32.mrf.mxu0
        %v2882 = vadd.f32 0.0, %v2881
        %2883 = vdwg.mxu0
        %2884 = vmatpush.bf16.msra.mxu0 %v2794
        %2885 = vmatpush.bf16.msra.mxu0 %v2792
        %2886 = vmatpush.bf16.msra.mxu0 %v2790
        %2887 = vmatpush.bf16.msra.mxu0 %v2788
        %2888 = vmatpush.bf16.msra.mxu0 %v2786
        %2889 = vmatpush.bf16.msra.mxu0 %v2784
        %2890 = vmatpush.bf16.msra.mxu0 %v2782
        %2891 = vmatpush.bf16.msra.mxu0 %v2780
        %2892 = vmatmul.bf16.gmra.mxu0 %v2658
        %v2893 = vpop.f32.mrf.mxu0
        %v2894 = vadd.f32 %v2875, %v2893
        %v2895 = vpop.f32.mrf.mxu0
        %v2896 = vadd.f32 %v2877, %v2895
        %2897 = vmatmul.bf16.gmra.mxu0 %v2662
        %v2898 = vpop.f32.mrf.mxu0
        %v2899 = vadd.f32 %v2880, %v2898
        %v2900 = vpop.f32.mrf.mxu0
        %v2901 = vadd.f32 %v2882, %v2900
        %2902 = vdwg.mxu0
        %v2903 = vadd.f32 %v2599, %v2856
        %v2904 = vadd.f32 %v2600, %v2894
        %v2905 = vadd.f32 %v2601, %v2858
        %v2906 = vadd.f32 %v2602, %v2896
        %v2907 = vadd.f32 %v2603, %v2861
        %v2908 = vadd.f32 %v2604, %v2899
        %v2909 = vadd.f32 %v2605, %v2863
        %v2910 = vadd.f32 %v2606, %v2901
        %v2911 = vld [vmem:[#allocation2 + $0x8] sm:$0xf]
        %v2912 = vld [vmem:[#allocation2 + $0x10] sm:$0xf]
        %v2913 = vld [vmem:[#allocation2 + $0x18] sm:$0xf]
        %v2914 = vld [vmem:[#allocation2 + $0x20] sm:$0xf]
        %v2915 = vld [vmem:[#allocation14] sm:$0xff]
        %v2916 = vld [vmem:[#allocation14 + $0x8] sm:$0xff]
        %v2917 = vld [vmem:[#allocation14 + $0x10] sm:$0xff]
        %v2918 = vld [vmem:[#allocation14 + $0x18] sm:$0xff]
        %v2919 = vld [vmem:[#allocation14 + $0x20] sm:$0xff]
        %v2920 = vld [vmem:[#allocation14 + $0x28] sm:$0xff]
        %v2921 = vld [vmem:[#allocation14 + $0x30] sm:$0xff]
        %v2922 = vld [vmem:[#allocation14 + $0x38] sm:$0xff]
        %v2923 = vld [vmem:[#allocation14 + $0x40] sm:$0xff]
        %v2924 = vld [vmem:[#allocation14 + $0x48] sm:$0xff]
        %v2925 = vld [vmem:[#allocation14 + $0x50] sm:$0xff]
        %v2926 = vld [vmem:[#allocation14 + $0x58] sm:$0xff]
        %v2927 = vld [vmem:[#allocation14 + $0x60] sm:$0xff]
        %v2928 = vld [vmem:[#allocation14 + $0x68] sm:$0xff]
        %v2929 = vld [vmem:[#allocation14 + $0x70] sm:$0xff]
        %v2930 = vld [vmem:[#allocation14 + $0x78] sm:$0xff]
        %v2935 = vunpack.c.l.b16 %v2911
        %v2936 = vunpack.c.l.b16 %v2912
        %v2937 = vunpack.c.l.b16 %v2913
        %v2938 = vunpack.c.l.b16 %v2914
        %v2939 = vpack.c.b16 %v2936, %v2935
        %v2940 = vpack.c.b16 %v2938, %v2937
        %v2959 = vunpack.c.l.b16 %v2915
        %v2960 = vunpack.c.h.b16 %v2915
        %v2961 = vunpack.c.l.b16 %v2916
        %v2962 = vunpack.c.h.b16 %v2916
        %v2963 = vunpack.c.l.b16 %v2917
        %v2964 = vunpack.c.h.b16 %v2917
        %v2965 = vunpack.c.l.b16 %v2918
        %v2966 = vunpack.c.h.b16 %v2918
        %v2967 = vunpack.c.l.b16 %v2919
        %v2968 = vunpack.c.h.b16 %v2919
        %v2969 = vunpack.c.l.b16 %v2920
        %v2970 = vunpack.c.h.b16 %v2920
        %v2971 = vunpack.c.l.b16 %v2921
        %v2972 = vunpack.c.h.b16 %v2921
        %v2973 = vunpack.c.l.b16 %v2922
        %v2974 = vunpack.c.h.b16 %v2922
        %v2975 = vunpack.c.l.b16 %v2923
        %v2976 = vunpack.c.h.b16 %v2923
        %v2977 = vunpack.c.l.b16 %v2924
        %v2978 = vunpack.c.h.b16 %v2924
        %v2979 = vunpack.c.l.b16 %v2925
        %v2980 = vunpack.c.h.b16 %v2925
        %v2981 = vunpack.c.l.b16 %v2926
        %v2982 = vunpack.c.h.b16 %v2926
        %v2983 = vunpack.c.l.b16 %v2927
        %v2984 = vunpack.c.h.b16 %v2927
        %v2985 = vunpack.c.l.b16 %v2928
        %v2986 = vunpack.c.h.b16 %v2928
        %v2987 = vunpack.c.l.b16 %v2929
        %v2988 = vunpack.c.h.b16 %v2929
        %v2989 = vunpack.c.l.b16 %v2930
        %v2990 = vunpack.c.h.b16 %v2930
        %v2991 = vpack.c.b16 %v2961, %v2959
        %v2992 = vpack.c.b16 %v2962, %v2960
        %v2993 = vpack.c.b16 %v2965, %v2963
        %v2994 = vpack.c.b16 %v2966, %v2964
        %v2995 = vpack.c.b16 %v2969, %v2967
        %v2996 = vpack.c.b16 %v2970, %v2968
        %v2997 = vpack.c.b16 %v2973, %v2971
        %v2998 = vpack.c.b16 %v2974, %v2972
        %v2999 = vpack.c.b16 %v2977, %v2975
        %v3000 = vpack.c.b16 %v2978, %v2976
        %v3001 = vpack.c.b16 %v2981, %v2979
        %v3002 = vpack.c.b16 %v2982, %v2980
        %v3003 = vpack.c.b16 %v2985, %v2983
        %v3004 = vpack.c.b16 %v2986, %v2984
        %v3005 = vpack.c.b16 %v2989, %v2987
        %v3006 = vpack.c.b16 %v2990, %v2988
        %3023 = vmatpush.bf16.msra.mxu0 %v3005
        %3024 = vmatpush.bf16.msra.mxu0 %v3003
        %3025 = vmatpush.bf16.msra.mxu0 %v3001
        %3026 = vmatpush.bf16.msra.mxu0 %v2999
        %3027 = vmatpush.bf16.msra.mxu0 %v2997
        %3028 = vmatpush.bf16.msra.mxu0 %v2995
        %3029 = vmatpush.bf16.msra.mxu0 %v2993
        %3030 = vmatpush.bf16.msra.mxu0 %v2991
        %3031 = vmatmul.bf16.gmra.mxu0 %v2939
        %v3032 = vpop.f32.mrf.mxu0
        %v3033 = vadd.f32 0.0, %v3032
        %v3034 = vpop.f32.mrf.mxu0
        %v3035 = vadd.f32 0.0, %v3034
        %3036 = vmatmul.bf16.gmra.mxu0 %v2940
        %v3037 = vpop.f32.mrf.mxu0
        %v3038 = vadd.f32 0.0, %v3037
        %v3039 = vpop.f32.mrf.mxu0
        %v3040 = vadd.f32 0.0, %v3039
        %3041 = vdwg.mxu0
        %3042 = vmatpush.bf16.msra.mxu0 %v3006
        %3043 = vmatpush.bf16.msra.mxu0 %v3004
        %3044 = vmatpush.bf16.msra.mxu0 %v3002
        %3045 = vmatpush.bf16.msra.mxu0 %v3000
        %3046 = vmatpush.bf16.msra.mxu0 %v2998
        %3047 = vmatpush.bf16.msra.mxu0 %v2996
        %3048 = vmatpush.bf16.msra.mxu0 %v2994
        %3049 = vmatpush.bf16.msra.mxu0 %v2992
        %3050 = vmatmul.bf16.gmra.mxu0 %v2939
        %v3051 = vpop.f32.mrf.mxu0
        %v3052 = vadd.f32 0.0, %v3051
        %v3053 = vpop.f32.mrf.mxu0
        %v3054 = vadd.f32 0.0, %v3053
        %3055 = vmatmul.bf16.gmra.mxu0 %v2940
        %v3056 = vpop.f32.mrf.mxu0
        %v3057 = vadd.f32 0.0, %v3056
        %v3058 = vpop.f32.mrf.mxu0
        %v3059 = vadd.f32 0.0, %v3058
        %3060 = vdwg.mxu0
        %v3061 = vadd.f32 %v2903, %v3033
        %v3062 = vadd.f32 %v2904, %v3052
        %v3063 = vadd.f32 %v2905, %v3035
        %v3064 = vadd.f32 %v2906, %v3054
        %v3065 = vadd.f32 %v2907, %v3038
        %v3066 = vadd.f32 %v2908, %v3057
        %v3067 = vadd.f32 %v2909, %v3040
        %v3068 = vadd.f32 %v2910, %v3059
        %v3069 = vld [vmem:[%s14] sm:$0x3]
        %v3071 = vperm.slane %v3069, 0
        %v3072 = vperm.slane %v3069, 1
        %v3075 = vadd.f32 %v3061, %v3071
        %v3076 = vadd.f32 %v3062, %v3072
        %v3077 = vadd.f32 %v3063, %v3071
        %v3078 = vadd.f32 %v3064, %v3072
        %v3079 = vadd.f32 %v3065, %v3071
        %v3080 = vadd.f32 %v3066, %v3072
        %v3081 = vadd.f32 %v3067, %v3071
        %v3082 = vadd.f32 %v3068, %v3072
        %v3083 = vmax.f32 %v3075, 0.0
        %v3084 = vmax.f32 %v3076, 0.0
        %v3085 = vmax.f32 %v3077, 0.0
        %v3086 = vmax.f32 %v3078, 0.0
        %v3087 = vmax.f32 %v3079, 0.0
        %v3088 = vmax.f32 %v3080, 0.0
        %v3089 = vmax.f32 %v3081, 0.0
        %v3090 = vmax.f32 %v3082, 0.0
        %v3091 = vpack.c.bf16 %v3085, %v3083
        %v3092 = vpack.c.bf16 %v3086, %v3084
        %v3093 = vpack.c.bf16 %v3089, %v3087
        %v3094 = vpack.c.bf16 %v3090, %v3088
        %v3095 = vld [vmem:[#allocation15] sm:$0xf]
        %v3096 = vld [vmem:[#allocation15 + $0x4] sm:$0xf]
        %v3097 = vld [vmem:[#allocation15 + $0x8] sm:$0xf]
        %v3098 = vld [vmem:[#allocation15 + $0xc] sm:$0xf]
        %v3099 = vld [vmem:[#allocation15 + $0x10] sm:$0xf]
        %v3100 = vld [vmem:[#allocation15 + $0x14] sm:$0xf]
        %v3101 = vld [vmem:[#allocation15 + $0x18] sm:$0xf]
        %v3102 = vld [vmem:[#allocation15 + $0x1c] sm:$0xf]
        %v3103 = vld [vmem:[#allocation15 + $0x20] sm:$0xf]
        %v3104 = vld [vmem:[#allocation15 + $0x24] sm:$0xf]
        %v3105 = vld [vmem:[#allocation15 + $0x28] sm:$0xf]
        %v3106 = vld [vmem:[#allocation15 + $0x2c] sm:$0xf]
        %v3107 = vld [vmem:[#allocation15 + $0x30] sm:$0xf]
        %v3108 = vld [vmem:[#allocation15 + $0x34] sm:$0xf]
        %v3109 = vld [vmem:[#allocation15 + $0x38] sm:$0xf]
        %v3110 = vld [vmem:[#allocation15 + $0x3c] sm:$0xf]
        %v3111 = vld [vmem:[#allocation15 + $0x40] sm:$0xf]
        %v3112 = vld [vmem:[#allocation15 + $0x44] sm:$0xf]
        %v3113 = vld [vmem:[#allocation15 + $0x48] sm:$0xf]
        %v3114 = vld [vmem:[#allocation15 + $0x4c] sm:$0xf]
        %v3115 = vld [vmem:[#allocation15 + $0x50] sm:$0xf]
        %v3116 = vld [vmem:[#allocation15 + $0x54] sm:$0xf]
        %v3117 = vld [vmem:[#allocation15 + $0x58] sm:$0xf]
        %v3118 = vld [vmem:[#allocation15 + $0x5c] sm:$0xf]
        %v3119 = vld [vmem:[#allocation15 + $0x60] sm:$0xf]
        %v3120 = vld [vmem:[#allocation15 + $0x64] sm:$0xf]
        %v3121 = vld [vmem:[#allocation15 + $0x68] sm:$0xf]
        %v3122 = vld [vmem:[#allocation15 + $0x6c] sm:$0xf]
        %v3123 = vld [vmem:[#allocation15 + $0x70] sm:$0xf]
        %v3124 = vld [vmem:[#allocation15 + $0x74] sm:$0xf]
        %v3125 = vld [vmem:[#allocation15 + $0x78] sm:$0xf]
        %v3126 = vld [vmem:[#allocation15 + $0x7c] sm:$0xf]
        %v3127 = vld [vmem:[%s16] sm:$0x1]
        %v3129 = vperm.slane %v3127, 0
        %v3163 = vunpack.c.l.b16 %v3095
        %v3164 = vunpack.c.l.b16 %v3096
        %v3165 = vunpack.c.l.b16 %v3097
        %v3166 = vunpack.c.l.b16 %v3098
        %v3167 = vunpack.c.l.b16 %v3099
        %v3168 = vunpack.c.l.b16 %v3100
        %v3169 = vunpack.c.l.b16 %v3101
        %v3170 = vunpack.c.l.b16 %v3102
        %v3171 = vunpack.c.l.b16 %v3103
        %v3172 = vunpack.c.l.b16 %v3104
        %v3173 = vunpack.c.l.b16 %v3105
        %v3174 = vunpack.c.l.b16 %v3106
        %v3175 = vunpack.c.l.b16 %v3107
        %v3176 = vunpack.c.l.b16 %v3108
        %v3177 = vunpack.c.l.b16 %v3109
        %v3178 = vunpack.c.l.b16 %v3110
        %v3179 = vunpack.c.l.b16 %v3111
        %v3180 = vunpack.c.l.b16 %v3112
        %v3181 = vunpack.c.l.b16 %v3113
        %v3182 = vunpack.c.l.b16 %v3114
        %v3183 = vunpack.c.l.b16 %v3115
        %v3184 = vunpack.c.l.b16 %v3116
        %v3185 = vunpack.c.l.b16 %v3117
        %v3186 = vunpack.c.l.b16 %v3118
        %v3187 = vunpack.c.l.b16 %v3119
        %v3188 = vunpack.c.l.b16 %v3120
        %v3189 = vunpack.c.l.b16 %v3121
        %v3190 = vunpack.c.l.b16 %v3122
        %v3191 = vunpack.c.l.b16 %v3123
        %v3192 = vunpack.c.l.b16 %v3124
        %v3193 = vunpack.c.l.b16 %v3125
        %v3194 = vunpack.c.l.b16 %v3126
        %v3195 = vpack.c.b16 %v3164, %v3163
        %v3196 = vpack.c.b16 %v3166, %v3165
        %v3197 = vpack.c.b16 %v3168, %v3167
        %v3198 = vpack.c.b16 %v3170, %v3169
        %v3199 = vpack.c.b16 %v3172, %v3171
        %v3200 = vpack.c.b16 %v3174, %v3173
        %v3201 = vpack.c.b16 %v3176, %v3175
        %v3202 = vpack.c.b16 %v3178, %v3177
        %v3203 = vpack.c.b16 %v3180, %v3179
        %v3204 = vpack.c.b16 %v3182, %v3181
        %v3205 = vpack.c.b16 %v3184, %v3183
        %v3206 = vpack.c.b16 %v3186, %v3185
        %v3207 = vpack.c.b16 %v3188, %v3187
        %v3208 = vpack.c.b16 %v3190, %v3189
        %v3209 = vpack.c.b16 %v3192, %v3191
        %v3210 = vpack.c.b16 %v3194, %v3193
        %3227 = vmatpush.bf16.msra.mxu0 %v3202
        %3228 = vmatpush.bf16.msra.mxu0 %v3201
        %3229 = vmatpush.bf16.msra.mxu0 %v3200
        %3230 = vmatpush.bf16.msra.mxu0 %v3199
        %3231 = vmatpush.bf16.msra.mxu0 %v3198
        %3232 = vmatpush.bf16.msra.mxu0 %v3197
        %3233 = vmatpush.bf16.msra.mxu0 %v3196
        %3234 = vmatpush.bf16.msra.mxu0 %v3195
        %3235 = vmatmul.bf16.gmra.mxu0 %v3091
        %v3236 = vpop.f32.mrf.mxu0
        %v3237 = vadd.f32 %v3129, %v3236
        %v3238 = vpop.f32.mrf.mxu0
        %v3239 = vadd.f32 %v3129, %v3238
        %3240 = vmatmul.bf16.gmra.mxu0 %v3093
        %v3241 = vpop.f32.mrf.mxu0
        %v3242 = vadd.f32 %v3129, %v3241
        %v3243 = vpop.f32.mrf.mxu0
        %v3244 = vadd.f32 %v3129, %v3243
        %3245 = vdwg.mxu0
        %3246 = vmatpush.bf16.msra.mxu0 %v3210
        %3247 = vmatpush.bf16.msra.mxu0 %v3209
        %3248 = vmatpush.bf16.msra.mxu0 %v3208
        %3249 = vmatpush.bf16.msra.mxu0 %v3207
        %3250 = vmatpush.bf16.msra.mxu0 %v3206
        %3251 = vmatpush.bf16.msra.mxu0 %v3205
        %3252 = vmatpush.bf16.msra.mxu0 %v3204
        %3253 = vmatpush.bf16.msra.mxu0 %v3203
        %3254 = vmatmul.bf16.gmra.mxu0 %v3092
        %v3255 = vpop.f32.mrf.mxu0
        %v3256 = vadd.f32 %v3237, %v3255
        %v3257 = vpop.f32.mrf.mxu0
        %v3258 = vadd.f32 %v3239, %v3257
        %3259 = vmatmul.bf16.gmra.mxu0 %v3094
        %v3260 = vpop.f32.mrf.mxu0
        %v3261 = vadd.f32 %v3242, %v3260
        %v3262 = vpop.f32.mrf.mxu0
        %v3263 = vadd.f32 %v3244, %v3262
        %3264 = vdwg.mxu0
        %v3265 = vadd.f32 %v3256, %v1500
        %v3266 = vadd.f32 %v3258, %v1501
        %v3267 = vadd.f32 %v3261, %v1502
        %v3268 = vadd.f32 %v3263, %v1503
        %3269 = vadd.xlane.f32.xlu0 %v3265
        %v3270 = vpop.xlane.xlu0 %3269
        %3271 = vadd.xlane.f32.xlu0 %v3266
        %v3272 = vpop.xlane.xlu0 %3271
        %3273 = vadd.xlane.f32.xlu0 %v3267
        %v3274 = vpop.xlane.xlu0 %3273
        %3275 = vadd.xlane.f32.xlu0 %v3268
        %v3276 = vpop.xlane.xlu0 %3275
        %v3277 = vmul.f32 %v3270, %v721
        %v3278 = vmul.f32 %v3272, %v721
        %v3279 = vmul.f32 %v3274, %v721
        %v3280 = vmul.f32 %v3276, %v721
        %v3281 = vsub.f32 %v3265, %v3277
        %v3282 = vsub.f32 %v3266, %v3278
        %v3283 = vsub.f32 %v3267, %v3279
        %v3284 = vsub.f32 %v3268, %v3280
        %v3285 = vmul.f32 %v3281, %v3281
        %v3286 = vmul.f32 %v3282, %v3282
        %v3287 = vmul.f32 %v3283, %v3283
        %v3288 = vmul.f32 %v3284, %v3284
        %3289 = vadd.xlane.f32.xlu0 %v3285
        %v3290 = vpop.xlane.xlu0 %3289
        %3291 = vadd.xlane.f32.xlu0 %v3286
        %v3292 = vpop.xlane.xlu0 %3291
        %3293 = vadd.xlane.f32.xlu0 %v3287
        %v3294 = vpop.xlane.xlu0 %3293
        %3295 = vadd.xlane.f32.xlu0 %v3288
        %v3296 = vpop.xlane.xlu0 %3295
        %v3297 = vmul.f32 %v3290, %v721
        %v3298 = vmul.f32 %v3292, %v721
        %v3299 = vmul.f32 %v3294, %v721
        %v3300 = vmul.f32 %v3296, %v721
        %v3301 = vadd.f32 %v3297, 1e-05
        %v3302 = vadd.f32 %v3298, 1e-05
        %v3303 = vadd.f32 %v3299, 1e-05
        %v3304 = vadd.f32 %v3300, 1e-05
        %v3305 = vrsqrt.pop %v3301
        %v3306 = vmul.f32 %v3305, %v3301
        %v3307 = vmul.f32 %v3306, %v3305
        %v3308 = vmul.f32 0.5, %v3307
        %v3309 = vsub.f32 1.5, %v3308
        %v3310 = vmul.f32 %v3305, %v3309
        %vm3311 = vweird.f32 %v3301
        %vm3312 = vweird.f32 %v3305
        %vm3313 = vmor %vm3311, %vm3312
        %v3314 = vsel %vm3313, %v3305, %v3310
        %v3315 = vrsqrt.pop %v3302
        %v3316 = vmul.f32 %v3315, %v3302
        %v3317 = vmul.f32 %v3316, %v3315
        %v3318 = vmul.f32 0.5, %v3317
        %v3319 = vsub.f32 1.5, %v3318
        %v3320 = vmul.f32 %v3315, %v3319
        %vm3321 = vweird.f32 %v3302
        %vm3322 = vweird.f32 %v3315
        %vm3323 = vmor %vm3321, %vm3322
        %v3324 = vsel %vm3323, %v3315, %v3320
        %v3325 = vrsqrt.pop %v3303
        %v3326 = vmul.f32 %v3325, %v3303
        %v3327 = vmul.f32 %v3326, %v3325
        %v3328 = vmul.f32 0.5, %v3327
        %v3329 = vsub.f32 1.5, %v3328
        %v3330 = vmul.f32 %v3325, %v3329
        %vm3331 = vweird.f32 %v3303
        %vm3332 = vweird.f32 %v3325
        %vm3333 = vmor %vm3331, %vm3332
        %v3334 = vsel %vm3333, %v3325, %v3330
        %v3335 = vrsqrt.pop %v3304
        %v3336 = vmul.f32 %v3335, %v3304
        %v3337 = vmul.f32 %v3336, %v3335
        %v3338 = vmul.f32 0.5, %v3337
        %v3339 = vsub.f32 1.5, %v3338
        %v3340 = vmul.f32 %v3335, %v3339
        %vm3341 = vweird.f32 %v3304
        %vm3342 = vweird.f32 %v3335
        %vm3343 = vmor %vm3341, %vm3342
        %v3344 = vsel %vm3343, %v3335, %v3340
        %v3345 = vmul.f32 %v3281, %v3314
        %v3346 = vmul.f32 %v3282, %v3324
        %v3347 = vmul.f32 %v3283, %v3334
        %v3348 = vmul.f32 %v3284, %v3344
        %v3349 = vmul.f32 %v3345, %v1587
        %v3350 = vmul.f32 %v3346, %v1587
        %v3351 = vmul.f32 %v3347, %v1587
        %v3352 = vmul.f32 %v3348, %v1587
        %v3353 = vadd.f32 %v3349, %v1594
        %v3354 = vadd.f32 %v3350, %v1594
        %v3355 = vadd.f32 %v3351, %v1594
        %v3356 = vadd.f32 %v3352, %v1594
        %v3357 = vmul.f32 %v3353, %v1483
        %v3358 = vmul.f32 %v3354, %v1488
        %v3359 = vmul.f32 %v3355, %v1493
        %v3360 = vmul.f32 %v3356, %v1498
        %3361 = vst [vmem:[%s685] sm:$0xff] %v3357
        %3362 = vst [vmem:[%s685 + $0x8] sm:$0xff] %v3358
        %3363 = vst [vmem:[%s685 + $0x10] sm:$0xff] %v3359
        %3364 = vst [vmem:[%s685 + $0x18] sm:$0xff] %v3360
        %s3365 = sand.u32 %s411, 1
        %s3366 = scalar_lea.sflag [#allocation5], %s3365
        %s3367 = sand.u32 %s411, 1
        %s3368 = smul.addr %s3367, 32
        %s3369 = scalar_lea.vmem [#allocation17], %s3368
        // Predicated region
        $region125: #{tpu_custom_call.1} parent=87 // pred_check
          %p3370 = pneg %p421
        $region126: #{tpu_custom_call.1} parent=87 // pred_check_branch
          %3372 = sbr.rel (%p3370) target = $region128
        $region127: #{tpu_custom_call.1} parent=87 // pred_region
          %3374 = vsyncadd %s3366, 0
          %s3375 = smul.addr %s36, 4
          %s3376 = smul.addr %s3375, 8
          %s3377 = scalar_lea.hbm %s17, %s3376
          %s3378 = sshll.u32 %s3369, 4
          %s3379 = int_to_ptr.vmem [resolvable:$true] %s3378
          %s3380 = sshll.u32 %s3377, 4
          %s3381 = int_to_ptr.hbm [resolvable:$true] %s3380
          %3386 = dma.vmem_to_hbm [thread:$0]  %s3379, 512, %s3381, %s3366, 128, 128, 8
        $region128: #{tpu_custom_call.1} parent=87 // pred_fallthru
          _
      $region88: #{tpu_custom_call.1} parent=5 // pred_fallthru
        _
      %p3387 = scmp.le.s32.totalorder 2, %s31
      // Predicated region
      $region129: #{tpu_custom_call.1} parent=5 // pred_check
        %p3388 = pneg %p3387
      $region130: #{tpu_custom_call.1} parent=5 // pred_check_branch
        %3390 = sbr.rel (%p3388) target = $region132
      $region131: #{tpu_custom_call.1} parent=5 // pred_region
        %s3391 = ssub.s32 %s31, 2
        // Predicated region
        $region133: #{tpu_custom_call.1} parent=131 // pred_check
          %p3392 = pneg %p427
        $region134: #{tpu_custom_call.1} parent=131 // pred_check_branch
          %3394 = sbr.rel (%p3392) target = $region136
        $region135: #{tpu_custom_call.1} parent=131 // pred_region
          %s3395 = sand.u32 %s412, 1
          %s3396 = scalar_lea.sflag [#allocation5], %s3395
          %s3397 = sand.u32 %s412, 1
          %s3398 = smul.addr %s3397, 32
          %s3399 = scalar_lea.vmem [#allocation17], %s3398
          %3401 = dma.done %s3396, 512
        $region136: #{tpu_custom_call.1} parent=131 // pred_fallthru
          _
      $region132: #{tpu_custom_call.1} parent=5 // pred_fallthru
        _
    $region6: #{tpu_custom_call.1} parent=1 // loop_footer
      %s35 = sadd.s32 1, %s31
    $region7: #{tpu_custom_call.1} parent=1 // loop_footer_branch
      %30 = sbr.rel target = $region3
    $region8: #{tpu_custom_call.1} parent=1 // loop_exit
      _
    %3402 = vsyncpa [#allocation4], 1
    %s3403 = scalar_lea.sflag [#allocation4], 1
    %3404 = vsyncpa %s3403, 1
    %3405 = vsyncpa [#allocation7], 1
    %3406 = vsyncpa [#allocation10], 1
    %3407 = vsyncpa [#allocation13], 1
    %3408 = vsyncpa [#allocation16], 1
    %3409 = vsyncpa [#allocation5], 1
    %s3410 = scalar_lea.sflag [#allocation5], 1
    %3411 = vsyncpa %s3410, 1

</llo_original>
